<compile_context>
chip_gen: v7x
topology: tpu7x:2x2x1
jax: 0.10.0
libtpu: 0.0.40
codegen_flags: <defaults>
</compile_context>

<pallas_src>
import jax
import jax.numpy as jnp
from jax.experimental import pallas as pl
from jax.experimental.pallas import tpu as pltpu

# --- small, module-consistent sizes -----------------------------------------
B = 2             # batch
S = 8             # encoder sequence length
H = 32            # hidden_size
E = 16            # embedding_dim
V = 64            # output_size == vocab size (rows of embedding matrix)
VP = 128          # vocab padded to a full lane width (lane-dense stores)
T = 8             # MAX_LENGTH (decode steps)
FW = VP + H       # 160: fused [fc | Wa] output width / f32 slab lane width
SOS_TOKEN = 1
NEG = -1e30       # bias for padded vocab lanes (never argmax, exp -> 0)


def attn_decoder_kernel(enc_ref, wslab_ref, wout_ref, fslab_ref, out_ref):
    # ---- unpack packed inputs (all static slices) ---------------------------
    enc = enc_ref[...]                                   # (B, S, H) f32
    wslab = wslab_ref[...]                               # (VP+3H, 4H) bf16
    w_gate = wslab[0:VP + 2 * H, :]                      # (VP+2H, 4H): [EW | Wctx | Wh]
    ua_T = wslab[VP + 2 * H:VP + 3 * H, 0:H]             # (H, H)  Ua.weight.T
    w_out = wout_ref[...]                                # (H, VP+H) bf16: [fc.T | Wa.T]
    fslab = fslab_ref[...]                               # (7, VP+H) f32

    b_lstm = fslab[0:1, 0:4 * H]                         # (1, 4H)  b_ih + b_hh
    out_b = fslab[1:2, :]                                # (1, VP+H) [fc bias (pads=-1e30) | Wa bias]
    ua_b = fslab[2:3, 0:H]                               # (1, H)
    va = fslab[2:3, H:2 * H]                             # (1, H)   Va.weight row
    h = fslab[3:5, 0:H]                                  # (B, H)   h0
    c = fslab[5:7, 0:H]                                  # (B, H)   c0

    # ---- step-invariant prologue --------------------------------------------
    # Ua projection of encoder outputs (hoisted out of the decode loop).
    enc2 = enc.reshape(B * S, H)
    ua_k = (jnp.dot(enc2.astype(jnp.bfloat16), ua_T,
                    preferred_element_type=jnp.float32) + ua_b).reshape(B, S, H)

    # loop invariants (hoisted: JAX does not CSE iota / broadcast_in_dim).
    iota = jax.lax.broadcasted_iota(jnp.int32, (B, VP), 1)
    va_b = jnp.broadcast_to(va.reshape(1, 1, H), (B, S, H))
    fill = jnp.zeros((B, VP - V - S), jnp.float32)

    # decoder_input = SOS for every batch element, as a one-hot row
    # (the embedding matrix is folded into w_gate, so the kernel only ever
    #  feeds one-hots into the gate matmul; dropout = identity in eval mode).
    one_hot = (iota == SOS_TOKEN).astype(jnp.float32)    # (B, VP)

    # step-0 attention query: h0 @ Wa^T + b_Wa, reusing the fused [fc | Wa].
    fused = jnp.dot(h.astype(jnp.bfloat16), w_out,
                    preferred_element_type=jnp.float32) + out_b
    wa_q = fused[:, VP:VP + H]                           # (B, H)

    # ---- T greedy decode steps (fully unrolled; h/c/wa_q/one_hot in vregs) --
    for t in range(T):
        # Bahdanau attention (query = current hidden, already Wa-projected).
        e = jnp.tanh(wa_q[:, None, :] + ua_k)                          # (B, S, H)
        # Va bias omitted: uniform shift along the softmax axis cancels.
        scores = jnp.sum(e * va_b, axis=-1)                            # (B, S)
        m = jnp.max(scores, axis=-1, keepdims=True)
        ex = jnp.exp(scores - m)
        w = ex / jnp.sum(ex, axis=-1, keepdims=True)                   # (B, S) exact
        ctx = jnp.sum(w[:, :, None] * enc, axis=1)                     # (B, H)

        # LSTM cell: ONE fused bf16 gate matmul over [one_hot | ctx | h].
        x = jnp.concatenate([one_hot, ctx, h], axis=-1).astype(jnp.bfloat16)
        gates = jnp.dot(x, w_gate, preferred_element_type=jnp.float32) + b_lstm
        i_g = jax.nn.sigmoid(gates[:, 0 * H:1 * H])
        f_g = jax.nn.sigmoid(gates[:, 1 * H:2 * H])
        g_g = jnp.tanh(gates[:, 2 * H:3 * H])
        o_g = jax.nn.sigmoid(gates[:, 3 * H:4 * H])
        c = f_g * c + i_g * g_g
        h = o_g * jnp.tanh(c)

        # fc projection + NEXT step's Wa query: one fused MXU push.
        fused = jnp.dot(h.astype(jnp.bfloat16), w_out,
                        preferred_element_type=jnp.float32) + out_b    # (B, VP+H)
        logits = fused[:, 0:VP]                                        # f32
        wa_q = fused[:, VP:VP + H]

        # log_softmax (padded lanes carry -1e30 bias -> exp underflows to 0).
        lmax = jnp.max(logits, axis=-1, keepdims=True)
        lse = jnp.log(jnp.sum(jnp.exp(logits - lmax), axis=-1,
                              keepdims=True)) + lmax
        logp = logits - lse

        # greedy feedback: first max index (torch.topk(1) tie-break); the
        # last step's feedback is dead code in the reference, so skip it.
        if t + 1 < T:
            idx = jnp.min(jnp.where(logits == lmax, iota, VP),
                          axis=-1, keepdims=True)
            one_hot = (iota == idx).astype(jnp.float32)

        # pack attention weights into the padded vocab lanes and store one
        # lane-dense 128-wide row per (batch, step) directly into the output.
        row = jnp.concatenate([logp[:, 0:V], w, fill], axis=-1)        # (B, VP)
        out_ref[:, t:t + 1, :] = row.reshape(B, 1, VP)


def attn_decoder_forward(encoder_outputs, hidden, params):
    h0, c0 = hidden                                      # (1, B, H) each (num_layers=1)

    # --- fused, pre-transposed gate weight with the embedding folded in -----
    w_lstm_T = jnp.concatenate([params["w_ih"], params["w_hh"]], axis=1).T  # (E+2H, 4H)
    emb_pad = jnp.zeros((VP, E), jnp.float32).at[:V].set(params["embedding"])
    ew = jnp.dot(emb_pad, w_lstm_T[:E])                  # (VP, 4H): one_hot@ew == emb@W_emb
    w_gate = jnp.concatenate([ew, w_lstm_T[E:]], axis=0)               # (VP+2H, 4H)
    ua_T_pad = jnp.zeros((H, 4 * H), jnp.float32).at[:, :H].set(params["ua_w"].T)
    wslab = jnp.concatenate([w_gate, ua_T_pad], axis=0).astype(jnp.bfloat16)  # (VP+3H, 4H)

    # --- fused [fc | Wa-query] weight (pre-transposed, vocab lane-padded) ---
    fc_T_pad = jnp.zeros((H, VP), jnp.float32).at[:, :V].set(params["fc_w"].T)
    w_out = jnp.concatenate([fc_T_pad, params["wa_w"].T],
                            axis=1).astype(jnp.bfloat16)               # (H, VP+H)

    # --- small f32 constants packed into one slab ----------------------------
    fc_b_pad = jnp.full((VP,), NEG, jnp.float32).at[:V].set(params["fc_b"])
    out_b = jnp.concatenate([fc_b_pad, params["wa_b"]])                # (VP+H,)
    b_lstm = params["b_ih"] + params["b_hh"]                           # (4H,)
    fslab = jnp.zeros((7, FW), jnp.float32)
    fslab = fslab.at[0, :4 * H].set(b_lstm)
    fslab = fslab.at[1, :].set(out_b)
    fslab = fslab.at[2, :H].set(params["ua_b"])
    fslab = fslab.at[2, H:2 * H].set(params["va_w"].reshape(H))
    fslab = fslab.at[3:5, :H].set(h0[0])
    fslab = fslab.at[5:7, :H].set(c0[0])
    # NOTE: params["va_b"] (Va bias) is intentionally dropped: a constant
    # added uniformly along the softmax axis cancels exactly.

    vmem = pltpu.MemorySpace.VMEM
    out = pl.pallas_call(
        attn_decoder_kernel,
        out_shape=jax.ShapeDtypeStruct((B, T, VP), jnp.float32),
        in_specs=[pl.BlockSpec(memory_space=vmem)] * 4,
        out_specs=pl.BlockSpec(memory_space=vmem),
    )(encoder_outputs, wslab, w_out, fslab)

    decoder_outputs = out[:, :, :V]                      # (B, T, V) log-probs
    attentions = out[:, :, V:V + S]                      # (B, T, S)
    # PyTorch forward returns the ORIGINAL `hidden`, not the updated one.
    return decoder_outputs, (hidden, attentions)


def init_params(key):
    ks = jax.random.split(key, 12)
    s = 0.1
    return {
        "embedding": jax.random.normal(ks[0], (V, E), jnp.float32) * s,
        "w_ih": jax.random.normal(ks[1], (4 * H, E + H), jnp.float32) * s,
        "w_hh": jax.random.normal(ks[2], (4 * H, H), jnp.float32) * s,
        "b_ih": jax.random.normal(ks[3], (4 * H,), jnp.float32) * s,
        "b_hh": jax.random.normal(ks[4], (4 * H,), jnp.float32) * s,
        "wa_w": jax.random.normal(ks[5], (H, H), jnp.float32) * s,
        "wa_b": jax.random.normal(ks[6], (H,), jnp.float32) * s,
        "ua_w": jax.random.normal(ks[7], (H, H), jnp.float32) * s,
        "ua_b": jax.random.normal(ks[8], (H,), jnp.float32) * s,
        "va_w": jax.random.normal(ks[9], (1, H), jnp.float32) * s,
        "va_b": jnp.zeros((1,), jnp.float32),
        "fc_w": jax.random.normal(ks[10], (V, H), jnp.float32) * s,
        "fc_b": jax.random.normal(ks[11], (V,), jnp.float32) * s,
    }


if __name__ == "__main__":
    key = jax.random.PRNGKey(0)
    k_enc, k_h, k_c, k_p = jax.random.split(key, 4)
    encoder_outputs = jax.random.normal(k_enc, (B, S, H), jnp.float32)
    hidden = (jax.random.normal(k_h, (1, B, H), jnp.float32),
              jax.random.normal(k_c, (1, B, H), jnp.float32))
    params = init_params(k_p)

    decoder_outputs, (hidden_out, attentions) = jax.jit(attn_decoder_forward)(
        encoder_outputs, hidden, params)
    jax.block_until_ready((decoder_outputs, attentions))

    assert decoder_outputs.shape == (B, T, V)
    assert attentions.shape == (B, T, S)
    assert bool(jnp.all(jnp.isfinite(decoder_outputs)))
    assert bool(jnp.all(jnp.isfinite(attentions)))
    # TODO(synk): dropout is treated as identity (eval mode); training-mode RNG dropout not implemented.
    print("KERNEL_OK")
</pallas_src>

<mosaic_0001>
module attributes {stable_mosaic.version = 11 : i64} {
  func.func @attn_decoder_kernel(%arg0: memref<2x8x32xf32, #tpu.memory_space<vmem>>, %arg1: memref<224x128xbf16, #tpu.memory_space<vmem>>, %arg2: memref<32x160xbf16, #tpu.memory_space<vmem>>, %arg3: memref<7x160xf32, #tpu.memory_space<vmem>>, %arg4: memref<2x8x128xf32, #tpu.memory_space<vmem>>) attributes {dimension_semantics = [], scalar_prefetch = 0 : i64, scratch_operands = 0 : i64, tpu.core_type = #tpu.core_type<tc>} {
    %c0 = arith.constant 0 : index
    %c0_0 = arith.constant 0 : index
    %c0_1 = arith.constant 0 : index
    %0 = vector.load %arg0[%c0, %c0_0, %c0_1] : memref<2x8x32xf32, #tpu.memory_space<vmem>>, vector<2x8x32xf32>
    %c0_2 = arith.constant 0 : index
    %c0_3 = arith.constant 0 : index
    %1 = vector.load %arg1[%c0_2, %c0_3] : memref<224x128xbf16, #tpu.memory_space<vmem>>, vector<224x128xbf16>
    %2 = vector.extract_strided_slice %1 {offsets = [0, 0], sizes = [192, 128], strides = [1, 1]} : vector<224x128xbf16> to vector<192x128xbf16>
    %3 = vector.extract_strided_slice %1 {offsets = [192, 0], sizes = [32, 32], strides = [1, 1]} : vector<224x128xbf16> to vector<32x32xbf16>
    %c0_4 = arith.constant 0 : index
    %c0_5 = arith.constant 0 : index
    %4 = vector.load %arg2[%c0_4, %c0_5] : memref<32x160xbf16, #tpu.memory_space<vmem>>, vector<32x160xbf16>
    %c0_6 = arith.constant 0 : index
    %c0_7 = arith.constant 0 : index
    %5 = vector.load %arg3[%c0_6, %c0_7] : memref<7x160xf32, #tpu.memory_space<vmem>>, vector<7x160xf32>
    %6 = vector.extract_strided_slice %5 {offsets = [0, 0], sizes = [1, 128], strides = [1, 1]} : vector<7x160xf32> to vector<1x128xf32>
    %7 = vector.extract_strided_slice %5 {offsets = [1, 0], sizes = [1, 160], strides = [1, 1]} : vector<7x160xf32> to vector<1x160xf32>
    %8 = vector.extract_strided_slice %5 {offsets = [2, 0], sizes = [1, 32], strides = [1, 1]} : vector<7x160xf32> to vector<1x32xf32>
    %9 = vector.extract_strided_slice %5 {offsets = [2, 32], sizes = [1, 32], strides = [1, 1]} : vector<7x160xf32> to vector<1x32xf32>
    %10 = vector.extract_strided_slice %5 {offsets = [3, 0], sizes = [2, 32], strides = [1, 1]} : vector<7x160xf32> to vector<2x32xf32>
    %11 = vector.extract_strided_slice %5 {offsets = [5, 0], sizes = [2, 32], strides = [1, 1]} : vector<7x160xf32> to vector<2x32xf32>
    %12 = vector.shape_cast %0 : vector<2x8x32xf32> to vector<16x32xf32>
    %13 = arith.truncf %12 : vector<16x32xf32> to vector<16x32xbf16>
    %cst = arith.constant dense<0.000000e+00> : vector<16x32xf32>
    %14 = tpu.matmul %13, %3, %cst {dimension_numbers = #tpu.dot_dimension_numbers<[1], [0], [0], [1], [0, 0, 1, 1], [], []>} : vector<16x32xbf16>, vector<32x32xbf16>, vector<16x32xf32> -> vector<16x32xf32>
    %15 = vector.broadcast %8 : vector<1x32xf32> to vector<16x32xf32>
    %16 = arith.addf %14, %15 : vector<16x32xf32>
    %17 = vector.shape_cast %16 : vector<16x32xf32> to vector<2x8x32xf32>
    %18 = tpu.iota {dimensions = array<i32: 1>} : vector<2x128xi32>
    %19 = vector.shape_cast %9 : vector<1x32xf32> to vector<1x1x32xf32>
    %20 = vector.shape_cast %19 : vector<1x1x32xf32> to vector<1x1x32xf32>
    %21 = vector.broadcast %20 : vector<1x1x32xf32> to vector<2x8x32xf32>
    %cst_8 = arith.constant 0.000000e+00 : f32
    %22 = vector.broadcast %cst_8 : f32 to vector<2x56xf32>
    %c1_i32 = arith.constant 1 : i32
    %23 = vector.broadcast %c1_i32 : i32 to vector<2x128xi32>
    %24 = arith.cmpi eq, %18, %23 : vector<2x128xi32>
    %25 = arith.extui %24 : vector<2x128xi1> to vector<2x128xi32>
    %26 = arith.sitofp %25 : vector<2x128xi32> to vector<2x128xf32>
    %27 = arith.truncf %10 : vector<2x32xf32> to vector<2x32xbf16>
    %cst_9 = arith.constant dense<0.000000e+00> : vector<2x160xf32>
    %28 = tpu.matmul %27, %4, %cst_9 {dimension_numbers = #tpu.dot_dimension_numbers<[1], [0], [0], [1], [0, 0, 1, 1], [], []>} : vector<2x32xbf16>, vector<32x160xbf16>, vector<2x160xf32> -> vector<2x160xf32>
    %29 = vector.broadcast %7 : vector<1x160xf32> to vector<2x160xf32>
    %30 = arith.addf %28, %29 : vector<2x160xf32>
    %31 = vector.extract_strided_slice %30 {offsets = [0, 128], sizes = [2, 32], strides = [1, 1]} : vector<2x160xf32> to vector<2x32xf32>
    %32 = vector.shape_cast %31 : vector<2x32xf32> to vector<2x1x32xf32>
    %33 = vector.broadcast %32 : vector<2x1x32xf32> to vector<2x8x32xf32>
    %34 = arith.addf %33, %17 : vector<2x8x32xf32>
    %35 = math.tanh %34 : vector<2x8x32xf32>
    %36 = arith.mulf %35, %21 : vector<2x8x32xf32>
    %cst_10 = arith.constant dense<0.000000e+00> : vector<2x8xf32>
    %37 = vector.multi_reduction <add>, %36, %cst_10 [2] : vector<2x8x32xf32> to vector<2x8xf32>
    %cst_11 = arith.constant dense<0xFF800000> : vector<2xf32>
    %38 = vector.multi_reduction <maximumf>, %37, %cst_11 [1] : vector<2x8xf32> to vector<2xf32>
    %39 = vector.shape_cast %38 : vector<2xf32> to vector<2x1xf32>
    %40 = vector.broadcast %39 : vector<2x1xf32> to vector<2x8xf32>
    %41 = arith.subf %37, %40 : vector<2x8xf32>
    %42 = math.exp %41 : vector<2x8xf32>
    %cst_12 = arith.constant dense<0.000000e+00> : vector<2xf32>
    %43 = vector.multi_reduction <add>, %42, %cst_12 [1] : vector<2x8xf32> to vector<2xf32>
    %44 = vector.shape_cast %43 : vector<2xf32> to vector<2x1xf32>
    %45 = vector.broadcast %44 : vector<2x1xf32> to vector<2x8xf32>
    %46 = arith.divf %42, %45 : vector<2x8xf32>
    %47 = vector.shape_cast %46 : vector<2x8xf32> to vector<2x8x1xf32>
    %48 = vector.broadcast %47 : vector<2x8x1xf32> to vector<2x8x32xf32>
    %49 = arith.mulf %48, %0 : vector<2x8x32xf32>
    %cst_13 = arith.constant dense<0.000000e+00> : vector<2x32xf32>
    %50 = vector.multi_reduction <add>, %49, %cst_13 [1] : vector<2x8x32xf32> to vector<2x32xf32>
    %51 = tpu.concatenate %26, %50, %10 in 1 : vector<2x128xf32>, vector<2x32xf32>, vector<2x32xf32> -> vector<2x192xf32>
    %52 = arith.truncf %51 : vector<2x192xf32> to vector<2x192xbf16>
    %cst_14 = arith.constant dense<0.000000e+00> : vector<2x128xf32>
    %53 = tpu.matmul %52, %2, %cst_14 {dimension_numbers = #tpu.dot_dimension_numbers<[1], [0], [0], [1], [0, 0, 1, 1], [], []>} : vector<2x192xbf16>, vector<192x128xbf16>, vector<2x128xf32> -> vector<2x128xf32>
    %54 = vector.broadcast %6 : vector<1x128xf32> to vector<2x128xf32>
    %55 = arith.addf %53, %54 : vector<2x128xf32>
    %56 = vector.extract_strided_slice %55 {offsets = [0, 0], sizes = [2, 32], strides = [1, 1]} : vector<2x128xf32> to vector<2x32xf32>
    %57 = arith.negf %56 : vector<2x32xf32>
    %58 = math.exp %57 : vector<2x32xf32>
    %cst_15 = arith.constant 1.000000e+00 : f32
    %59 = vector.broadcast %cst_15 : f32 to vector<2x32xf32>
    %60 = arith.addf %59, %58 : vector<2x32xf32>
    %61 = arith.divf %59, %60 : vector<2x32xf32>
    %62 = vector.extract_strided_slice %55 {offsets = [0, 32], sizes = [2, 32], strides = [1, 1]} : vector<2x128xf32> to vector<2x32xf32>
    %63 = arith.negf %62 : vector<2x32xf32>
    %64 = math.exp %63 : vector<2x32xf32>
    %cst_16 = arith.constant 1.000000e+00 : f32
    %65 = vector.broadcast %cst_16 : f32 to vector<2x32xf32>
    %66 = arith.addf %65, %64 : vector<2x32xf32>
    %67 = arith.divf %65, %66 : vector<2x32xf32>
    %68 = vector.extract_strided_slice %55 {offsets = [0, 64], sizes = [2, 32], strides = [1, 1]} : vector<2x128xf32> to vector<2x32xf32>
    %69 = math.tanh %68 : vector<2x32xf32>
    %70 = vector.extract_strided_slice %55 {offsets = [0, 96], sizes = [2, 32], strides = [1, 1]} : vector<2x128xf32> to vector<2x32xf32>
    %71 = arith.negf %70 : vector<2x32xf32>
    %72 = math.exp %71 : vector<2x32xf32>
    %cst_17 = arith.constant 1.000000e+00 : f32
    %73 = vector.broadcast %cst_17 : f32 to vector<2x32xf32>
    %74 = arith.addf %73, %72 : vector<2x32xf32>
    %75 = arith.divf %73, %74 : vector<2x32xf32>
    %76 = arith.mulf %67, %11 : vector<2x32xf32>
    %77 = arith.mulf %61, %69 : vector<2x32xf32>
    %78 = arith.addf %76, %77 : vector<2x32xf32>
    %79 = math.tanh %78 : vector<2x32xf32>
    %80 = arith.mulf %75, %79 : vector<2x32xf32>
    %81 = arith.truncf %80 : vector<2x32xf32> to vector<2x32xbf16>
    %cst_18 = arith.constant dense<0.000000e+00> : vector<2x160xf32>
    %82 = tpu.matmul %81, %4, %cst_18 {dimension_numbers = #tpu.dot_dimension_numbers<[1], [0], [0], [1], [0, 0, 1, 1], [], []>} : vector<2x32xbf16>, vector<32x160xbf16>, vector<2x160xf32> -> vector<2x160xf32>
    %83 = vector.broadcast %7 : vector<1x160xf32> to vector<2x160xf32>
    %84 = arith.addf %82, %83 : vector<2x160xf32>
    %85 = vector.extract_strided_slice %84 {offsets = [0, 0], sizes = [2, 128], strides = [1, 1]} : vector<2x160xf32> to vector<2x128xf32>
    %86 = vector.extract_strided_slice %84 {offsets = [0, 128], sizes = [2, 32], strides = [1, 1]} : vector<2x160xf32> to vector<2x32xf32>
    %cst_19 = arith.constant dense<0xFF800000> : vector<2xf32>
    %87 = vector.multi_reduction <maximumf>, %85, %cst_19 [1] : vector<2x128xf32> to vector<2xf32>
    %88 = vector.shape_cast %87 : vector<2xf32> to vector<2x1xf32>
    %89 = vector.broadcast %88 : vector<2x1xf32> to vector<2x128xf32>
    %90 = arith.subf %85, %89 : vector<2x128xf32>
    %91 = math.exp %90 : vector<2x128xf32>
    %cst_20 = arith.constant dense<0.000000e+00> : vector<2xf32>
    %92 = vector.multi_reduction <add>, %91, %cst_20 [1] : vector<2x128xf32> to vector<2xf32>
    %93 = vector.shape_cast %92 : vector<2xf32> to vector<2x1xf32>
    %94 = math.log %93 : vector<2x1xf32>
    %95 = arith.addf %94, %88 : vector<2x1xf32>
    %96 = vector.broadcast %95 : vector<2x1xf32> to vector<2x128xf32>
    %97 = arith.subf %85, %96 : vector<2x128xf32>
    %98 = vector.broadcast %88 : vector<2x1xf32> to vector<2x128xf32>
    %99 = arith.cmpf oeq, %85, %98 : vector<2x128xf32>
    %c128_i32 = arith.constant 128 : i32
    %100 = vector.broadcast %c128_i32 : i32 to vector<2x128xi32>
    %101 = arith.select %99, %18, %100 : vector<2x128xi1>, vector<2x128xi32>
    %cst_21 = arith.constant dense<2147483647> : vector<2xi32>
    %102 = vector.multi_reduction <minsi>, %101, %cst_21 [1] : vector<2x128xi32> to vector<2xi32>
    %103 = vector.shape_cast %102 : vector<2xi32> to vector<2x1xi32>
    %104 = vector.broadcast %103 : vector<2x1xi32> to vector<2x128xi32>
    %105 = arith.cmpi eq, %18, %104 : vector<2x128xi32>
    %106 = arith.extui %105 : vector<2x128xi1> to vector<2x128xi32>
    %107 = arith.sitofp %106 : vector<2x128xi32> to vector<2x128xf32>
    %108 = vector.extract_strided_slice %97 {offsets = [0, 0], sizes = [2, 64], strides = [1, 1]} : vector<2x128xf32> to vector<2x64xf32>
    %109 = tpu.concatenate %108, %46, %22 in 1 : vector<2x64xf32>, vector<2x8xf32>, vector<2x56xf32> -> vector<2x128xf32>
    %110 = vector.shape_cast %109 : vector<2x128xf32> to vector<2x1x128xf32>
    %c0_22 = arith.constant 0 : index
    %c0_23 = arith.constant 0 : index
    %c0_24 = arith.constant 0 : index
    %111 = vector.load %arg4[%c0_22, %c0_23, %c0_24] : memref<2x8x128xf32, #tpu.memory_space<vmem>>, vector<2x1x128xf32>
    tpu.vector_store %arg4[%c0_22, %c0_23, %c0_24], %110 {strides = array<i32>} : memref<2x8x128xf32, #tpu.memory_space<vmem>>, vector<2x1x128xf32>,
    %112 = vector.shape_cast %86 : vector<2x32xf32> to vector<2x1x32xf32>
    %113 = vector.broadcast %112 : vector<2x1x32xf32> to vector<2x8x32xf32>
    %114 = arith.addf %113, %17 : vector<2x8x32xf32>
    %115 = math.tanh %114 : vector<2x8x32xf32>
    %116 = arith.mulf %115, %21 : vector<2x8x32xf32>
    %cst_25 = arith.constant dense<0.000000e+00> : vector<2x8xf32>
    %117 = vector.multi_reduction <add>, %116, %cst_25 [2] : vector<2x8x32xf32> to vector<2x8xf32>
    %cst_26 = arith.constant dense<0xFF800000> : vector<2xf32>
    %118 = vector.multi_reduction <maximumf>, %117, %cst_26 [1] : vector<2x8xf32> to vector<2xf32>
    %119 = vector.shape_cast %118 : vector<2xf32> to vector<2x1xf32>
    %120 = vector.broadcast %119 : vector<2x1xf32> to vector<2x8xf32>
    %121 = arith.subf %117, %120 : vector<2x8xf32>
    %122 = math.exp %121 : vector<2x8xf32>
    %cst_27 = arith.constant dense<0.000000e+00> : vector<2xf32>
    %123 = vector.multi_reduction <add>, %122, %cst_27 [1] : vector<2x8xf32> to vector<2xf32>
    %124 = vector.shape_cast %123 : vector<2xf32> to vector<2x1xf32>
    %125 = vector.broadcast %124 : vector<2x1xf32> to vector<2x8xf32>
    %126 = arith.divf %122, %125 : vector<2x8xf32>
    %127 = vector.shape_cast %126 : vector<2x8xf32> to vector<2x8x1xf32>
    %128 = vector.broadcast %127 : vector<2x8x1xf32> to vector<2x8x32xf32>
    %129 = arith.mulf %128, %0 : vector<2x8x32xf32>
    %cst_28 = arith.constant dense<0.000000e+00> : vector<2x32xf32>
    %130 = vector.multi_reduction <add>, %129, %cst_28 [1] : vector<2x8x32xf32> to vector<2x32xf32>
    %131 = tpu.concatenate %107, %130, %80 in 1 : vector<2x128xf32>, vector<2x32xf32>, vector<2x32xf32> -> vector<2x192xf32>
    %132 = arith.truncf %131 : vector<2x192xf32> to vector<2x192xbf16>
    %cst_29 = arith.constant dense<0.000000e+00> : vector<2x128xf32>
    %133 = tpu.matmul %132, %2, %cst_29 {dimension_numbers = #tpu.dot_dimension_numbers<[1], [0], [0], [1], [0, 0, 1, 1], [], []>} : vector<2x192xbf16>, vector<192x128xbf16>, vector<2x128xf32> -> vector<2x128xf32>
    %134 = vector.broadcast %6 : vector<1x128xf32> to vector<2x128xf32>
    %135 = arith.addf %133, %134 : vector<2x128xf32>
    %136 = vector.extract_strided_slice %135 {offsets = [0, 0], sizes = [2, 32], strides = [1, 1]} : vector<2x128xf32> to vector<2x32xf32>
    %137 = arith.negf %136 : vector<2x32xf32>
    %138 = math.exp %137 : vector<2x32xf32>
    %cst_30 = arith.constant 1.000000e+00 : f32
    %139 = vector.broadcast %cst_30 : f32 to vector<2x32xf32>
    %140 = arith.addf %139, %138 : vector<2x32xf32>
    %141 = arith.divf %139, %140 : vector<2x32xf32>
    %142 = vector.extract_strided_slice %135 {offsets = [0, 32], sizes = [2, 32], strides = [1, 1]} : vector<2x128xf32> to vector<2x32xf32>
    %143 = arith.negf %142 : vector<2x32xf32>
    %144 = math.exp %143 : vector<2x32xf32>
    %cst_31 = arith.constant 1.000000e+00 : f32
    %145 = vector.broadcast %cst_31 : f32 to vector<2x32xf32>
    %146 = arith.addf %145, %144 : vector<2x32xf32>
    %147 = arith.divf %145, %146 : vector<2x32xf32>
    %148 = vector.extract_strided_slice %135 {offsets = [0, 64], sizes = [2, 32], strides = [1, 1]} : vector<2x128xf32> to vector<2x32xf32>
    %149 = math.tanh %148 : vector<2x32xf32>
    %150 = vector.extract_strided_slice %135 {offsets = [0, 96], sizes = [2, 32], strides = [1, 1]} : vector<2x128xf32> to vector<2x32xf32>
    %151 = arith.negf %150 : vector<2x32xf32>
    %152 = math.exp %151 : vector<2x32xf32>
    %cst_32 = arith.constant 1.000000e+00 : f32
    %153 = vector.broadcast %cst_32 : f32 to vector<2x32xf32>
    %154 = arith.addf %153, %152 : vector<2x32xf32>
    %155 = arith.divf %153, %154 : vector<2x32xf32>
    %156 = arith.mulf %147, %78 : vector<2x32xf32>
    %157 = arith.mulf %141, %149 : vector<2x32xf32>
    %158 = arith.addf %156, %157 : vector<2x32xf32>
    %159 = math.tanh %158 : vector<2x32xf32>
    %160 = arith.mulf %155, %159 : vector<2x32xf32>
    %161 = arith.truncf %160 : vector<2x32xf32> to vector<2x32xbf16>
    %cst_33 = arith.constant dense<0.000000e+00> : vector<2x160xf32>
    %162 = tpu.matmul %161, %4, %cst_33 {dimension_numbers = #tpu.dot_dimension_numbers<[1], [0], [0], [1], [0, 0, 1, 1], [], []>} : vector<2x32xbf16>, vector<32x160xbf16>, vector<2x160xf32> -> vector<2x160xf32>
    %163 = vector.broadcast %7 : vector<1x160xf32> to vector<2x160xf32>
    %164 = arith.addf %162, %163 : vector<2x160xf32>
    %165 = vector.extract_strided_slice %164 {offsets = [0, 0], sizes = [2, 128], strides = [1, 1]} : vector<2x160xf32> to vector<2x128xf32>
    %166 = vector.extract_strided_slice %164 {offsets = [0, 128], sizes = [2, 32], strides = [1, 1]} : vector<2x160xf32> to vector<2x32xf32>
    %cst_34 = arith.constant dense<0xFF800000> : vector<2xf32>
    %167 = vector.multi_reduction <maximumf>, %165, %cst_34 [1] : vector<2x128xf32> to vector<2xf32>
    %168 = vector.shape_cast %167 : vector<2xf32> to vector<2x1xf32>
    %169 = vector.broadcast %168 : vector<2x1xf32> to vector<2x128xf32>
    %170 = arith.subf %165, %169 : vector<2x128xf32>
    %171 = math.exp %170 : vector<2x128xf32>
    %cst_35 = arith.constant dense<0.000000e+00> : vector<2xf32>
    %172 = vector.multi_reduction <add>, %171, %cst_35 [1] : vector<2x128xf32> to vector<2xf32>
    %173 = vector.shape_cast %172 : vector<2xf32> to vector<2x1xf32>
    %174 = math.log %173 : vector<2x1xf32>
    %175 = arith.addf %174, %168 : vector<2x1xf32>
    %176 = vector.broadcast %175 : vector<2x1xf32> to vector<2x128xf32>
    %177 = arith.subf %165, %176 : vector<2x128xf32>
    %178 = vector.broadcast %168 : vector<2x1xf32> to vector<2x128xf32>
    %179 = arith.cmpf oeq, %165, %178 : vector<2x128xf32>
    %c128_i32_36 = arith.constant 128 : i32
    %180 = vector.broadcast %c128_i32_36 : i32 to vector<2x128xi32>
    %181 = arith.select %179, %18, %180 : vector<2x128xi1>, vector<2x128xi32>
    %cst_37 = arith.constant dense<2147483647> : vector<2xi32>
    %182 = vector.multi_reduction <minsi>, %181, %cst_37 [1] : vector<2x128xi32> to vector<2xi32>
    %183 = vector.shape_cast %182 : vector<2xi32> to vector<2x1xi32>
    %184 = vector.broadcast %183 : vector<2x1xi32> to vector<2x128xi32>
    %185 = arith.cmpi eq, %18, %184 : vector<2x128xi32>
    %186 = arith.extui %185 : vector<2x128xi1> to vector<2x128xi32>
    %187 = arith.sitofp %186 : vector<2x128xi32> to vector<2x128xf32>
    %188 = vector.extract_strided_slice %177 {offsets = [0, 0], sizes = [2, 64], strides = [1, 1]} : vector<2x128xf32> to vector<2x64xf32>
    %189 = tpu.concatenate %188, %126, %22 in 1 : vector<2x64xf32>, vector<2x8xf32>, vector<2x56xf32> -> vector<2x128xf32>
    %190 = vector.shape_cast %189 : vector<2x128xf32> to vector<2x1x128xf32>
    %c0_38 = arith.constant 0 : index
    %c1 = arith.constant 1 : index
    %c0_39 = arith.constant 0 : index
    %191 = vector.load %arg4[%c0_38, %c1, %c0_39] : memref<2x8x128xf32, #tpu.memory_space<vmem>>, vector<2x1x128xf32>
    tpu.vector_store %arg4[%c0_38, %c1, %c0_39], %190 {strides = array<i32>} : memref<2x8x128xf32, #tpu.memory_space<vmem>>, vector<2x1x128xf32>,
    %192 = vector.shape_cast %166 : vector<2x32xf32> to vector<2x1x32xf32>
    %193 = vector.broadcast %192 : vector<2x1x32xf32> to vector<2x8x32xf32>
    %194 = arith.addf %193, %17 : vector<2x8x32xf32>
    %195 = math.tanh %194 : vector<2x8x32xf32>
    %196 = arith.mulf %195, %21 : vector<2x8x32xf32>
    %cst_40 = arith.constant dense<0.000000e+00> : vector<2x8xf32>
    %197 = vector.multi_reduction <add>, %196, %cst_40 [2] : vector<2x8x32xf32> to vector<2x8xf32>
    %cst_41 = arith.constant dense<0xFF800000> : vector<2xf32>
    %198 = vector.multi_reduction <maximumf>, %197, %cst_41 [1] : vector<2x8xf32> to vector<2xf32>
    %199 = vector.shape_cast %198 : vector<2xf32> to vector<2x1xf32>
    %200 = vector.broadcast %199 : vector<2x1xf32> to vector<2x8xf32>
    %201 = arith.subf %197, %200 : vector<2x8xf32>
    %202 = math.exp %201 : vector<2x8xf32>
    %cst_42 = arith.constant dense<0.000000e+00> : vector<2xf32>
    %203 = vector.multi_reduction <add>, %202, %cst_42 [1] : vector<2x8xf32> to vector<2xf32>
    %204 = vector.shape_cast %203 : vector<2xf32> to vector<2x1xf32>
    %205 = vector.broadcast %204 : vector<2x1xf32> to vector<2x8xf32>
    %206 = arith.divf %202, %205 : vector<2x8xf32>
    %207 = vector.shape_cast %206 : vector<2x8xf32> to vector<2x8x1xf32>
    %208 = vector.broadcast %207 : vector<2x8x1xf32> to vector<2x8x32xf32>
    %209 = arith.mulf %208, %0 : vector<2x8x32xf32>
    %cst_43 = arith.constant dense<0.000000e+00> : vector<2x32xf32>
    %210 = vector.multi_reduction <add>, %209, %cst_43 [1] : vector<2x8x32xf32> to vector<2x32xf32>
    %211 = tpu.concatenate %187, %210, %160 in 1 : vector<2x128xf32>, vector<2x32xf32>, vector<2x32xf32> -> vector<2x192xf32>
    %212 = arith.truncf %211 : vector<2x192xf32> to vector<2x192xbf16>
    %cst_44 = arith.constant dense<0.000000e+00> : vector<2x128xf32>
    %213 = tpu.matmul %212, %2, %cst_44 {dimension_numbers = #tpu.dot_dimension_numbers<[1], [0], [0], [1], [0, 0, 1, 1], [], []>} : vector<2x192xbf16>, vector<192x128xbf16>, vector<2x128xf32> -> vector<2x128xf32>
    %214 = vector.broadcast %6 : vector<1x128xf32> to vector<2x128xf32>
    %215 = arith.addf %213, %214 : vector<2x128xf32>
    %216 = vector.extract_strided_slice %215 {offsets = [0, 0], sizes = [2, 32], strides = [1, 1]} : vector<2x128xf32> to vector<2x32xf32>
    %217 = arith.negf %216 : vector<2x32xf32>
    %218 = math.exp %217 : vector<2x32xf32>
    %cst_45 = arith.constant 1.000000e+00 : f32
    %219 = vector.broadcast %cst_45 : f32 to vector<2x32xf32>
    %220 = arith.addf %219, %218 : vector<2x32xf32>
    %221 = arith.divf %219, %220 : vector<2x32xf32>
    %222 = vector.extract_strided_slice %215 {offsets = [0, 32], sizes = [2, 32], strides = [1, 1]} : vector<2x128xf32> to vector<2x32xf32>
    %223 = arith.negf %222 : vector<2x32xf32>
    %224 = math.exp %223 : vector<2x32xf32>
    %cst_46 = arith.constant 1.000000e+00 : f32
    %225 = vector.broadcast %cst_46 : f32 to vector<2x32xf32>
    %226 = arith.addf %225, %224 : vector<2x32xf32>
    %227 = arith.divf %225, %226 : vector<2x32xf32>
    %228 = vector.extract_strided_slice %215 {offsets = [0, 64], sizes = [2, 32], strides = [1, 1]} : vector<2x128xf32> to vector<2x32xf32>
    %229 = math.tanh %228 : vector<2x32xf32>
    %230 = vector.extract_strided_slice %215 {offsets = [0, 96], sizes = [2, 32], strides = [1, 1]} : vector<2x128xf32> to vector<2x32xf32>
    %231 = arith.negf %230 : vector<2x32xf32>
    %232 = math.exp %231 : vector<2x32xf32>
    %cst_47 = arith.constant 1.000000e+00 : f32
    %233 = vector.broadcast %cst_47 : f32 to vector<2x32xf32>
    %234 = arith.addf %233, %232 : vector<2x32xf32>
    %235 = arith.divf %233, %234 : vector<2x32xf32>
    %236 = arith.mulf %227, %158 : vector<2x32xf32>
    %237 = arith.mulf %221, %229 : vector<2x32xf32>
    %238 = arith.addf %236, %237 : vector<2x32xf32>
    %239 = math.tanh %238 : vector<2x32xf32>
    %240 = arith.mulf %235, %239 : vector<2x32xf32>
    %241 = arith.truncf %240 : vector<2x32xf32> to vector<2x32xbf16>
    %cst_48 = arith.constant dense<0.000000e+00> : vector<2x160xf32>
    %242 = tpu.matmul %241, %4, %cst_48 {dimension_numbers = #tpu.dot_dimension_numbers<[1], [0], [0], [1], [0, 0, 1, 1], [], []>} : vector<2x32xbf16>, vector<32x160xbf16>, vector<2x160xf32> -> vector<2x160xf32>
    %243 = vector.broadcast %7 : vector<1x160xf32> to vector<2x160xf32>
    %244 = arith.addf %242, %243 : vector<2x160xf32>
    %245 = vector.extract_strided_slice %244 {offsets = [0, 0], sizes = [2, 128], strides = [1, 1]} : vector<2x160xf32> to vector<2x128xf32>
    %246 = vector.extract_strided_slice %244 {offsets = [0, 128], sizes = [2, 32], strides = [1, 1]} : vector<2x160xf32> to vector<2x32xf32>
    %cst_49 = arith.constant dense<0xFF800000> : vector<2xf32>
    %247 = vector.multi_reduction <maximumf>, %245, %cst_49 [1] : vector<2x128xf32> to vector<2xf32>
    %248 = vector.shape_cast %247 : vector<2xf32> to vector<2x1xf32>
    %249 = vector.broadcast %248 : vector<2x1xf32> to vector<2x128xf32>
    %250 = arith.subf %245, %249 : vector<2x128xf32>
    %251 = math.exp %250 : vector<2x128xf32>
    %cst_50 = arith.constant dense<0.000000e+00> : vector<2xf32>
    %252 = vector.multi_reduction <add>, %251, %cst_50 [1] : vector<2x128xf32> to vector<2xf32>
    %253 = vector.shape_cast %252 : vector<2xf32> to vector<2x1xf32>
    %254 = math.log %253 : vector<2x1xf32>
    %255 = arith.addf %254, %248 : vector<2x1xf32>
    %256 = vector.broadcast %255 : vector<2x1xf32> to vector<2x128xf32>
    %257 = arith.subf %245, %256 : vector<2x128xf32>
    %258 = vector.broadcast %248 : vector<2x1xf32> to vector<2x128xf32>
    %259 = arith.cmpf oeq, %245, %258 : vector<2x128xf32>
    %c128_i32_51 = arith.constant 128 : i32
    %260 = vector.broadcast %c128_i32_51 : i32 to vector<2x128xi32>
    %261 = arith.select %259, %18, %260 : vector<2x128xi1>, vector<2x128xi32>
    %cst_52 = arith.constant dense<2147483647> : vector<2xi32>
    %262 = vector.multi_reduction <minsi>, %261, %cst_52 [1] : vector<2x128xi32> to vector<2xi32>
    %263 = vector.shape_cast %262 : vector<2xi32> to vector<2x1xi32>
    %264 = vector.broadcast %263 : vector<2x1xi32> to vector<2x128xi32>
    %265 = arith.cmpi eq, %18, %264 : vector<2x128xi32>
    %266 = arith.extui %265 : vector<2x128xi1> to vector<2x128xi32>
    %267 = arith.sitofp %266 : vector<2x128xi32> to vector<2x128xf32>
    %268 = vector.extract_strided_slice %257 {offsets = [0, 0], sizes = [2, 64], strides = [1, 1]} : vector<2x128xf32> to vector<2x64xf32>
    %269 = tpu.concatenate %268, %206, %22 in 1 : vector<2x64xf32>, vector<2x8xf32>, vector<2x56xf32> -> vector<2x128xf32>
    %270 = vector.shape_cast %269 : vector<2x128xf32> to vector<2x1x128xf32>
    %c0_53 = arith.constant 0 : index
    %c2 = arith.constant 2 : index
    %c0_54 = arith.constant 0 : index
    %271 = vector.load %arg4[%c0_53, %c2, %c0_54] : memref<2x8x128xf32, #tpu.memory_space<vmem>>, vector<2x1x128xf32>
    tpu.vector_store %arg4[%c0_53, %c2, %c0_54], %270 {strides = array<i32>} : memref<2x8x128xf32, #tpu.memory_space<vmem>>, vector<2x1x128xf32>,
    %272 = vector.shape_cast %246 : vector<2x32xf32> to vector<2x1x32xf32>
    %273 = vector.broadcast %272 : vector<2x1x32xf32> to vector<2x8x32xf32>
    %274 = arith.addf %273, %17 : vector<2x8x32xf32>
    %275 = math.tanh %274 : vector<2x8x32xf32>
    %276 = arith.mulf %275, %21 : vector<2x8x32xf32>
    %cst_55 = arith.constant dense<0.000000e+00> : vector<2x8xf32>
    %277 = vector.multi_reduction <add>, %276, %cst_55 [2] : vector<2x8x32xf32> to vector<2x8xf32>
    %cst_56 = arith.constant dense<0xFF800000> : vector<2xf32>
    %278 = vector.multi_reduction <maximumf>, %277, %cst_56 [1] : vector<2x8xf32> to vector<2xf32>
    %279 = vector.shape_cast %278 : vector<2xf32> to vector<2x1xf32>
    %280 = vector.broadcast %279 : vector<2x1xf32> to vector<2x8xf32>
    %281 = arith.subf %277, %280 : vector<2x8xf32>
    %282 = math.exp %281 : vector<2x8xf32>
    %cst_57 = arith.constant dense<0.000000e+00> : vector<2xf32>
    %283 = vector.multi_reduction <add>, %282, %cst_57 [1] : vector<2x8xf32> to vector<2xf32>
    %284 = vector.shape_cast %283 : vector<2xf32> to vector<2x1xf32>
    %285 = vector.broadcast %284 : vector<2x1xf32> to vector<2x8xf32>
    %286 = arith.divf %282, %285 : vector<2x8xf32>
    %287 = vector.shape_cast %286 : vector<2x8xf32> to vector<2x8x1xf32>
    %288 = vector.broadcast %287 : vector<2x8x1xf32> to vector<2x8x32xf32>
    %289 = arith.mulf %288, %0 : vector<2x8x32xf32>
    %cst_58 = arith.constant dense<0.000000e+00> : vector<2x32xf32>
    %290 = vector.multi_reduction <add>, %289, %cst_58 [1] : vector<2x8x32xf32> to vector<2x32xf32>
    %291 = tpu.concatenate %267, %290, %240 in 1 : vector<2x128xf32>, vector<2x32xf32>, vector<2x32xf32> -> vector<2x192xf32>
    %292 = arith.truncf %291 : vector<2x192xf32> to vector<2x192xbf16>
    %cst_59 = arith.constant dense<0.000000e+00> : vector<2x128xf32>
    %293 = tpu.matmul %292, %2, %cst_59 {dimension_numbers = #tpu.dot_dimension_numbers<[1], [0], [0], [1], [0, 0, 1, 1], [], []>} : vector<2x192xbf16>, vector<192x128xbf16>, vector<2x128xf32> -> vector<2x128xf32>
    %294 = vector.broadcast %6 : vector<1x128xf32> to vector<2x128xf32>
    %295 = arith.addf %293, %294 : vector<2x128xf32>
    %296 = vector.extract_strided_slice %295 {offsets = [0, 0], sizes = [2, 32], strides = [1, 1]} : vector<2x128xf32> to vector<2x32xf32>
    %297 = arith.negf %296 : vector<2x32xf32>
    %298 = math.exp %297 : vector<2x32xf32>
    %cst_60 = arith.constant 1.000000e+00 : f32
    %299 = vector.broadcast %cst_60 : f32 to vector<2x32xf32>
    %300 = arith.addf %299, %298 : vector<2x32xf32>
    %301 = arith.divf %299, %300 : vector<2x32xf32>
    %302 = vector.extract_strided_slice %295 {offsets = [0, 32], sizes = [2, 32], strides = [1, 1]} : vector<2x128xf32> to vector<2x32xf32>
    %303 = arith.negf %302 : vector<2x32xf32>
    %304 = math.exp %303 : vector<2x32xf32>
    %cst_61 = arith.constant 1.000000e+00 : f32
    %305 = vector.broadcast %cst_61 : f32 to vector<2x32xf32>
    %306 = arith.addf %305, %304 : vector<2x32xf32>
    %307 = arith.divf %305, %306 : vector<2x32xf32>
    %308 = vector.extract_strided_slice %295 {offsets = [0, 64], sizes = [2, 32], strides = [1, 1]} : vector<2x128xf32> to vector<2x32xf32>
    %309 = math.tanh %308 : vector<2x32xf32>
    %310 = vector.extract_strided_slice %295 {offsets = [0, 96], sizes = [2, 32], strides = [1, 1]} : vector<2x128xf32> to vector<2x32xf32>
    %311 = arith.negf %310 : vector<2x32xf32>
    %312 = math.exp %311 : vector<2x32xf32>
    %cst_62 = arith.constant 1.000000e+00 : f32
    %313 = vector.broadcast %cst_62 : f32 to vector<2x32xf32>
    %314 = arith.addf %313, %312 : vector<2x32xf32>
    %315 = arith.divf %313, %314 : vector<2x32xf32>
    %316 = arith.mulf %307, %238 : vector<2x32xf32>
    %317 = arith.mulf %301, %309 : vector<2x32xf32>
    %318 = arith.addf %316, %317 : vector<2x32xf32>
    %319 = math.tanh %318 : vector<2x32xf32>
    %320 = arith.mulf %315, %319 : vector<2x32xf32>
    %321 = arith.truncf %320 : vector<2x32xf32> to vector<2x32xbf16>
    %cst_63 = arith.constant dense<0.000000e+00> : vector<2x160xf32>
    %322 = tpu.matmul %321, %4, %cst_63 {dimension_numbers = #tpu.dot_dimension_numbers<[1], [0], [0], [1], [0, 0, 1, 1], [], []>} : vector<2x32xbf16>, vector<32x160xbf16>, vector<2x160xf32> -> vector<2x160xf32>
    %323 = vector.broadcast %7 : vector<1x160xf32> to vector<2x160xf32>
    %324 = arith.addf %322, %323 : vector<2x160xf32>
    %325 = vector.extract_strided_slice %324 {offsets = [0, 0], sizes = [2, 128], strides = [1, 1]} : vector<2x160xf32> to vector<2x128xf32>
    %326 = vector.extract_strided_slice %324 {offsets = [0, 128], sizes = [2, 32], strides = [1, 1]} : vector<2x160xf32> to vector<2x32xf32>
    %cst_64 = arith.constant dense<0xFF800000> : vector<2xf32>
    %327 = vector.multi_reduction <maximumf>, %325, %cst_64 [1] : vector<2x128xf32> to vector<2xf32>
    %328 = vector.shape_cast %327 : vector<2xf32> to vector<2x1xf32>
    %329 = vector.broadcast %328 : vector<2x1xf32> to vector<2x128xf32>
    %330 = arith.subf %325, %329 : vector<2x128xf32>
    %331 = math.exp %330 : vector<2x128xf32>
    %cst_65 = arith.constant dense<0.000000e+00> : vector<2xf32>
    %332 = vector.multi_reduction <add>, %331, %cst_65 [1] : vector<2x128xf32> to vector<2xf32>
    %333 = vector.shape_cast %332 : vector<2xf32> to vector<2x1xf32>
    %334 = math.log %333 : vector<2x1xf32>
    %335 = arith.addf %334, %328 : vector<2x1xf32>
    %336 = vector.broadcast %335 : vector<2x1xf32> to vector<2x128xf32>
    %337 = arith.subf %325, %336 : vector<2x128xf32>
    %338 = vector.broadcast %328 : vector<2x1xf32> to vector<2x128xf32>
    %339 = arith.cmpf oeq, %325, %338 : vector<2x128xf32>
    %c128_i32_66 = arith.constant 128 : i32
    %340 = vector.broadcast %c128_i32_66 : i32 to vector<2x128xi32>
    %341 = arith.select %339, %18, %340 : vector<2x128xi1>, vector<2x128xi32>
    %cst_67 = arith.constant dense<2147483647> : vector<2xi32>
    %342 = vector.multi_reduction <minsi>, %341, %cst_67 [1] : vector<2x128xi32> to vector<2xi32>
    %343 = vector.shape_cast %342 : vector<2xi32> to vector<2x1xi32>
    %344 = vector.broadcast %343 : vector<2x1xi32> to vector<2x128xi32>
    %345 = arith.cmpi eq, %18, %344 : vector<2x128xi32>
    %346 = arith.extui %345 : vector<2x128xi1> to vector<2x128xi32>
    %347 = arith.sitofp %346 : vector<2x128xi32> to vector<2x128xf32>
    %348 = vector.extract_strided_slice %337 {offsets = [0, 0], sizes = [2, 64], strides = [1, 1]} : vector<2x128xf32> to vector<2x64xf32>
    %349 = tpu.concatenate %348, %286, %22 in 1 : vector<2x64xf32>, vector<2x8xf32>, vector<2x56xf32> -> vector<2x128xf32>
    %350 = vector.shape_cast %349 : vector<2x128xf32> to vector<2x1x128xf32>
    %c0_68 = arith.constant 0 : index
    %c3 = arith.constant 3 : index
    %c0_69 = arith.constant 0 : index
    %351 = vector.load %arg4[%c0_68, %c3, %c0_69] : memref<2x8x128xf32, #tpu.memory_space<vmem>>, vector<2x1x128xf32>
    tpu.vector_store %arg4[%c0_68, %c3, %c0_69], %350 {strides = array<i32>} : memref<2x8x128xf32, #tpu.memory_space<vmem>>, vector<2x1x128xf32>,
    %352 = vector.shape_cast %326 : vector<2x32xf32> to vector<2x1x32xf32>
    %353 = vector.broadcast %352 : vector<2x1x32xf32> to vector<2x8x32xf32>
    %354 = arith.addf %353, %17 : vector<2x8x32xf32>
    %355 = math.tanh %354 : vector<2x8x32xf32>
    %356 = arith.mulf %355, %21 : vector<2x8x32xf32>
    %cst_70 = arith.constant dense<0.000000e+00> : vector<2x8xf32>
    %357 = vector.multi_reduction <add>, %356, %cst_70 [2] : vector<2x8x32xf32> to vector<2x8xf32>
    %cst_71 = arith.constant dense<0xFF800000> : vector<2xf32>
    %358 = vector.multi_reduction <maximumf>, %357, %cst_71 [1] : vector<2x8xf32> to vector<2xf32>
    %359 = vector.shape_cast %358 : vector<2xf32> to vector<2x1xf32>
    %360 = vector.broadcast %359 : vector<2x1xf32> to vector<2x8xf32>
    %361 = arith.subf %357, %360 : vector<2x8xf32>
    %362 = math.exp %361 : vector<2x8xf32>
    %cst_72 = arith.constant dense<0.000000e+00> : vector<2xf32>
    %363 = vector.multi_reduction <add>, %362, %cst_72 [1] : vector<2x8xf32> to vector<2xf32>
    %364 = vector.shape_cast %363 : vector<2xf32> to vector<2x1xf32>
    %365 = vector.broadcast %364 : vector<2x1xf32> to vector<2x8xf32>
    %366 = arith.divf %362, %365 : vector<2x8xf32>
    %367 = vector.shape_cast %366 : vector<2x8xf32> to vector<2x8x1xf32>
    %368 = vector.broadcast %367 : vector<2x8x1xf32> to vector<2x8x32xf32>
    %369 = arith.mulf %368, %0 : vector<2x8x32xf32>
    %cst_73 = arith.constant dense<0.000000e+00> : vector<2x32xf32>
    %370 = vector.multi_reduction <add>, %369, %cst_73 [1] : vector<2x8x32xf32> to vector<2x32xf32>
    %371 = tpu.concatenate %347, %370, %320 in 1 : vector<2x128xf32>, vector<2x32xf32>, vector<2x32xf32> -> vector<2x192xf32>
    %372 = arith.truncf %371 : vector<2x192xf32> to vector<2x192xbf16>
    %cst_74 = arith.constant dense<0.000000e+00> : vector<2x128xf32>
    %373 = tpu.matmul %372, %2, %cst_74 {dimension_numbers = #tpu.dot_dimension_numbers<[1], [0], [0], [1], [0, 0, 1, 1], [], []>} : vector<2x192xbf16>, vector<192x128xbf16>, vector<2x128xf32> -> vector<2x128xf32>
    %374 = vector.broadcast %6 : vector<1x128xf32> to vector<2x128xf32>
    %375 = arith.addf %373, %374 : vector<2x128xf32>
    %376 = vector.extract_strided_slice %375 {offsets = [0, 0], sizes = [2, 32], strides = [1, 1]} : vector<2x128xf32> to vector<2x32xf32>
    %377 = arith.negf %376 : vector<2x32xf32>
    %378 = math.exp %377 : vector<2x32xf32>
    %cst_75 = arith.constant 1.000000e+00 : f32
    %379 = vector.broadcast %cst_75 : f32 to vector<2x32xf32>
    %380 = arith.addf %379, %378 : vector<2x32xf32>
    %381 = arith.divf %379, %380 : vector<2x32xf32>
    %382 = vector.extract_strided_slice %375 {offsets = [0, 32], sizes = [2, 32], strides = [1, 1]} : vector<2x128xf32> to vector<2x32xf32>
    %383 = arith.negf %382 : vector<2x32xf32>
    %384 = math.exp %383 : vector<2x32xf32>
    %cst_76 = arith.constant 1.000000e+00 : f32
    %385 = vector.broadcast %cst_76 : f32 to vector<2x32xf32>
    %386 = arith.addf %385, %384 : vector<2x32xf32>
    %387 = arith.divf %385, %386 : vector<2x32xf32>
    %388 = vector.extract_strided_slice %375 {offsets = [0, 64], sizes = [2, 32], strides = [1, 1]} : vector<2x128xf32> to vector<2x32xf32>
    %389 = math.tanh %388 : vector<2x32xf32>
    %390 = vector.extract_strided_slice %375 {offsets = [0, 96], sizes = [2, 32], strides = [1, 1]} : vector<2x128xf32> to vector<2x32xf32>
    %391 = arith.negf %390 : vector<2x32xf32>
    %392 = math.exp %391 : vector<2x32xf32>
    %cst_77 = arith.constant 1.000000e+00 : f32
    %393 = vector.broadcast %cst_77 : f32 to vector<2x32xf32>
    %394 = arith.addf %393, %392 : vector<2x32xf32>
    %395 = arith.divf %393, %394 : vector<2x32xf32>
    %396 = arith.mulf %387, %318 : vector<2x32xf32>
    %397 = arith.mulf %381, %389 : vector<2x32xf32>
    %398 = arith.addf %396, %397 : vector<2x32xf32>
    %399 = math.tanh %398 : vector<2x32xf32>
    %400 = arith.mulf %395, %399 : vector<2x32xf32>
    %401 = arith.truncf %400 : vector<2x32xf32> to vector<2x32xbf16>
    %cst_78 = arith.constant dense<0.000000e+00> : vector<2x160xf32>
    %402 = tpu.matmul %401, %4, %cst_78 {dimension_numbers = #tpu.dot_dimension_numbers<[1], [0], [0], [1], [0, 0, 1, 1], [], []>} : vector<2x32xbf16>, vector<32x160xbf16>, vector<2x160xf32> -> vector<2x160xf32>
    %403 = vector.broadcast %7 : vector<1x160xf32> to vector<2x160xf32>
    %404 = arith.addf %402, %403 : vector<2x160xf32>
    %405 = vector.extract_strided_slice %404 {offsets = [0, 0], sizes = [2, 128], strides = [1, 1]} : vector<2x160xf32> to vector<2x128xf32>
    %406 = vector.extract_strided_slice %404 {offsets = [0, 128], sizes = [2, 32], strides = [1, 1]} : vector<2x160xf32> to vector<2x32xf32>
    %cst_79 = arith.constant dense<0xFF800000> : vector<2xf32>
    %407 = vector.multi_reduction <maximumf>, %405, %cst_79 [1] : vector<2x128xf32> to vector<2xf32>
    %408 = vector.shape_cast %407 : vector<2xf32> to vector<2x1xf32>
    %409 = vector.broadcast %408 : vector<2x1xf32> to vector<2x128xf32>
    %410 = arith.subf %405, %409 : vector<2x128xf32>
    %411 = math.exp %410 : vector<2x128xf32>
    %cst_80 = arith.constant dense<0.000000e+00> : vector<2xf32>
    %412 = vector.multi_reduction <add>, %411, %cst_80 [1] : vector<2x128xf32> to vector<2xf32>
    %413 = vector.shape_cast %412 : vector<2xf32> to vector<2x1xf32>
    %414 = math.log %413 : vector<2x1xf32>
    %415 = arith.addf %414, %408 : vector<2x1xf32>
    %416 = vector.broadcast %415 : vector<2x1xf32> to vector<2x128xf32>
    %417 = arith.subf %405, %416 : vector<2x128xf32>
    %418 = vector.broadcast %408 : vector<2x1xf32> to vector<2x128xf32>
    %419 = arith.cmpf oeq, %405, %418 : vector<2x128xf32>
    %c128_i32_81 = arith.constant 128 : i32
    %420 = vector.broadcast %c128_i32_81 : i32 to vector<2x128xi32>
    %421 = arith.select %419, %18, %420 : vector<2x128xi1>, vector<2x128xi32>
    %cst_82 = arith.constant dense<2147483647> : vector<2xi32>
    %422 = vector.multi_reduction <minsi>, %421, %cst_82 [1] : vector<2x128xi32> to vector<2xi32>
    %423 = vector.shape_cast %422 : vector<2xi32> to vector<2x1xi32>
    %424 = vector.broadcast %423 : vector<2x1xi32> to vector<2x128xi32>
    %425 = arith.cmpi eq, %18, %424 : vector<2x128xi32>
    %426 = arith.extui %425 : vector<2x128xi1> to vector<2x128xi32>
    %427 = arith.sitofp %426 : vector<2x128xi32> to vector<2x128xf32>
    %428 = vector.extract_strided_slice %417 {offsets = [0, 0], sizes = [2, 64], strides = [1, 1]} : vector<2x128xf32> to vector<2x64xf32>
    %429 = tpu.concatenate %428, %366, %22 in 1 : vector<2x64xf32>, vector<2x8xf32>, vector<2x56xf32> -> vector<2x128xf32>
    %430 = vector.shape_cast %429 : vector<2x128xf32> to vector<2x1x128xf32>
    %c0_83 = arith.constant 0 : index
    %c4 = arith.constant 4 : index
    %c0_84 = arith.constant 0 : index
    %431 = vector.load %arg4[%c0_83, %c4, %c0_84] : memref<2x8x128xf32, #tpu.memory_space<vmem>>, vector<2x1x128xf32>
    tpu.vector_store %arg4[%c0_83, %c4, %c0_84], %430 {strides = array<i32>} : memref<2x8x128xf32, #tpu.memory_space<vmem>>, vector<2x1x128xf32>,
    %432 = vector.shape_cast %406 : vector<2x32xf32> to vector<2x1x32xf32>
    %433 = vector.broadcast %432 : vector<2x1x32xf32> to vector<2x8x32xf32>
    %434 = arith.addf %433, %17 : vector<2x8x32xf32>
    %435 = math.tanh %434 : vector<2x8x32xf32>
    %436 = arith.mulf %435, %21 : vector<2x8x32xf32>
    %cst_85 = arith.constant dense<0.000000e+00> : vector<2x8xf32>
    %437 = vector.multi_reduction <add>, %436, %cst_85 [2] : vector<2x8x32xf32> to vector<2x8xf32>
    %cst_86 = arith.constant dense<0xFF800000> : vector<2xf32>
    %438 = vector.multi_reduction <maximumf>, %437, %cst_86 [1] : vector<2x8xf32> to vector<2xf32>
    %439 = vector.shape_cast %438 : vector<2xf32> to vector<2x1xf32>
    %440 = vector.broadcast %439 : vector<2x1xf32> to vector<2x8xf32>
    %441 = arith.subf %437, %440 : vector<2x8xf32>
    %442 = math.exp %441 : vector<2x8xf32>
    %cst_87 = arith.constant dense<0.000000e+00> : vector<2xf32>
    %443 = vector.multi_reduction <add>, %442, %cst_87 [1] : vector<2x8xf32> to vector<2xf32>
    %444 = vector.shape_cast %443 : vector<2xf32> to vector<2x1xf32>
    %445 = vector.broadcast %444 : vector<2x1xf32> to vector<2x8xf32>
    %446 = arith.divf %442, %445 : vector<2x8xf32>
    %447 = vector.shape_cast %446 : vector<2x8xf32> to vector<2x8x1xf32>
    %448 = vector.broadcast %447 : vector<2x8x1xf32> to vector<2x8x32xf32>
    %449 = arith.mulf %448, %0 : vector<2x8x32xf32>
    %cst_88 = arith.constant dense<0.000000e+00> : vector<2x32xf32>
    %450 = vector.multi_reduction <add>, %449, %cst_88 [1] : vector<2x8x32xf32> to vector<2x32xf32>
    %451 = tpu.concatenate %427, %450, %400 in 1 : vector<2x128xf32>, vector<2x32xf32>, vector<2x32xf32> -> vector<2x192xf32>
    %452 = arith.truncf %451 : vector<2x192xf32> to vector<2x192xbf16>
    %cst_89 = arith.constant dense<0.000000e+00> : vector<2x128xf32>
    %453 = tpu.matmul %452, %2, %cst_89 {dimension_numbers = #tpu.dot_dimension_numbers<[1], [0], [0], [1], [0, 0, 1, 1], [], []>} : vector<2x192xbf16>, vector<192x128xbf16>, vector<2x128xf32> -> vector<2x128xf32>
    %454 = vector.broadcast %6 : vector<1x128xf32> to vector<2x128xf32>
    %455 = arith.addf %453, %454 : vector<2x128xf32>
    %456 = vector.extract_strided_slice %455 {offsets = [0, 0], sizes = [2, 32], strides = [1, 1]} : vector<2x128xf32> to vector<2x32xf32>
    %457 = arith.negf %456 : vector<2x32xf32>
    %458 = math.exp %457 : vector<2x32xf32>
    %cst_90 = arith.constant 1.000000e+00 : f32
    %459 = vector.broadcast %cst_90 : f32 to vector<2x32xf32>
    %460 = arith.addf %459, %458 : vector<2x32xf32>
    %461 = arith.divf %459, %460 : vector<2x32xf32>
    %462 = vector.extract_strided_slice %455 {offsets = [0, 32], sizes = [2, 32], strides = [1, 1]} : vector<2x128xf32> to vector<2x32xf32>
    %463 = arith.negf %462 : vector<2x32xf32>
    %464 = math.exp %463 : vector<2x32xf32>
    %cst_91 = arith.constant 1.000000e+00 : f32
    %465 = vector.broadcast %cst_91 : f32 to vector<2x32xf32>
    %466 = arith.addf %465, %464 : vector<2x32xf32>
    %467 = arith.divf %465, %466 : vector<2x32xf32>
    %468 = vector.extract_strided_slice %455 {offsets = [0, 64], sizes = [2, 32], strides = [1, 1]} : vector<2x128xf32> to vector<2x32xf32>
    %469 = math.tanh %468 : vector<2x32xf32>
    %470 = vector.extract_strided_slice %455 {offsets = [0, 96], sizes = [2, 32], strides = [1, 1]} : vector<2x128xf32> to vector<2x32xf32>
    %471 = arith.negf %470 : vector<2x32xf32>
    %472 = math.exp %471 : vector<2x32xf32>
    %cst_92 = arith.constant 1.000000e+00 : f32
    %473 = vector.broadcast %cst_92 : f32 to vector<2x32xf32>
    %474 = arith.addf %473, %472 : vector<2x32xf32>
    %475 = arith.divf %473, %474 : vector<2x32xf32>
    %476 = arith.mulf %467, %398 : vector<2x32xf32>
    %477 = arith.mulf %461, %469 : vector<2x32xf32>
    %478 = arith.addf %476, %477 : vector<2x32xf32>
    %479 = math.tanh %478 : vector<2x32xf32>
    %480 = arith.mulf %475, %479 : vector<2x32xf32>
    %481 = arith.truncf %480 : vector<2x32xf32> to vector<2x32xbf16>
    %cst_93 = arith.constant dense<0.000000e+00> : vector<2x160xf32>
    %482 = tpu.matmul %481, %4, %cst_93 {dimension_numbers = #tpu.dot_dimension_numbers<[1], [0], [0], [1], [0, 0, 1, 1], [], []>} : vector<2x32xbf16>, vector<32x160xbf16>, vector<2x160xf32> -> vector<2x160xf32>
    %483 = vector.broadcast %7 : vector<1x160xf32> to vector<2x160xf32>
    %484 = arith.addf %482, %483 : vector<2x160xf32>
    %485 = vector.extract_strided_slice %484 {offsets = [0, 0], sizes = [2, 128], strides = [1, 1]} : vector<2x160xf32> to vector<2x128xf32>
    %486 = vector.extract_strided_slice %484 {offsets = [0, 128], sizes = [2, 32], strides = [1, 1]} : vector<2x160xf32> to vector<2x32xf32>
    %cst_94 = arith.constant dense<0xFF800000> : vector<2xf32>
    %487 = vector.multi_reduction <maximumf>, %485, %cst_94 [1] : vector<2x128xf32> to vector<2xf32>
    %488 = vector.shape_cast %487 : vector<2xf32> to vector<2x1xf32>
    %489 = vector.broadcast %488 : vector<2x1xf32> to vector<2x128xf32>
    %490 = arith.subf %485, %489 : vector<2x128xf32>
    %491 = math.exp %490 : vector<2x128xf32>
    %cst_95 = arith.constant dense<0.000000e+00> : vector<2xf32>
    %492 = vector.multi_reduction <add>, %491, %cst_95 [1] : vector<2x128xf32> to vector<2xf32>
    %493 = vector.shape_cast %492 : vector<2xf32> to vector<2x1xf32>
    %494 = math.log %493 : vector<2x1xf32>
    %495 = arith.addf %494, %488 : vector<2x1xf32>
    %496 = vector.broadcast %495 : vector<2x1xf32> to vector<2x128xf32>
    %497 = arith.subf %485, %496 : vector<2x128xf32>
    %498 = vector.broadcast %488 : vector<2x1xf32> to vector<2x128xf32>
    %499 = arith.cmpf oeq, %485, %498 : vector<2x128xf32>
    %c128_i32_96 = arith.constant 128 : i32
    %500 = vector.broadcast %c128_i32_96 : i32 to vector<2x128xi32>
    %501 = arith.select %499, %18, %500 : vector<2x128xi1>, vector<2x128xi32>
    %cst_97 = arith.constant dense<2147483647> : vector<2xi32>
    %502 = vector.multi_reduction <minsi>, %501, %cst_97 [1] : vector<2x128xi32> to vector<2xi32>
    %503 = vector.shape_cast %502 : vector<2xi32> to vector<2x1xi32>
    %504 = vector.broadcast %503 : vector<2x1xi32> to vector<2x128xi32>
    %505 = arith.cmpi eq, %18, %504 : vector<2x128xi32>
    %506 = arith.extui %505 : vector<2x128xi1> to vector<2x128xi32>
    %507 = arith.sitofp %506 : vector<2x128xi32> to vector<2x128xf32>
    %508 = vector.extract_strided_slice %497 {offsets = [0, 0], sizes = [2, 64], strides = [1, 1]} : vector<2x128xf32> to vector<2x64xf32>
    %509 = tpu.concatenate %508, %446, %22 in 1 : vector<2x64xf32>, vector<2x8xf32>, vector<2x56xf32> -> vector<2x128xf32>
    %510 = vector.shape_cast %509 : vector<2x128xf32> to vector<2x1x128xf32>
    %c0_98 = arith.constant 0 : index
    %c5 = arith.constant 5 : index
    %c0_99 = arith.constant 0 : index
    %511 = vector.load %arg4[%c0_98, %c5, %c0_99] : memref<2x8x128xf32, #tpu.memory_space<vmem>>, vector<2x1x128xf32>
    tpu.vector_store %arg4[%c0_98, %c5, %c0_99], %510 {strides = array<i32>} : memref<2x8x128xf32, #tpu.memory_space<vmem>>, vector<2x1x128xf32>,
    %512 = vector.shape_cast %486 : vector<2x32xf32> to vector<2x1x32xf32>
    %513 = vector.broadcast %512 : vector<2x1x32xf32> to vector<2x8x32xf32>
    %514 = arith.addf %513, %17 : vector<2x8x32xf32>
    %515 = math.tanh %514 : vector<2x8x32xf32>
    %516 = arith.mulf %515, %21 : vector<2x8x32xf32>
    %cst_100 = arith.constant dense<0.000000e+00> : vector<2x8xf32>
    %517 = vector.multi_reduction <add>, %516, %cst_100 [2] : vector<2x8x32xf32> to vector<2x8xf32>
    %cst_101 = arith.constant dense<0xFF800000> : vector<2xf32>
    %518 = vector.multi_reduction <maximumf>, %517, %cst_101 [1] : vector<2x8xf32> to vector<2xf32>
    %519 = vector.shape_cast %518 : vector<2xf32> to vector<2x1xf32>
    %520 = vector.broadcast %519 : vector<2x1xf32> to vector<2x8xf32>
    %521 = arith.subf %517, %520 : vector<2x8xf32>
    %522 = math.exp %521 : vector<2x8xf32>
    %cst_102 = arith.constant dense<0.000000e+00> : vector<2xf32>
    %523 = vector.multi_reduction <add>, %522, %cst_102 [1] : vector<2x8xf32> to vector<2xf32>
    %524 = vector.shape_cast %523 : vector<2xf32> to vector<2x1xf32>
    %525 = vector.broadcast %524 : vector<2x1xf32> to vector<2x8xf32>
    %526 = arith.divf %522, %525 : vector<2x8xf32>
    %527 = vector.shape_cast %526 : vector<2x8xf32> to vector<2x8x1xf32>
    %528 = vector.broadcast %527 : vector<2x8x1xf32> to vector<2x8x32xf32>
    %529 = arith.mulf %528, %0 : vector<2x8x32xf32>
    %cst_103 = arith.constant dense<0.000000e+00> : vector<2x32xf32>
    %530 = vector.multi_reduction <add>, %529, %cst_103 [1] : vector<2x8x32xf32> to vector<2x32xf32>
    %531 = tpu.concatenate %507, %530, %480 in 1 : vector<2x128xf32>, vector<2x32xf32>, vector<2x32xf32> -> vector<2x192xf32>
    %532 = arith.truncf %531 : vector<2x192xf32> to vector<2x192xbf16>
    %cst_104 = arith.constant dense<0.000000e+00> : vector<2x128xf32>
    %533 = tpu.matmul %532, %2, %cst_104 {dimension_numbers = #tpu.dot_dimension_numbers<[1], [0], [0], [1], [0, 0, 1, 1], [], []>} : vector<2x192xbf16>, vector<192x128xbf16>, vector<2x128xf32> -> vector<2x128xf32>
    %534 = vector.broadcast %6 : vector<1x128xf32> to vector<2x128xf32>
    %535 = arith.addf %533, %534 : vector<2x128xf32>
    %536 = vector.extract_strided_slice %535 {offsets = [0, 0], sizes = [2, 32], strides = [1, 1]} : vector<2x128xf32> to vector<2x32xf32>
    %537 = arith.negf %536 : vector<2x32xf32>
    %538 = math.exp %537 : vector<2x32xf32>
    %cst_105 = arith.constant 1.000000e+00 : f32
    %539 = vector.broadcast %cst_105 : f32 to vector<2x32xf32>
    %540 = arith.addf %539, %538 : vector<2x32xf32>
    %541 = arith.divf %539, %540 : vector<2x32xf32>
    %542 = vector.extract_strided_slice %535 {offsets = [0, 32], sizes = [2, 32], strides = [1, 1]} : vector<2x128xf32> to vector<2x32xf32>
    %543 = arith.negf %542 : vector<2x32xf32>
    %544 = math.exp %543 : vector<2x32xf32>
    %cst_106 = arith.constant 1.000000e+00 : f32
    %545 = vector.broadcast %cst_106 : f32 to vector<2x32xf32>
    %546 = arith.addf %545, %544 : vector<2x32xf32>
    %547 = arith.divf %545, %546 : vector<2x32xf32>
    %548 = vector.extract_strided_slice %535 {offsets = [0, 64], sizes = [2, 32], strides = [1, 1]} : vector<2x128xf32> to vector<2x32xf32>
    %549 = math.tanh %548 : vector<2x32xf32>
    %550 = vector.extract_strided_slice %535 {offsets = [0, 96], sizes = [2, 32], strides = [1, 1]} : vector<2x128xf32> to vector<2x32xf32>
    %551 = arith.negf %550 : vector<2x32xf32>
    %552 = math.exp %551 : vector<2x32xf32>
    %cst_107 = arith.constant 1.000000e+00 : f32
    %553 = vector.broadcast %cst_107 : f32 to vector<2x32xf32>
    %554 = arith.addf %553, %552 : vector<2x32xf32>
    %555 = arith.divf %553, %554 : vector<2x32xf32>
    %556 = arith.mulf %547, %478 : vector<2x32xf32>
    %557 = arith.mulf %541, %549 : vector<2x32xf32>
    %558 = arith.addf %556, %557 : vector<2x32xf32>
    %559 = math.tanh %558 : vector<2x32xf32>
    %560 = arith.mulf %555, %559 : vector<2x32xf32>
    %561 = arith.truncf %560 : vector<2x32xf32> to vector<2x32xbf16>
    %cst_108 = arith.constant dense<0.000000e+00> : vector<2x160xf32>
    %562 = tpu.matmul %561, %4, %cst_108 {dimension_numbers = #tpu.dot_dimension_numbers<[1], [0], [0], [1], [0, 0, 1, 1], [], []>} : vector<2x32xbf16>, vector<32x160xbf16>, vector<2x160xf32> -> vector<2x160xf32>
    %563 = vector.broadcast %7 : vector<1x160xf32> to vector<2x160xf32>
    %564 = arith.addf %562, %563 : vector<2x160xf32>
    %565 = vector.extract_strided_slice %564 {offsets = [0, 0], sizes = [2, 128], strides = [1, 1]} : vector<2x160xf32> to vector<2x128xf32>
    %566 = vector.extract_strided_slice %564 {offsets = [0, 128], sizes = [2, 32], strides = [1, 1]} : vector<2x160xf32> to vector<2x32xf32>
    %cst_109 = arith.constant dense<0xFF800000> : vector<2xf32>
    %567 = vector.multi_reduction <maximumf>, %565, %cst_109 [1] : vector<2x128xf32> to vector<2xf32>
    %568 = vector.shape_cast %567 : vector<2xf32> to vector<2x1xf32>
    %569 = vector.broadcast %568 : vector<2x1xf32> to vector<2x128xf32>
    %570 = arith.subf %565, %569 : vector<2x128xf32>
    %571 = math.exp %570 : vector<2x128xf32>
    %cst_110 = arith.constant dense<0.000000e+00> : vector<2xf32>
    %572 = vector.multi_reduction <add>, %571, %cst_110 [1] : vector<2x128xf32> to vector<2xf32>
    %573 = vector.shape_cast %572 : vector<2xf32> to vector<2x1xf32>
    %574 = math.log %573 : vector<2x1xf32>
    %575 = arith.addf %574, %568 : vector<2x1xf32>
    %576 = vector.broadcast %575 : vector<2x1xf32> to vector<2x128xf32>
    %577 = arith.subf %565, %576 : vector<2x128xf32>
    %578 = vector.broadcast %568 : vector<2x1xf32> to vector<2x128xf32>
    %579 = arith.cmpf oeq, %565, %578 : vector<2x128xf32>
    %c128_i32_111 = arith.constant 128 : i32
    %580 = vector.broadcast %c128_i32_111 : i32 to vector<2x128xi32>
    %581 = arith.select %579, %18, %580 : vector<2x128xi1>, vector<2x128xi32>
    %cst_112 = arith.constant dense<2147483647> : vector<2xi32>
    %582 = vector.multi_reduction <minsi>, %581, %cst_112 [1] : vector<2x128xi32> to vector<2xi32>
    %583 = vector.shape_cast %582 : vector<2xi32> to vector<2x1xi32>
    %584 = vector.broadcast %583 : vector<2x1xi32> to vector<2x128xi32>
    %585 = arith.cmpi eq, %18, %584 : vector<2x128xi32>
    %586 = arith.extui %585 : vector<2x128xi1> to vector<2x128xi32>
    %587 = arith.sitofp %586 : vector<2x128xi32> to vector<2x128xf32>
    %588 = vector.extract_strided_slice %577 {offsets = [0, 0], sizes = [2, 64], strides = [1, 1]} : vector<2x128xf32> to vector<2x64xf32>
    %589 = tpu.concatenate %588, %526, %22 in 1 : vector<2x64xf32>, vector<2x8xf32>, vector<2x56xf32> -> vector<2x128xf32>
    %590 = vector.shape_cast %589 : vector<2x128xf32> to vector<2x1x128xf32>
    %c0_113 = arith.constant 0 : index
    %c6 = arith.constant 6 : index
    %c0_114 = arith.constant 0 : index
    %591 = vector.load %arg4[%c0_113, %c6, %c0_114] : memref<2x8x128xf32, #tpu.memory_space<vmem>>, vector<2x1x128xf32>
    tpu.vector_store %arg4[%c0_113, %c6, %c0_114], %590 {strides = array<i32>} : memref<2x8x128xf32, #tpu.memory_space<vmem>>, vector<2x1x128xf32>,
    %592 = vector.shape_cast %566 : vector<2x32xf32> to vector<2x1x32xf32>
    %593 = vector.broadcast %592 : vector<2x1x32xf32> to vector<2x8x32xf32>
    %594 = arith.addf %593, %17 : vector<2x8x32xf32>
    %595 = math.tanh %594 : vector<2x8x32xf32>
    %596 = arith.mulf %595, %21 : vector<2x8x32xf32>
    %cst_115 = arith.constant dense<0.000000e+00> : vector<2x8xf32>
    %597 = vector.multi_reduction <add>, %596, %cst_115 [2] : vector<2x8x32xf32> to vector<2x8xf32>
    %cst_116 = arith.constant dense<0xFF800000> : vector<2xf32>
    %598 = vector.multi_reduction <maximumf>, %597, %cst_116 [1] : vector<2x8xf32> to vector<2xf32>
    %599 = vector.shape_cast %598 : vector<2xf32> to vector<2x1xf32>
    %600 = vector.broadcast %599 : vector<2x1xf32> to vector<2x8xf32>
    %601 = arith.subf %597, %600 : vector<2x8xf32>
    %602 = math.exp %601 : vector<2x8xf32>
    %cst_117 = arith.constant dense<0.000000e+00> : vector<2xf32>
    %603 = vector.multi_reduction <add>, %602, %cst_117 [1] : vector<2x8xf32> to vector<2xf32>
    %604 = vector.shape_cast %603 : vector<2xf32> to vector<2x1xf32>
    %605 = vector.broadcast %604 : vector<2x1xf32> to vector<2x8xf32>
    %606 = arith.divf %602, %605 : vector<2x8xf32>
    %607 = vector.shape_cast %606 : vector<2x8xf32> to vector<2x8x1xf32>
    %608 = vector.broadcast %607 : vector<2x8x1xf32> to vector<2x8x32xf32>
    %609 = arith.mulf %608, %0 : vector<2x8x32xf32>
    %cst_118 = arith.constant dense<0.000000e+00> : vector<2x32xf32>
    %610 = vector.multi_reduction <add>, %609, %cst_118 [1] : vector<2x8x32xf32> to vector<2x32xf32>
    %611 = tpu.concatenate %587, %610, %560 in 1 : vector<2x128xf32>, vector<2x32xf32>, vector<2x32xf32> -> vector<2x192xf32>
    %612 = arith.truncf %611 : vector<2x192xf32> to vector<2x192xbf16>
    %cst_119 = arith.constant dense<0.000000e+00> : vector<2x128xf32>
    %613 = tpu.matmul %612, %2, %cst_119 {dimension_numbers = #tpu.dot_dimension_numbers<[1], [0], [0], [1], [0, 0, 1, 1], [], []>} : vector<2x192xbf16>, vector<192x128xbf16>, vector<2x128xf32> -> vector<2x128xf32>
    %614 = vector.broadcast %6 : vector<1x128xf32> to vector<2x128xf32>
    %615 = arith.addf %613, %614 : vector<2x128xf32>
    %616 = vector.extract_strided_slice %615 {offsets = [0, 0], sizes = [2, 32], strides = [1, 1]} : vector<2x128xf32> to vector<2x32xf32>
    %617 = arith.negf %616 : vector<2x32xf32>
    %618 = math.exp %617 : vector<2x32xf32>
    %cst_120 = arith.constant 1.000000e+00 : f32
    %619 = vector.broadcast %cst_120 : f32 to vector<2x32xf32>
    %620 = arith.addf %619, %618 : vector<2x32xf32>
    %621 = arith.divf %619, %620 : vector<2x32xf32>
    %622 = vector.extract_strided_slice %615 {offsets = [0, 32], sizes = [2, 32], strides = [1, 1]} : vector<2x128xf32> to vector<2x32xf32>
    %623 = arith.negf %622 : vector<2x32xf32>
    %624 = math.exp %623 : vector<2x32xf32>
    %cst_121 = arith.constant 1.000000e+00 : f32
    %625 = vector.broadcast %cst_121 : f32 to vector<2x32xf32>
    %626 = arith.addf %625, %624 : vector<2x32xf32>
    %627 = arith.divf %625, %626 : vector<2x32xf32>
    %628 = vector.extract_strided_slice %615 {offsets = [0, 64], sizes = [2, 32], strides = [1, 1]} : vector<2x128xf32> to vector<2x32xf32>
    %629 = math.tanh %628 : vector<2x32xf32>
    %630 = vector.extract_strided_slice %615 {offsets = [0, 96], sizes = [2, 32], strides = [1, 1]} : vector<2x128xf32> to vector<2x32xf32>
    %631 = arith.negf %630 : vector<2x32xf32>
    %632 = math.exp %631 : vector<2x32xf32>
    %cst_122 = arith.constant 1.000000e+00 : f32
    %633 = vector.broadcast %cst_122 : f32 to vector<2x32xf32>
    %634 = arith.addf %633, %632 : vector<2x32xf32>
    %635 = arith.divf %633, %634 : vector<2x32xf32>
    %636 = arith.mulf %627, %558 : vector<2x32xf32>
    %637 = arith.mulf %621, %629 : vector<2x32xf32>
    %638 = arith.addf %636, %637 : vector<2x32xf32>
    %639 = math.tanh %638 : vector<2x32xf32>
    %640 = arith.mulf %635, %639 : vector<2x32xf32>
    %641 = arith.truncf %640 : vector<2x32xf32> to vector<2x32xbf16>
    %cst_123 = arith.constant dense<0.000000e+00> : vector<2x160xf32>
    %642 = tpu.matmul %641, %4, %cst_123 {dimension_numbers = #tpu.dot_dimension_numbers<[1], [0], [0], [1], [0, 0, 1, 1], [], []>} : vector<2x32xbf16>, vector<32x160xbf16>, vector<2x160xf32> -> vector<2x160xf32>
    %643 = vector.broadcast %7 : vector<1x160xf32> to vector<2x160xf32>
    %644 = arith.addf %642, %643 : vector<2x160xf32>
    %645 = vector.extract_strided_slice %644 {offsets = [0, 0], sizes = [2, 128], strides = [1, 1]} : vector<2x160xf32> to vector<2x128xf32>
    %cst_124 = arith.constant dense<0xFF800000> : vector<2xf32>
    %646 = vector.multi_reduction <maximumf>, %645, %cst_124 [1] : vector<2x128xf32> to vector<2xf32>
    %647 = vector.shape_cast %646 : vector<2xf32> to vector<2x1xf32>
    %648 = vector.broadcast %647 : vector<2x1xf32> to vector<2x128xf32>
    %649 = arith.subf %645, %648 : vector<2x128xf32>
    %650 = math.exp %649 : vector<2x128xf32>
    %cst_125 = arith.constant dense<0.000000e+00> : vector<2xf32>
    %651 = vector.multi_reduction <add>, %650, %cst_125 [1] : vector<2x128xf32> to vector<2xf32>
    %652 = vector.shape_cast %651 : vector<2xf32> to vector<2x1xf32>
    %653 = math.log %652 : vector<2x1xf32>
    %654 = arith.addf %653, %647 : vector<2x1xf32>
    %655 = vector.broadcast %654 : vector<2x1xf32> to vector<2x128xf32>
    %656 = arith.subf %645, %655 : vector<2x128xf32>
    %657 = vector.extract_strided_slice %656 {offsets = [0, 0], sizes = [2, 64], strides = [1, 1]} : vector<2x128xf32> to vector<2x64xf32>
    %658 = tpu.concatenate %657, %606, %22 in 1 : vector<2x64xf32>, vector<2x8xf32>, vector<2x56xf32> -> vector<2x128xf32>
    %659 = vector.shape_cast %658 : vector<2x128xf32> to vector<2x1x128xf32>
    %c0_126 = arith.constant 0 : index
    %c7 = arith.constant 7 : index
    %c0_127 = arith.constant 0 : index
    %660 = vector.load %arg4[%c0_126, %c7, %c0_127] : memref<2x8x128xf32, #tpu.memory_space<vmem>>, vector<2x1x128xf32>
    tpu.vector_store %arg4[%c0_126, %c7, %c0_127], %659 {strides = array<i32>} : memref<2x8x128xf32, #tpu.memory_space<vmem>>, vector<2x1x128xf32>,
    return
  }
}

</mosaic_0001>

<llo_original>
// kernel: attn_decoder_forward.1
$region0: #{attn_decoder_forward.1}
  #allocation0 [shape = 'u32[]', space=smem, size = 0x4, offset = 0x4, fixed_abs, tag = 'smem constant byte address 0x4 - core index']
  #allocation1 [shape = 'u32[144,128]{1,0:T(1,128)}', space=vmem, size = 0x12000, scoped, tag = 'internal scratch']
  %s0 = inlined_call_operand.vmem [shape: f32[2,8,32], index: 0, kind: input, shape index: {}]
  %s1 = inlined_call_operand.vmem [shape: bf16[224,128], index: 1, kind: input, shape index: {}]
  %s2 = inlined_call_operand.vmem [shape: bf16[32,160], index: 2, kind: input, shape index: {}]
  %s3 = inlined_call_operand.vmem [shape: f32[7,160], index: 3, kind: input, shape index: {}]
  %s4 = inlined_call_operand.vmem [shape: f32[2,8,128], index: 4, kind: output, shape index: {}]
  %s5 = sld [smem:[#allocation0]]
  $region26: #{attn_decoder_forward.1} parent=0
    _
  %s7 = ssub.s32 1, %s5
  %s8 = scalar_select 0, %s7, %s5
  // Predicated region
  $region2: #{attn_decoder_forward.1} parent=0 // pred_check
    _
  $region3: #{attn_decoder_forward.1} parent=0 // pred_check_branch
    %10 = sbr.rel (0) target = $region5
  $region4: #{attn_decoder_forward.1} parent=0 // pred_region
    _
  $region5: #{attn_decoder_forward.1} parent=0 // pred_fallthru
    _
  // Predicated region
  $region6: #{attn_decoder_forward.1} parent=0 // pred_check
    _
  $region7: #{attn_decoder_forward.1} parent=0 // pred_check_branch
    %12 = sbr.rel (0) target = $region9
  $region8: #{attn_decoder_forward.1} parent=0 // pred_region
    _
  $region9: #{attn_decoder_forward.1} parent=0 // pred_fallthru
    _
  // Predicated region
  $region10: #{attn_decoder_forward.1} parent=0 // pred_check
    _
  $region11: #{attn_decoder_forward.1} parent=0 // pred_check_branch
    %14 = sbr.rel (0) target = $region13
  $region12: #{attn_decoder_forward.1} parent=0 // pred_region
    _
  $region13: #{attn_decoder_forward.1} parent=0 // pred_fallthru
    _
  // Predicated region
  $region14: #{attn_decoder_forward.1} parent=0 // pred_check
    _
  $region15: #{attn_decoder_forward.1} parent=0 // pred_check_branch
    %16 = sbr.rel (0) target = $region17
  $region16: #{attn_decoder_forward.1} parent=0 // pred_region
    _
  $region17: #{attn_decoder_forward.1} parent=0 // pred_fallthru
    _
  %v18 = vld [vmem:[%s0] sm:$0xff]
  %v19 = vld [vmem:[%s0 + $0x8] sm:$0xff]
  %v20 = vld [vmem:[%s1] sm:$0xf]
  %v21 = vld [vmem:[%s1 + $0x4] sm:$0xf]
  %v22 = vld [vmem:[%s1 + $0x8] sm:$0xf]
  %v23 = vld [vmem:[%s1 + $0xc] sm:$0xf]
  %v24 = vld [vmem:[%s1 + $0x10] sm:$0xf]
  %v25 = vld [vmem:[%s1 + $0x14] sm:$0xf]
  %v26 = vld [vmem:[%s1 + $0x18] sm:$0xf]
  %v27 = vld [vmem:[%s1 + $0x1c] sm:$0xf]
  %v28 = vld [vmem:[%s1 + $0x20] sm:$0xf]
  %v29 = vld [vmem:[%s1 + $0x24] sm:$0xf]
  %v30 = vld [vmem:[%s1 + $0x28] sm:$0xf]
  %v31 = vld [vmem:[%s1 + $0x2c] sm:$0xf]
  %v32 = vld [vmem:[%s1 + $0x30] sm:$0xf]
  %v33 = vld [vmem:[%s1 + $0x34] sm:$0xf]
  %v34 = vld [vmem:[%s1 + $0x38] sm:$0xf]
  %v35 = vld [vmem:[%s1 + $0x3c] sm:$0xf]
  %v36 = vld [vmem:[%s1 + $0x40] sm:$0xf]
  %v37 = vld [vmem:[%s1 + $0x44] sm:$0xf]
  %v38 = vld [vmem:[%s1 + $0x48] sm:$0xf]
  %v39 = vld [vmem:[%s1 + $0x4c] sm:$0xf]
  %v40 = vld [vmem:[%s1 + $0x50] sm:$0xf]
  %v41 = vld [vmem:[%s1 + $0x54] sm:$0xf]
  %v42 = vld [vmem:[%s1 + $0x58] sm:$0xf]
  %v43 = vld [vmem:[%s1 + $0x5c] sm:$0xf]
  %v44 = vld [vmem:[%s1 + $0x60] sm:$0xf]
  %v45 = vld [vmem:[%s1 + $0x64] sm:$0xf]
  %v46 = vld [vmem:[%s1 + $0x68] sm:$0xf]
  %v47 = vld [vmem:[%s1 + $0x6c] sm:$0xf]
  %v48 = vld [vmem:[%s2] sm:$0xff]
  %v49 = vld [vmem:[%s2 + $0x8] sm:$0xff]
  %v50 = vld [vmem:[%s2 + $0x10] sm:$0xff]
  %v51 = vld [vmem:[%s2 + $0x18] sm:$0xff]
  %v52 = vld [vmem:[%s3] sm:$0x7f]
  %v53 = vld [vmem:[%s3 + $0x8] sm:$0x7f]
  %v54 = vpack.c.bf16 %v19, %v18
  %v55 = vlaneseq
  %v56 = vshrl.u32 %v55, 7
  %v57 = vsub.s32 2, %v56
  %v58 = vrot.slane %v52, %v57
  %v63 = vunpack.c.l.b16 %v44
  %v64 = vunpack.c.l.b16 %v45
  %v65 = vunpack.c.l.b16 %v46
  %v66 = vunpack.c.l.b16 %v47
  %v67 = vpack.c.b16 %v64, %v63
  %v68 = vpack.c.b16 %v66, %v65
  %vm71 = vcmask 261120
  %v73 = vsel %vm71, %v54, 0
  %75 = vmatprep.subr.bf16.mxu0 0
  %76 = vmatpush1.bf16.msra.mxu0 %v67
  %77 = vmatprep.subr.bf16.mxu0 0
  %78 = vmatpush1.bf16.msra.mxu0 %v68
  %79 = vmatprep.subr.bf16.mxu0 0
  %80 = vmatpush1.bf16.msra.mxu0 0
  %81 = vmatprep.subr.bf16.mxu0 0
  %82 = vmatpush1.bf16.msra.mxu0 0
  %83 = vmatprep.subr.bf16.mxu0 0
  %84 = vmatpush1.bf16.msra.mxu0 0
  %85 = vmatprep.subr.bf16.mxu0 0
  %86 = vmatpush1.bf16.msra.mxu0 0
  %87 = vmatprep.subr.bf16.mxu0 0
  %88 = vmatpush1.bf16.msra.mxu0 0
  %89 = vmatprep.subr.bf16.mxu0 0
  %90 = vmatpush1.bf16.msra.mxu0 0
  %91 = vmatprep.subr.bf16.mxu0 0
  %92 = vmatpush1.bf16.msra.mxu0 0
  %93 = vmatprep.subr.bf16.mxu0 0
  %94 = vmatpush1.bf16.msra.mxu0 0
  %95 = vmatprep.subr.bf16.mxu0 0
  %96 = vmatpush1.bf16.msra.mxu0 0
  %97 = vmatprep.subr.bf16.mxu0 0
  %98 = vmatpush1.bf16.msra.mxu0 0
  %99 = vmatprep.subr.bf16.mxu0 0
  %100 = vmatpush1.bf16.msra.mxu0 0
  %101 = vmatprep.subr.bf16.mxu0 0
  %102 = vmatpush1.bf16.msra.mxu0 0
  %103 = vmatprep.subr.bf16.mxu0 0
  %104 = vmatpush1.bf16.msra.mxu0 0
  %105 = vmatprep.subr.bf16.mxu0 0
  %106 = vmatpush1.bf16.msra.mxu0 0
  %107 = vmatprep.mubr.bf16.mxu0 0
  %108 = vmatmul.mubr.bf16.gmra.mrb[0].mxu0 %v73
  %v109 = vpop.f32.mrb[0].mxu0
  %v110 = vadd.f32 %v58, %v109
  %v111 = vpop.f32.mrb[0].mxu0
  %v112 = vpop.f32.mrb[0].mxu0
  %v113 = vadd.f32 %v58, %v112
  %v114 = vpop.f32.mrb[0].mxu0
  %115 = vdwg.mxu0
  %v116 = vlaneseq
  %v117 = vand.u32 %v116, 127
  %vm118 = vcmp.eq.s32.totalorder %v117, 1
  %v119 = vsel %vm118, 1, 0
  %v120 = vcvt.s32.f32 %v119
  %v121 = vpack.c.bf16 %v52, %v52
  %v122 = vlaneseq
  %v123 = vshrl.u32 %v122, 7
  %v124 = vsub.s32 1, %v123
  %v125 = vrot.slane %v52, %v124
  %v126 = vlaneseq
  %v127 = vshrl.u32 %v126, 7
  %v128 = vsub.s32 1, %v127
  %v129 = vrot.slane %v53, %v128
  %v131 = vshrl.u32 %v121, 16
  %v133 = vrot.slane %v131, 1
  %v134 = vshll.u32 %v121, 16
  %v136 = vrot.slane %v134, 2
  %v137 = vor.u32 %v133, %v136
  %v142 = vunpack.c.l.b16 %v48
  %v143 = vunpack.c.h.b16 %v48
  %v144 = vunpack.c.l.b16 %v49
  %v145 = vunpack.c.h.b16 %v49
  %v146 = vunpack.c.l.b16 %v50
  %v147 = vunpack.c.h.b16 %v50
  %v148 = vunpack.c.l.b16 %v51
  %v149 = vunpack.c.h.b16 %v51
  %v150 = vpack.c.b16 %v144, %v142
  %v151 = vpack.c.b16 %v145, %v143
  %v152 = vpack.c.b16 %v148, %v146
  %v153 = vpack.c.b16 %v149, %v147
  %v159 = vsel %vm71, %v137, 0
  %161 = vmatprep.subr.bf16.mxu0 %v151
  %162 = vmatpush1.bf16.msra.mxu0 %v150
  %163 = vmatprep.subr.bf16.mxu0 %v153
  %164 = vmatpush1.bf16.msra.mxu0 %v152
  %165 = vmatprep.subr.bf16.mxu0 0
  %166 = vmatpush1.bf16.msra.mxu0 0
  %167 = vmatprep.subr.bf16.mxu0 0
  %168 = vmatpush1.bf16.msra.mxu0 0
  %169 = vmatprep.subr.bf16.mxu0 0
  %170 = vmatpush1.bf16.msra.mxu0 0
  %171 = vmatprep.subr.bf16.mxu0 0
  %172 = vmatpush1.bf16.msra.mxu0 0
  %173 = vmatprep.subr.bf16.mxu0 0
  %174 = vmatpush1.bf16.msra.mxu0 0
  %175 = vmatprep.subr.bf16.mxu0 0
  %176 = vmatpush1.bf16.msra.mxu0 0
  %177 = vmatprep.subr.bf16.mxu0 0
  %178 = vmatpush1.bf16.msra.mxu0 0
  %179 = vmatprep.subr.bf16.mxu0 0
  %180 = vmatpush1.bf16.msra.mxu0 0
  %181 = vmatprep.subr.bf16.mxu0 0
  %182 = vmatpush1.bf16.msra.mxu0 0
  %183 = vmatprep.subr.bf16.mxu0 0
  %184 = vmatpush1.bf16.msra.mxu0 0
  %185 = vmatprep.subr.bf16.mxu0 0
  %186 = vmatpush1.bf16.msra.mxu0 0
  %187 = vmatprep.subr.bf16.mxu0 0
  %188 = vmatpush1.bf16.msra.mxu0 0
  %189 = vmatprep.subr.bf16.mxu0 0
  %190 = vmatpush1.bf16.msra.mxu0 0
  %191 = vmatprep.subr.bf16.mxu0 0
  %192 = vmatpush1.bf16.msra.mxu0 0
  %193 = vmatprep.mubr.bf16.mxu0 0
  %194 = vmatmul.mubr.bf16.gmra.mrb[0].mxu0 %v159
  %v195 = vpop.f32.mrb[0].mxu0
  %v196 = vpop.f32.mrb[0].mxu0
  %v197 = vadd.f32 %v129, %v196
  %v198 = vpop.f32.mrb[0].mxu0
  %v199 = vpop.f32.mrb[0].mxu0
  %200 = vdwg.mxu0
  %v203 = vunpack.c.l.s4 1966171168
  %v204 = vunpack.c.0.s8 %v203
  %v205 = vlaneseq
  %v206 = vshrl.u32 %v205, 7
  %v207 = vsub.s32 %v204, %v206
  %v208 = vrot.slane %v197, %v207
  %v209 = vcombine.high %v208, %v208
  %v211 = vunpack.c.l.s4 1966171168
  %v212 = vunpack.c.0.s8 %v211
  %v213 = vlaneseq
  %v214 = vshrl.u32 %v213, 7
  %v215 = vsub.s32 %v212, %v214
  %v216 = vrot.slane %v208, %v215
  %v218 = vunpack.c.l.s4 1966171168
  %v219 = vunpack.c.0.s8 %v218
  %v220 = vlaneseq
  %v221 = vshrl.u32 %v220, 7
  %v222 = vsub.s32 %v219, %v221
  %v223 = vrot.slane %v209, %v222
  %v224 = vlaneseq
  %v225 = vshrl.u32 %v224, 7
  %v226 = vsub.s32 0, %v225
  %v227 = vrot.slane %v216, %v226
  %v228 = vlaneseq
  %v229 = vshrl.u32 %v228, 7
  %v230 = vsub.s32 0, %v229
  %v231 = vrot.slane %v223, %v230
  %v234 = vadd.f32 %v227, %v110
  %v235 = vadd.f32 %v231, %v113
  %v236 = vtanh.pop %v234
  %v237 = vtanh.pop %v235
  %239 = vrot.lane.b32.xlu0 %v58, 96
  %v240 = vpop.permute.xlu0 %239
  %v242 = vmul.f32 %v236, %v240
  %v243 = vmul.f32 %v237, %v240
  %v244 = vsel %vm71, %v242, 0.0
  %245 = vadd.xlane.f32.xlu0 %v244
  %v246 = vpop.xlane.xlu0 %245
  %v247 = vsel %vm71, %v243, 0.0
  %248 = vadd.xlane.f32.xlu0 %v247
  %v249 = vpop.xlane.xlu0 %248
  %v252 = vlaneseq
  %v253 = vshrl.u32 %v252, 7
  %v254 = vsub.s32 %v117, %v253
  %v255 = vrot.slane %v246, %v254
  %v256 = vlaneseq
  %v257 = vshrl.u32 %v256, 7
  %v258 = vsub.s32 %v117, %v257
  %v259 = vrot.slane %v249, %v258
  %vm260 = vcmask 1041409
  %v261 = vsel %vm260, %v259, %v255
  %vm263 = vcmask 58368
  %v264 = vsel %vm263, %v261, -inf
  %265 = vmax.xlane.f32.xlu0 %v264
  %v266 = vpop.xlane.xlu0 %265
  %v268 = vlaneseq
  %v269 = vshrl.u32 %v268, 7
  %v270 = vsub.s32 0, %v269
  %v271 = vrot.slane %v266, %v270
  %v272 = vlaneseq
  %v273 = vshrl.u32 %v272, 7
  %v274 = vsub.s32 1, %v273
  %v275 = vrot.slane %v266, %v274
  %v278 = vsub.f32 %v246, %v271
  %v279 = vsub.f32 %v249, %v275
  %v280 = vmul.f32 %v278, 1.442695
  %v281 = vpow.pop %v280
  %v282 = vmul.f32 %v279, 1.442695
  %v283 = vpow.pop %v282
  %286 = vset.pattern.permute.xlu0 0
  %287 = vperm.xlu0 %286, %v281
  %v288 = vpop.permute.xlu0 %287
  %289 = vset.pattern.permute.xlu0 0
  %290 = vperm.xlu0 %289, %v283
  %v291 = vpop.permute.xlu0 %290
  %v292 = vlaneseq
  %v293 = vshrl.u32 %v292, 7
  %v294 = vsub.s32 %v117, %v293
  %v295 = vrot.slane %v288, %v294
  %v296 = vlaneseq
  %v297 = vshrl.u32 %v296, 7
  %v298 = vsub.s32 %v117, %v297
  %v299 = vrot.slane %v291, %v298
  %v300 = vsel %vm260, %v299, %v295
  %v302 = vsel %vm263, %v300, 0.0
  %303 = vadd.xlane.f32.xlu0 %v302
  %v304 = vpop.xlane.xlu0 %303
  %v306 = vlaneseq
  %v307 = vshrl.u32 %v306, 7
  %v308 = vsub.s32 0, %v307
  %v309 = vrot.slane %v304, %v308
  %v310 = vlaneseq
  %v311 = vshrl.u32 %v310, 7
  %v312 = vsub.s32 1, %v311
  %v313 = vrot.slane %v304, %v312
  %v316 = vrcp.pop %v309
  %v317 = vmul.f32 %v281, %v316
  %v318 = vrcp.pop %v313
  %v319 = vmul.f32 %v283, %v318
  %321 = vset.pattern.permute.xlu0 0
  %322 = vperm.xlu0 %321, %v317
  %v323 = vpop.permute.xlu0 %322
  %326 = vset.pattern.permute.xlu0 0
  %327 = vperm.xlu0 %326, %v319
  %v328 = vpop.permute.xlu0 %327
  %v330 = vmul.f32 %v323, %v18
  %v331 = vmul.f32 %v328, %v19
  %v332 = vsel %vm71, %v330, 0.0
  %v333 = vrot.slane %v332, 4
  %v334 = vadd.f32 %v332, %v333
  %v335 = vrot.slane %v334, 2
  %v336 = vadd.f32 %v334, %v335
  %v337 = vrot.slane %v336, 1
  %v338 = vadd.f32 %v336, %v337
  %v339 = vsel %vm71, %v331, 0.0
  %v340 = vrot.slane %v339, 4
  %v341 = vadd.f32 %v339, %v340
  %v342 = vrot.slane %v341, 2
  %v343 = vadd.f32 %v341, %v342
  %v344 = vrot.slane %v343, 1
  %v345 = vadd.f32 %v343, %v344
  %v348 = vsel %vm260, %v345, %v338
  %v351 = vrot.slane %v52, 3
  %352 = vrot.lane.b32.xlu0 %v351, 32
  %v353 = vpop.permute.xlu0 %352
  %v355 = vsel %vm71, %v348, %v353
  %v356 = vpack.c.bf16 %v120, %v120
  %v357 = vpack.c.bf16 %v355, %v355
  %v358 = vlaneseq
  %v359 = vshrl.u32 %v358, 7
  %v360 = vsub.s32 0, %v359
  %v361 = vrot.slane %v52, %v360
  %v386 = vunpack.c.l.b16 %v20
  %v387 = vunpack.c.l.b16 %v21
  %v388 = vunpack.c.l.b16 %v22
  %v389 = vunpack.c.l.b16 %v23
  %v390 = vunpack.c.l.b16 %v24
  %v391 = vunpack.c.l.b16 %v25
  %v392 = vunpack.c.l.b16 %v26
  %v393 = vunpack.c.l.b16 %v27
  %v394 = vunpack.c.l.b16 %v28
  %v395 = vunpack.c.l.b16 %v29
  %v396 = vunpack.c.l.b16 %v30
  %v397 = vunpack.c.l.b16 %v31
  %v398 = vunpack.c.l.b16 %v32
  %v399 = vunpack.c.l.b16 %v33
  %v400 = vunpack.c.l.b16 %v34
  %v401 = vunpack.c.l.b16 %v35
  %v402 = vunpack.c.l.b16 %v36
  %v403 = vunpack.c.l.b16 %v37
  %v404 = vunpack.c.l.b16 %v38
  %v405 = vunpack.c.l.b16 %v39
  %v406 = vunpack.c.l.b16 %v40
  %v407 = vunpack.c.l.b16 %v41
  %v408 = vunpack.c.l.b16 %v42
  %v409 = vunpack.c.l.b16 %v43
  %v410 = vpack.c.b16 %v387, %v386
  %v411 = vpack.c.b16 %v389, %v388
  %v412 = vpack.c.b16 %v391, %v390
  %v413 = vpack.c.b16 %v393, %v392
  %v414 = vpack.c.b16 %v395, %v394
  %v415 = vpack.c.b16 %v397, %v396
  %v416 = vpack.c.b16 %v399, %v398
  %v417 = vpack.c.b16 %v401, %v400
  %v418 = vpack.c.b16 %v403, %v402
  %v419 = vpack.c.b16 %v405, %v404
  %v420 = vpack.c.b16 %v407, %v406
  %v421 = vpack.c.b16 %v409, %v408
  %vm434 = vcmask 523264
  %v436 = vsel %vm434, %v357, 0
  %438 = vmatprep.subr.bf16.mxu0 0
  %439 = vmatpush1.bf16.msra.mxu0 %v410
  %440 = vmatprep.subr.bf16.mxu0 0
  %441 = vmatpush1.bf16.msra.mxu0 %v411
  %442 = vmatprep.subr.bf16.mxu0 0
  %443 = vmatpush1.bf16.msra.mxu0 %v412
  %444 = vmatprep.subr.bf16.mxu0 0
  %445 = vmatpush1.bf16.msra.mxu0 %v413
  %446 = vmatprep.subr.bf16.mxu0 0
  %447 = vmatpush1.bf16.msra.mxu0 %v414
  %448 = vmatprep.subr.bf16.mxu0 0
  %449 = vmatpush1.bf16.msra.mxu0 %v415
  %450 = vmatprep.subr.bf16.mxu0 0
  %451 = vmatpush1.bf16.msra.mxu0 %v416
  %452 = vmatprep.subr.bf16.mxu0 0
  %453 = vmatpush1.bf16.msra.mxu0 %v417
  %454 = vmatprep.subr.bf16.mxu0 0
  %455 = vmatpush1.bf16.msra.mxu0 %v418
  %456 = vmatprep.subr.bf16.mxu0 0
  %457 = vmatpush1.bf16.msra.mxu0 %v419
  %458 = vmatprep.subr.bf16.mxu0 0
  %459 = vmatpush1.bf16.msra.mxu0 %v420
  %460 = vmatprep.subr.bf16.mxu0 0
  %461 = vmatpush1.bf16.msra.mxu0 %v421
  %462 = vmatprep.subr.bf16.mxu0 0
  %463 = vmatpush1.bf16.msra.mxu0 0
  %464 = vmatprep.subr.bf16.mxu0 0
  %465 = vmatpush1.bf16.msra.mxu0 0
  %466 = vmatprep.subr.bf16.mxu0 0
  %467 = vmatpush1.bf16.msra.mxu0 0
  %468 = vmatprep.subr.bf16.mxu0 0
  %469 = vmatpush1.bf16.msra.mxu0 0
  %470 = vmatprep.mubr.bf16.mxu0 %v436
  %471 = vmatmul.mubr.bf16.gmra.mrb[0].mxu0 %v356
  %v472 = vpop.f32.mrb[0].mxu0
  %v473 = vadd.f32 %v361, %v472
  %v474 = vpop.f32.mrb[0].mxu0
  %v475 = vpop.f32.mrb[0].mxu0
  %v476 = vpop.f32.mrb[0].mxu0
  %477 = vdwg.mxu0
  %v478 = vxor.u32 %v473, 2147483648
  %v479 = vmul.f32 %v478, 1.442695
  %v480 = vpow.pop %v479
  %v481 = vadd.f32 %v480, 1.0
  %v482 = vrcp.pop %v481
  %v483 = vmul.f32 1.0, %v482
  %v484 = vtanh.pop %v473
  %v485 = vrot.slane %v52, 5
  %486 = vrot.lane.b32.xlu0 %v485, 32
  %v487 = vpop.permute.xlu0 %486
  %v489 = vmul.f32 %v483, %v487
  %491 = vrot.lane.b32.xlu0 %v484, 64
  %v492 = vpop.permute.xlu0 %491
  %v494 = vmul.f32 %v483, %v492
  %496 = vrot.lane.b32.xlu0 %v494, 32
  %v497 = vpop.permute.xlu0 %496
  %v499 = vadd.f32 %v489, %v497
  %v500 = vtanh.pop %v499
  %502 = vrot.lane.b32.xlu0 %v500, 64
  %v503 = vpop.permute.xlu0 %502
  %v505 = vmul.f32 %v483, %v503
  %v506 = vpack.c.bf16 %v505, %v505
  %508 = vrot.lane.b32.xlu0 %v506, 32
  %v509 = vpop.permute.xlu0 %508
  %v511 = vsel %vm71, %v509, 0
  %513 = vmatprep.subr.bf16.mxu0 %v151
  %514 = vmatpush1.bf16.msra.mxu0 %v150
  %515 = vmatprep.subr.bf16.mxu0 %v153
  %516 = vmatpush1.bf16.msra.mxu0 %v152
  %517 = vmatprep.subr.bf16.mxu0 0
  %518 = vmatpush1.bf16.msra.mxu0 0
  %519 = vmatprep.subr.bf16.mxu0 0
  %520 = vmatpush1.bf16.msra.mxu0 0
  %521 = vmatprep.subr.bf16.mxu0 0
  %522 = vmatpush1.bf16.msra.mxu0 0
  %523 = vmatprep.subr.bf16.mxu0 0
  %524 = vmatpush1.bf16.msra.mxu0 0
  %525 = vmatprep.subr.bf16.mxu0 0
  %526 = vmatpush1.bf16.msra.mxu0 0
  %527 = vmatprep.subr.bf16.mxu0 0
  %528 = vmatpush1.bf16.msra.mxu0 0
  %529 = vmatprep.subr.bf16.mxu0 0
  %530 = vmatpush1.bf16.msra.mxu0 0
  %531 = vmatprep.subr.bf16.mxu0 0
  %532 = vmatpush1.bf16.msra.mxu0 0
  %533 = vmatprep.subr.bf16.mxu0 0
  %534 = vmatpush1.bf16.msra.mxu0 0
  %535 = vmatprep.subr.bf16.mxu0 0
  %536 = vmatpush1.bf16.msra.mxu0 0
  %537 = vmatprep.subr.bf16.mxu0 0
  %538 = vmatpush1.bf16.msra.mxu0 0
  %539 = vmatprep.subr.bf16.mxu0 0
  %540 = vmatpush1.bf16.msra.mxu0 0
  %541 = vmatprep.subr.bf16.mxu0 0
  %542 = vmatpush1.bf16.msra.mxu0 0
  %543 = vmatprep.subr.bf16.mxu0 0
  %544 = vmatpush1.bf16.msra.mxu0 0
  %545 = vmatprep.mubr.bf16.mxu0 0
  %546 = vmatmul.mubr.bf16.gmra.mrb[0].mxu0 %v511
  %v547 = vpop.f32.mrb[0].mxu0
  %v548 = vadd.f32 %v125, %v547
  %v549 = vpop.f32.mrb[0].mxu0
  %v550 = vadd.f32 %v129, %v549
  %v551 = vpop.f32.mrb[0].mxu0
  %v552 = vpop.f32.mrb[0].mxu0
  %553 = vdwg.mxu0
  %vm554 = vcmask 1041408
  %v555 = vsel %vm554, %v548, -inf
  %556 = vmax.xlane.f32.xlu0 %v555
  %v557 = vpop.xlane.xlu0 %556
  %v558 = vsub.f32 %v548, %v557
  %v559 = vmul.f32 %v558, 1.442695
  %v560 = vpow.pop %v559
  %v561 = vsel %vm554, %v560, 0.0
  %562 = vadd.xlane.f32.xlu0 %v561
  %v563 = vpop.xlane.xlu0 %562
  %v564 = vlog2.pop %v563
  %v565 = vmul.f32 %v564, 0.6931472
  %v566 = vadd.f32 %v565, %v557
  %v567 = vsub.f32 %v548, %v566
  %vm568 = vcmp.eq.f32.partialorder %v548, %v557
  %v569 = vsel %vm568, %v117, 128
  %v570 = vsel %vm554, %v569, 2147483647
  %v571 = vand.u32 %v570, 65535
  %v572 = vshra.s32 %v570, 16
  %v573 = vcvt.s32.f32 %v571
  %v574 = vcvt.s32.f32 %v572
  %575 = vmin.xlane.f32.xlu0 %v574
  %v576 = vpop.xlane.xlu0 %575
  %vm577 = vcmp.eq.f32.partialorder %v574, %v576
  %v578 = vsel %vm577, %v573, inf
  %579 = vmin.xlane.f32.xlu0 %v578
  %v580 = vpop.xlane.xlu0 %579
  %v581 = vcvt.f32.s32 %v580
  %v582 = vcvt.f32.s32 %v576
  %v583 = vshll.u32 %v582, 16
  %v584 = vadd.s32 %v583, %v581
  %vm585 = vcmp.eq.s32.totalorder %v117, %v584
  %v586 = vsel %vm585, 1, 0
  %v587 = vcvt.s32.f32 %v586
  %v588 = vadd.s32 %v117, 4294967232
  %v589 = vlaneseq
  %v590 = vshrl.u32 %v589, 7
  %v591 = vsub.s32 %v588, %v590
  %v592 = vrot.slane %v323, %v591
  %v593 = vlaneseq
  %v594 = vshrl.u32 %v593, 7
  %v595 = vsub.s32 %v588, %v594
  %v596 = vrot.slane %v328, %v595
  %v597 = vsel %vm260, %v596, %v592
  %v599 = vsel %vm434, %v567, %v597
  %vm600 = vcmask 588800
  %v601 = vsel %vm600, %v599, 0.0
  %v604 = vunpack.c.l.s4 1966171168
  %v605 = vunpack.c.0.s8 %v604
  %v606 = vlaneseq
  %v607 = vshrl.u32 %v606, 7
  %v608 = vsub.s32 %v605, %v607
  %v609 = vrot.slane %v601, %v608
  %v610 = vcombine.high %v609, %v609
  %v612 = vunpack.c.l.s4 1966171168
  %v613 = vunpack.c.0.s8 %v612
  %v614 = vlaneseq
  %v615 = vshrl.u32 %v614, 7
  %v616 = vsub.s32 %v613, %v615
  %v617 = vrot.slane %v609, %v616
  %v619 = vunpack.c.l.s4 1966171168
  %v620 = vunpack.c.0.s8 %v619
  %v621 = vlaneseq
  %v622 = vshrl.u32 %v621, 7
  %v623 = vsub.s32 %v620, %v622
  %v624 = vrot.slane %v610, %v623
  %627 = vst [vmem:[%s4] sm:$0x1] %v617
  %628 = vst [vmem:[%s4 + $0x8] sm:$0x1] %v624
  %v631 = vunpack.c.l.s4 1966171168
  %v632 = vunpack.c.0.s8 %v631
  %v633 = vlaneseq
  %v634 = vshrl.u32 %v633, 7
  %v635 = vsub.s32 %v632, %v634
  %v636 = vrot.slane %v550, %v635
  %v637 = vcombine.high %v636, %v636
  %v639 = vunpack.c.l.s4 1966171168
  %v640 = vunpack.c.0.s8 %v639
  %v641 = vlaneseq
  %v642 = vshrl.u32 %v641, 7
  %v643 = vsub.s32 %v640, %v642
  %v644 = vrot.slane %v636, %v643
  %v646 = vunpack.c.l.s4 1966171168
  %v647 = vunpack.c.0.s8 %v646
  %v648 = vlaneseq
  %v649 = vshrl.u32 %v648, 7
  %v650 = vsub.s32 %v647, %v649
  %v651 = vrot.slane %v637, %v650
  %v652 = vlaneseq
  %v653 = vshrl.u32 %v652, 7
  %v654 = vsub.s32 0, %v653
  %v655 = vrot.slane %v644, %v654
  %v656 = vlaneseq
  %v657 = vshrl.u32 %v656, 7
  %v658 = vsub.s32 0, %v657
  %v659 = vrot.slane %v651, %v658
  %v662 = vadd.f32 %v655, %v110
  %v663 = vadd.f32 %v659, %v113
  %v664 = vtanh.pop %v662
  %v665 = vtanh.pop %v663
  %v666 = vmul.f32 %v664, %v240
  %v667 = vmul.f32 %v665, %v240
  %v668 = vsel %vm71, %v666, 0.0
  %669 = vadd.xlane.f32.xlu0 %v668
  %v670 = vpop.xlane.xlu0 %669
  %v671 = vsel %vm71, %v667, 0.0
  %672 = vadd.xlane.f32.xlu0 %v671
  %v673 = vpop.xlane.xlu0 %672
  %v676 = vlaneseq
  %v677 = vshrl.u32 %v676, 7
  %v678 = vsub.s32 %v117, %v677
  %v679 = vrot.slane %v670, %v678
  %v680 = vlaneseq
  %v681 = vshrl.u32 %v680, 7
  %v682 = vsub.s32 %v117, %v681
  %v683 = vrot.slane %v673, %v682
  %v684 = vsel %vm260, %v683, %v679
  %v686 = vsel %vm263, %v684, -inf
  %687 = vmax.xlane.f32.xlu0 %v686
  %v688 = vpop.xlane.xlu0 %687
  %v690 = vlaneseq
  %v691 = vshrl.u32 %v690, 7
  %v692 = vsub.s32 0, %v691
  %v693 = vrot.slane %v688, %v692
  %v694 = vlaneseq
  %v695 = vshrl.u32 %v694, 7
  %v696 = vsub.s32 1, %v695
  %v697 = vrot.slane %v688, %v696
  %v700 = vsub.f32 %v670, %v693
  %v701 = vsub.f32 %v673, %v697
  %v702 = vmul.f32 %v700, 1.442695
  %v703 = vpow.pop %v702
  %v704 = vmul.f32 %v701, 1.442695
  %v705 = vpow.pop %v704
  %708 = vset.pattern.permute.xlu0 0
  %709 = vperm.xlu0 %708, %v703
  %v710 = vpop.permute.xlu0 %709
  %711 = vset.pattern.permute.xlu0 0
  %712 = vperm.xlu0 %711, %v705
  %v713 = vpop.permute.xlu0 %712
  %v714 = vlaneseq
  %v715 = vshrl.u32 %v714, 7
  %v716 = vsub.s32 %v117, %v715
  %v717 = vrot.slane %v710, %v716
  %v718 = vlaneseq
  %v719 = vshrl.u32 %v718, 7
  %v720 = vsub.s32 %v117, %v719
  %v721 = vrot.slane %v713, %v720
  %v722 = vsel %vm260, %v721, %v717
  %v724 = vsel %vm263, %v722, 0.0
  %725 = vadd.xlane.f32.xlu0 %v724
  %v726 = vpop.xlane.xlu0 %725
  %v728 = vlaneseq
  %v729 = vshrl.u32 %v728, 7
  %v730 = vsub.s32 0, %v729
  %v731 = vrot.slane %v726, %v730
  %v732 = vlaneseq
  %v733 = vshrl.u32 %v732, 7
  %v734 = vsub.s32 1, %v733
  %v735 = vrot.slane %v726, %v734
  %v738 = vrcp.pop %v731
  %v739 = vmul.f32 %v703, %v738
  %v740 = vrcp.pop %v735
  %v741 = vmul.f32 %v705, %v740
  %743 = vset.pattern.permute.xlu0 0
  %744 = vperm.xlu0 %743, %v739
  %v745 = vpop.permute.xlu0 %744
  %748 = vset.pattern.permute.xlu0 0
  %749 = vperm.xlu0 %748, %v741
  %v750 = vpop.permute.xlu0 %749
  %v752 = vmul.f32 %v745, %v18
  %v753 = vmul.f32 %v750, %v19
  %v754 = vsel %vm71, %v752, 0.0
  %v755 = vrot.slane %v754, 4
  %v756 = vadd.f32 %v754, %v755
  %v757 = vrot.slane %v756, 2
  %v758 = vadd.f32 %v756, %v757
  %v759 = vrot.slane %v758, 1
  %v760 = vadd.f32 %v758, %v759
  %v761 = vsel %vm71, %v753, 0.0
  %v762 = vrot.slane %v761, 4
  %v763 = vadd.f32 %v761, %v762
  %v764 = vrot.slane %v763, 2
  %v765 = vadd.f32 %v763, %v764
  %v766 = vrot.slane %v765, 1
  %v767 = vadd.f32 %v765, %v766
  %v770 = vsel %vm260, %v767, %v760
  %773 = vrot.lane.b32.xlu0 %v505, 64
  %v774 = vpop.permute.xlu0 %773
  %v776 = vsel %vm71, %v770, %v774
  %v777 = vpack.c.bf16 %v587, %v587
  %v778 = vpack.c.bf16 %v776, %v776
  %v780 = vsel %vm434, %v778, 0
  %782 = vmatprep.subr.bf16.mxu0 0
  %783 = vmatpush1.bf16.msra.mxu0 %v410
  %784 = vmatprep.subr.bf16.mxu0 0
  %785 = vmatpush1.bf16.msra.mxu0 %v411
  %786 = vmatprep.subr.bf16.mxu0 0
  %787 = vmatpush1.bf16.msra.mxu0 %v412
  %788 = vmatprep.subr.bf16.mxu0 0
  %789 = vmatpush1.bf16.msra.mxu0 %v413
  %790 = vmatprep.subr.bf16.mxu0 0
  %791 = vmatpush1.bf16.msra.mxu0 %v414
  %792 = vmatprep.subr.bf16.mxu0 0
  %793 = vmatpush1.bf16.msra.mxu0 %v415
  %794 = vmatprep.subr.bf16.mxu0 0
  %795 = vmatpush1.bf16.msra.mxu0 %v416
  %796 = vmatprep.subr.bf16.mxu0 0
  %797 = vmatpush1.bf16.msra.mxu0 %v417
  %798 = vmatprep.subr.bf16.mxu0 0
  %799 = vmatpush1.bf16.msra.mxu0 %v418
  %800 = vmatprep.subr.bf16.mxu0 0
  %801 = vmatpush1.bf16.msra.mxu0 %v419
  %802 = vmatprep.subr.bf16.mxu0 0
  %803 = vmatpush1.bf16.msra.mxu0 %v420
  %804 = vmatprep.subr.bf16.mxu0 0
  %805 = vmatpush1.bf16.msra.mxu0 %v421
  %806 = vmatprep.subr.bf16.mxu0 0
  %807 = vmatpush1.bf16.msra.mxu0 0
  %808 = vmatprep.subr.bf16.mxu0 0
  %809 = vmatpush1.bf16.msra.mxu0 0
  %810 = vmatprep.subr.bf16.mxu0 0
  %811 = vmatpush1.bf16.msra.mxu0 0
  %812 = vmatprep.subr.bf16.mxu0 0
  %813 = vmatpush1.bf16.msra.mxu0 0
  %814 = vmatprep.mubr.bf16.mxu0 %v780
  %815 = vmatmul.mubr.bf16.gmra.mrb[0].mxu0 %v777
  %v816 = vpop.f32.mrb[0].mxu0
  %v817 = vadd.f32 %v361, %v816
  %v818 = vpop.f32.mrb[0].mxu0
  %v819 = vpop.f32.mrb[0].mxu0
  %v820 = vpop.f32.mrb[0].mxu0
  %821 = vdwg.mxu0
  %v822 = vxor.u32 %v817, 2147483648
  %v823 = vmul.f32 %v822, 1.442695
  %v824 = vpow.pop %v823
  %v825 = vadd.f32 %v824, 1.0
  %v826 = vrcp.pop %v825
  %v827 = vmul.f32 1.0, %v826
  %v828 = vtanh.pop %v817
  %v829 = vmul.f32 %v827, %v499
  %831 = vrot.lane.b32.xlu0 %v828, 64
  %v832 = vpop.permute.xlu0 %831
  %v834 = vmul.f32 %v827, %v832
  %836 = vrot.lane.b32.xlu0 %v834, 32
  %v837 = vpop.permute.xlu0 %836
  %v839 = vadd.f32 %v829, %v837
  %v840 = vtanh.pop %v839
  %842 = vrot.lane.b32.xlu0 %v840, 64
  %v843 = vpop.permute.xlu0 %842
  %v845 = vmul.f32 %v827, %v843
  %v846 = vpack.c.bf16 %v845, %v845
  %848 = vrot.lane.b32.xlu0 %v846, 32
  %v849 = vpop.permute.xlu0 %848
  %v851 = vsel %vm71, %v849, 0
  %853 = vmatprep.subr.bf16.mxu0 %v151
  %854 = vmatpush1.bf16.msra.mxu0 %v150
  %855 = vmatprep.subr.bf16.mxu0 %v153
  %856 = vmatpush1.bf16.msra.mxu0 %v152
  %857 = vmatprep.subr.bf16.mxu0 0
  %858 = vmatpush1.bf16.msra.mxu0 0
  %859 = vmatprep.subr.bf16.mxu0 0
  %860 = vmatpush1.bf16.msra.mxu0 0
  %861 = vmatprep.subr.bf16.mxu0 0
  %862 = vmatpush1.bf16.msra.mxu0 0
  %863 = vmatprep.subr.bf16.mxu0 0
  %864 = vmatpush1.bf16.msra.mxu0 0
  %865 = vmatprep.subr.bf16.mxu0 0
  %866 = vmatpush1.bf16.msra.mxu0 0
  %867 = vmatprep.subr.bf16.mxu0 0
  %868 = vmatpush1.bf16.msra.mxu0 0
  %869 = vmatprep.subr.bf16.mxu0 0
  %870 = vmatpush1.bf16.msra.mxu0 0
  %871 = vmatprep.subr.bf16.mxu0 0
  %872 = vmatpush1.bf16.msra.mxu0 0
  %873 = vmatprep.subr.bf16.mxu0 0
  %874 = vmatpush1.bf16.msra.mxu0 0
  %875 = vmatprep.subr.bf16.mxu0 0
  %876 = vmatpush1.bf16.msra.mxu0 0
  %877 = vmatprep.subr.bf16.mxu0 0
  %878 = vmatpush1.bf16.msra.mxu0 0
  %879 = vmatprep.subr.bf16.mxu0 0
  %880 = vmatpush1.bf16.msra.mxu0 0
  %881 = vmatprep.subr.bf16.mxu0 0
  %882 = vmatpush1.bf16.msra.mxu0 0
  %883 = vmatprep.subr.bf16.mxu0 0
  %884 = vmatpush1.bf16.msra.mxu0 0
  %885 = vmatprep.mubr.bf16.mxu0 0
  %886 = vmatmul.mubr.bf16.gmra.mrb[0].mxu0 %v851
  %v887 = vpop.f32.mrb[0].mxu0
  %v888 = vadd.f32 %v125, %v887
  %v889 = vpop.f32.mrb[0].mxu0
  %v890 = vadd.f32 %v129, %v889
  %v891 = vpop.f32.mrb[0].mxu0
  %v892 = vpop.f32.mrb[0].mxu0
  %893 = vdwg.mxu0
  %v894 = vsel %vm554, %v888, -inf
  %895 = vmax.xlane.f32.xlu0 %v894
  %v896 = vpop.xlane.xlu0 %895
  %v897 = vsub.f32 %v888, %v896
  %v898 = vmul.f32 %v897, 1.442695
  %v899 = vpow.pop %v898
  %v900 = vsel %vm554, %v899, 0.0
  %901 = vadd.xlane.f32.xlu0 %v900
  %v902 = vpop.xlane.xlu0 %901
  %v903 = vlog2.pop %v902
  %v904 = vmul.f32 %v903, 0.6931472
  %v905 = vadd.f32 %v904, %v896
  %v906 = vsub.f32 %v888, %v905
  %vm907 = vcmp.eq.f32.partialorder %v888, %v896
  %v908 = vsel %vm907, %v117, 128
  %v909 = vsel %vm554, %v908, 2147483647
  %v910 = vand.u32 %v909, 65535
  %v911 = vshra.s32 %v909, 16
  %v912 = vcvt.s32.f32 %v910
  %v913 = vcvt.s32.f32 %v911
  %914 = vmin.xlane.f32.xlu0 %v913
  %v915 = vpop.xlane.xlu0 %914
  %vm916 = vcmp.eq.f32.partialorder %v913, %v915
  %v917 = vsel %vm916, %v912, inf
  %918 = vmin.xlane.f32.xlu0 %v917
  %v919 = vpop.xlane.xlu0 %918
  %v920 = vcvt.f32.s32 %v919
  %v921 = vcvt.f32.s32 %v915
  %v922 = vshll.u32 %v921, 16
  %v923 = vadd.s32 %v922, %v920
  %vm924 = vcmp.eq.s32.totalorder %v117, %v923
  %v925 = vsel %vm924, 1, 0
  %v926 = vcvt.s32.f32 %v925
  %v927 = vlaneseq
  %v928 = vshrl.u32 %v927, 7
  %v929 = vsub.s32 %v588, %v928
  %v930 = vrot.slane %v745, %v929
  %v931 = vlaneseq
  %v932 = vshrl.u32 %v931, 7
  %v933 = vsub.s32 %v588, %v932
  %v934 = vrot.slane %v750, %v933
  %v935 = vsel %vm260, %v934, %v930
  %v937 = vsel %vm434, %v906, %v935
  %v938 = vsel %vm600, %v937, 0.0
  %v941 = vunpack.c.l.s4 1966171168
  %v942 = vunpack.c.0.s8 %v941
  %v943 = vlaneseq
  %v944 = vshrl.u32 %v943, 7
  %v945 = vsub.s32 %v942, %v944
  %v946 = vrot.slane %v938, %v945
  %v947 = vcombine.high %v946, %v946
  %v949 = vunpack.c.l.s4 1966171168
  %v950 = vunpack.c.0.s8 %v949
  %v951 = vlaneseq
  %v952 = vshrl.u32 %v951, 7
  %v953 = vsub.s32 %v950, %v952
  %v954 = vrot.slane %v946, %v953
  %v956 = vunpack.c.l.s4 1966171168
  %v957 = vunpack.c.0.s8 %v956
  %v958 = vlaneseq
  %v959 = vshrl.u32 %v958, 7
  %v960 = vsub.s32 %v957, %v959
  %v961 = vrot.slane %v947, %v960
  %964 = vst [vmem:[%s4 + $0x1] sm:$0x1] %v954
  %965 = vst [vmem:[%s4 + $0x9] sm:$0x1] %v961
  %v968 = vunpack.c.l.s4 1966171168
  %v969 = vunpack.c.0.s8 %v968
  %v970 = vlaneseq
  %v971 = vshrl.u32 %v970, 7
  %v972 = vsub.s32 %v969, %v971
  %v973 = vrot.slane %v890, %v972
  %v974 = vcombine.high %v973, %v973
  %v976 = vunpack.c.l.s4 1966171168
  %v977 = vunpack.c.0.s8 %v976
  %v978 = vlaneseq
  %v979 = vshrl.u32 %v978, 7
  %v980 = vsub.s32 %v977, %v979
  %v981 = vrot.slane %v973, %v980
  %v983 = vunpack.c.l.s4 1966171168
  %v984 = vunpack.c.0.s8 %v983
  %v985 = vlaneseq
  %v986 = vshrl.u32 %v985, 7
  %v987 = vsub.s32 %v984, %v986
  %v988 = vrot.slane %v974, %v987
  %v989 = vlaneseq
  %v990 = vshrl.u32 %v989, 7
  %v991 = vsub.s32 0, %v990
  %v992 = vrot.slane %v981, %v991
  %v993 = vlaneseq
  %v994 = vshrl.u32 %v993, 7
  %v995 = vsub.s32 0, %v994
  %v996 = vrot.slane %v988, %v995
  %v999 = vadd.f32 %v992, %v110
  %v1000 = vadd.f32 %v996, %v113
  %v1001 = vtanh.pop %v999
  %v1002 = vtanh.pop %v1000
  %v1003 = vmul.f32 %v1001, %v240
  %v1004 = vmul.f32 %v1002, %v240
  %v1005 = vsel %vm71, %v1003, 0.0
  %1006 = vadd.xlane.f32.xlu0 %v1005
  %v1007 = vpop.xlane.xlu0 %1006
  %v1008 = vsel %vm71, %v1004, 0.0
  %1009 = vadd.xlane.f32.xlu0 %v1008
  %v1010 = vpop.xlane.xlu0 %1009
  %v1013 = vlaneseq
  %v1014 = vshrl.u32 %v1013, 7
  %v1015 = vsub.s32 %v117, %v1014
  %v1016 = vrot.slane %v1007, %v1015
  %v1017 = vlaneseq
  %v1018 = vshrl.u32 %v1017, 7
  %v1019 = vsub.s32 %v117, %v1018
  %v1020 = vrot.slane %v1010, %v1019
  %v1021 = vsel %vm260, %v1020, %v1016
  %v1023 = vsel %vm263, %v1021, -inf
  %1024 = vmax.xlane.f32.xlu0 %v1023
  %v1025 = vpop.xlane.xlu0 %1024
  %v1027 = vlaneseq
  %v1028 = vshrl.u32 %v1027, 7
  %v1029 = vsub.s32 0, %v1028
  %v1030 = vrot.slane %v1025, %v1029
  %v1031 = vlaneseq
  %v1032 = vshrl.u32 %v1031, 7
  %v1033 = vsub.s32 1, %v1032
  %v1034 = vrot.slane %v1025, %v1033
  %v1037 = vsub.f32 %v1007, %v1030
  %v1038 = vsub.f32 %v1010, %v1034
  %v1039 = vmul.f32 %v1037, 1.442695
  %v1040 = vpow.pop %v1039
  %v1041 = vmul.f32 %v1038, 1.442695
  %v1042 = vpow.pop %v1041
  %1045 = vset.pattern.permute.xlu0 0
  %1046 = vperm.xlu0 %1045, %v1040
  %v1047 = vpop.permute.xlu0 %1046
  %1048 = vset.pattern.permute.xlu0 0
  %1049 = vperm.xlu0 %1048, %v1042
  %v1050 = vpop.permute.xlu0 %1049
  %v1051 = vlaneseq
  %v1052 = vshrl.u32 %v1051, 7
  %v1053 = vsub.s32 %v117, %v1052
  %v1054 = vrot.slane %v1047, %v1053
  %v1055 = vlaneseq
  %v1056 = vshrl.u32 %v1055, 7
  %v1057 = vsub.s32 %v117, %v1056
  %v1058 = vrot.slane %v1050, %v1057
  %v1059 = vsel %vm260, %v1058, %v1054
  %v1061 = vsel %vm263, %v1059, 0.0
  %1062 = vadd.xlane.f32.xlu0 %v1061
  %v1063 = vpop.xlane.xlu0 %1062
  %v1065 = vlaneseq
  %v1066 = vshrl.u32 %v1065, 7
  %v1067 = vsub.s32 0, %v1066
  %v1068 = vrot.slane %v1063, %v1067
  %v1069 = vlaneseq
  %v1070 = vshrl.u32 %v1069, 7
  %v1071 = vsub.s32 1, %v1070
  %v1072 = vrot.slane %v1063, %v1071
  %v1075 = vrcp.pop %v1068
  %v1076 = vmul.f32 %v1040, %v1075
  %v1077 = vrcp.pop %v1072
  %v1078 = vmul.f32 %v1042, %v1077
  %1080 = vset.pattern.permute.xlu0 0
  %1081 = vperm.xlu0 %1080, %v1076
  %v1082 = vpop.permute.xlu0 %1081
  %1085 = vset.pattern.permute.xlu0 0
  %1086 = vperm.xlu0 %1085, %v1078
  %v1087 = vpop.permute.xlu0 %1086
  %v1089 = vmul.f32 %v1082, %v18
  %v1090 = vmul.f32 %v1087, %v19
  %v1091 = vsel %vm71, %v1089, 0.0
  %v1092 = vrot.slane %v1091, 4
  %v1093 = vadd.f32 %v1091, %v1092
  %v1094 = vrot.slane %v1093, 2
  %v1095 = vadd.f32 %v1093, %v1094
  %v1096 = vrot.slane %v1095, 1
  %v1097 = vadd.f32 %v1095, %v1096
  %v1098 = vsel %vm71, %v1090, 0.0
  %v1099 = vrot.slane %v1098, 4
  %v1100 = vadd.f32 %v1098, %v1099
  %v1101 = vrot.slane %v1100, 2
  %v1102 = vadd.f32 %v1100, %v1101
  %v1103 = vrot.slane %v1102, 1
  %v1104 = vadd.f32 %v1102, %v1103
  %v1107 = vsel %vm260, %v1104, %v1097
  %1110 = vrot.lane.b32.xlu0 %v845, 64
  %v1111 = vpop.permute.xlu0 %1110
  %v1113 = vsel %vm71, %v1107, %v1111
  %v1114 = vpack.c.bf16 %v926, %v926
  %v1115 = vpack.c.bf16 %v1113, %v1113
  %v1117 = vsel %vm434, %v1115, 0
  %1119 = vmatprep.subr.bf16.mxu0 0
  %1120 = vmatpush1.bf16.msra.mxu0 %v410
  %1121 = vmatprep.subr.bf16.mxu0 0
  %1122 = vmatpush1.bf16.msra.mxu0 %v411
  %1123 = vmatprep.subr.bf16.mxu0 0
  %1124 = vmatpush1.bf16.msra.mxu0 %v412
  %1125 = vmatprep.subr.bf16.mxu0 0
  %1126 = vmatpush1.bf16.msra.mxu0 %v413
  %1127 = vmatprep.subr.bf16.mxu0 0
  %1128 = vmatpush1.bf16.msra.mxu0 %v414
  %1129 = vmatprep.subr.bf16.mxu0 0
  %1130 = vmatpush1.bf16.msra.mxu0 %v415
  %1131 = vmatprep.subr.bf16.mxu0 0
  %1132 = vmatpush1.bf16.msra.mxu0 %v416
  %1133 = vmatprep.subr.bf16.mxu0 0
  %1134 = vmatpush1.bf16.msra.mxu0 %v417
  %1135 = vmatprep.subr.bf16.mxu0 0
  %1136 = vmatpush1.bf16.msra.mxu0 %v418
  %1137 = vmatprep.subr.bf16.mxu0 0
  %1138 = vmatpush1.bf16.msra.mxu0 %v419
  %1139 = vmatprep.subr.bf16.mxu0 0
  %1140 = vmatpush1.bf16.msra.mxu0 %v420
  %1141 = vmatprep.subr.bf16.mxu0 0
  %1142 = vmatpush1.bf16.msra.mxu0 %v421
  %1143 = vmatprep.subr.bf16.mxu0 0
  %1144 = vmatpush1.bf16.msra.mxu0 0
  %1145 = vmatprep.subr.bf16.mxu0 0
  %1146 = vmatpush1.bf16.msra.mxu0 0
  %1147 = vmatprep.subr.bf16.mxu0 0
  %1148 = vmatpush1.bf16.msra.mxu0 0
  %1149 = vmatprep.subr.bf16.mxu0 0
  %1150 = vmatpush1.bf16.msra.mxu0 0
  %1151 = vmatprep.mubr.bf16.mxu0 %v1117
  %1152 = vmatmul.mubr.bf16.gmra.mrb[0].mxu0 %v1114
  %v1153 = vpop.f32.mrb[0].mxu0
  %v1154 = vadd.f32 %v361, %v1153
  %v1155 = vpop.f32.mrb[0].mxu0
  %v1156 = vpop.f32.mrb[0].mxu0
  %v1157 = vpop.f32.mrb[0].mxu0
  %1158 = vdwg.mxu0
  %v1159 = vxor.u32 %v1154, 2147483648
  %v1160 = vmul.f32 %v1159, 1.442695
  %v1161 = vpow.pop %v1160
  %v1162 = vadd.f32 %v1161, 1.0
  %v1163 = vrcp.pop %v1162
  %v1164 = vmul.f32 1.0, %v1163
  %v1165 = vtanh.pop %v1154
  %v1166 = vmul.f32 %v1164, %v839
  %1168 = vrot.lane.b32.xlu0 %v1165, 64
  %v1169 = vpop.permute.xlu0 %1168
  %v1171 = vmul.f32 %v1164, %v1169
  %1173 = vrot.lane.b32.xlu0 %v1171, 32
  %v1174 = vpop.permute.xlu0 %1173
  %v1176 = vadd.f32 %v1166, %v1174
  %v1177 = vtanh.pop %v1176
  %1179 = vrot.lane.b32.xlu0 %v1177, 64
  %v1180 = vpop.permute.xlu0 %1179
  %v1182 = vmul.f32 %v1164, %v1180
  %v1183 = vpack.c.bf16 %v1182, %v1182
  %1185 = vrot.lane.b32.xlu0 %v1183, 32
  %v1186 = vpop.permute.xlu0 %1185
  %v1188 = vsel %vm71, %v1186, 0
  %1190 = vmatprep.subr.bf16.mxu0 %v151
  %1191 = vmatpush1.bf16.msra.mxu0 %v150
  %1192 = vmatprep.subr.bf16.mxu0 %v153
  %1193 = vmatpush1.bf16.msra.mxu0 %v152
  %1194 = vmatprep.subr.bf16.mxu0 0
  %1195 = vmatpush1.bf16.msra.mxu0 0
  %1196 = vmatprep.subr.bf16.mxu0 0
  %1197 = vmatpush1.bf16.msra.mxu0 0
  %1198 = vmatprep.subr.bf16.mxu0 0
  %1199 = vmatpush1.bf16.msra.mxu0 0
  %1200 = vmatprep.subr.bf16.mxu0 0
  %1201 = vmatpush1.bf16.msra.mxu0 0
  %1202 = vmatprep.subr.bf16.mxu0 0
  %1203 = vmatpush1.bf16.msra.mxu0 0
  %1204 = vmatprep.subr.bf16.mxu0 0
  %1205 = vmatpush1.bf16.msra.mxu0 0
  %1206 = vmatprep.subr.bf16.mxu0 0
  %1207 = vmatpush1.bf16.msra.mxu0 0
  %1208 = vmatprep.subr.bf16.mxu0 0
  %1209 = vmatpush1.bf16.msra.mxu0 0
  %1210 = vmatprep.subr.bf16.mxu0 0
  %1211 = vmatpush1.bf16.msra.mxu0 0
  %1212 = vmatprep.subr.bf16.mxu0 0
  %1213 = vmatpush1.bf16.msra.mxu0 0
  %1214 = vmatprep.subr.bf16.mxu0 0
  %1215 = vmatpush1.bf16.msra.mxu0 0
  %1216 = vmatprep.subr.bf16.mxu0 0
  %1217 = vmatpush1.bf16.msra.mxu0 0
  %1218 = vmatprep.subr.bf16.mxu0 0
  %1219 = vmatpush1.bf16.msra.mxu0 0
  %1220 = vmatprep.subr.bf16.mxu0 0
  %1221 = vmatpush1.bf16.msra.mxu0 0
  %1222 = vmatprep.mubr.bf16.mxu0 0
  %1223 = vmatmul.mubr.bf16.gmra.mrb[0].mxu0 %v1188
  %v1224 = vpop.f32.mrb[0].mxu0
  %v1225 = vadd.f32 %v125, %v1224
  %v1226 = vpop.f32.mrb[0].mxu0
  %v1227 = vadd.f32 %v129, %v1226
  %v1228 = vpop.f32.mrb[0].mxu0
  %v1229 = vpop.f32.mrb[0].mxu0
  %1230 = vdwg.mxu0
  %v1231 = vsel %vm554, %v1225, -inf
  %1232 = vmax.xlane.f32.xlu0 %v1231
  %v1233 = vpop.xlane.xlu0 %1232
  %v1234 = vsub.f32 %v1225, %v1233
  %v1235 = vmul.f32 %v1234, 1.442695
  %v1236 = vpow.pop %v1235
  %v1237 = vsel %vm554, %v1236, 0.0
  %1238 = vadd.xlane.f32.xlu0 %v1237
  %v1239 = vpop.xlane.xlu0 %1238
  %v1240 = vlog2.pop %v1239
  %v1241 = vmul.f32 %v1240, 0.6931472
  %v1242 = vadd.f32 %v1241, %v1233
  %v1243 = vsub.f32 %v1225, %v1242
  %vm1244 = vcmp.eq.f32.partialorder %v1225, %v1233
  %v1245 = vsel %vm1244, %v117, 128
  %v1246 = vsel %vm554, %v1245, 2147483647
  %v1247 = vand.u32 %v1246, 65535
  %v1248 = vshra.s32 %v1246, 16
  %v1249 = vcvt.s32.f32 %v1247
  %v1250 = vcvt.s32.f32 %v1248
  %1251 = vmin.xlane.f32.xlu0 %v1250
  %v1252 = vpop.xlane.xlu0 %1251
  %vm1253 = vcmp.eq.f32.partialorder %v1250, %v1252
  %v1254 = vsel %vm1253, %v1249, inf
  %1255 = vmin.xlane.f32.xlu0 %v1254
  %v1256 = vpop.xlane.xlu0 %1255
  %v1257 = vcvt.f32.s32 %v1256
  %v1258 = vcvt.f32.s32 %v1252
  %v1259 = vshll.u32 %v1258, 16
  %v1260 = vadd.s32 %v1259, %v1257
  %vm1261 = vcmp.eq.s32.totalorder %v117, %v1260
  %v1262 = vsel %vm1261, 1, 0
  %v1263 = vcvt.s32.f32 %v1262
  %v1264 = vlaneseq
  %v1265 = vshrl.u32 %v1264, 7
  %v1266 = vsub.s32 %v588, %v1265
  %v1267 = vrot.slane %v1082, %v1266
  %v1268 = vlaneseq
  %v1269 = vshrl.u32 %v1268, 7
  %v1270 = vsub.s32 %v588, %v1269
  %v1271 = vrot.slane %v1087, %v1270
  %v1272 = vsel %vm260, %v1271, %v1267
  %v1274 = vsel %vm434, %v1243, %v1272
  %v1275 = vsel %vm600, %v1274, 0.0
  %v1278 = vunpack.c.l.s4 1966171168
  %v1279 = vunpack.c.0.s8 %v1278
  %v1280 = vlaneseq
  %v1281 = vshrl.u32 %v1280, 7
  %v1282 = vsub.s32 %v1279, %v1281
  %v1283 = vrot.slane %v1275, %v1282
  %v1284 = vcombine.high %v1283, %v1283
  %v1286 = vunpack.c.l.s4 1966171168
  %v1287 = vunpack.c.0.s8 %v1286
  %v1288 = vlaneseq
  %v1289 = vshrl.u32 %v1288, 7
  %v1290 = vsub.s32 %v1287, %v1289
  %v1291 = vrot.slane %v1283, %v1290
  %v1293 = vunpack.c.l.s4 1966171168
  %v1294 = vunpack.c.0.s8 %v1293
  %v1295 = vlaneseq
  %v1296 = vshrl.u32 %v1295, 7
  %v1297 = vsub.s32 %v1294, %v1296
  %v1298 = vrot.slane %v1284, %v1297
  %1301 = vst [vmem:[%s4 + $0x2] sm:$0x1] %v1291
  %1302 = vst [vmem:[%s4 + $0xa] sm:$0x1] %v1298
  %v1305 = vunpack.c.l.s4 1966171168
  %v1306 = vunpack.c.0.s8 %v1305
  %v1307 = vlaneseq
  %v1308 = vshrl.u32 %v1307, 7
  %v1309 = vsub.s32 %v1306, %v1308
  %v1310 = vrot.slane %v1227, %v1309
  %v1311 = vcombine.high %v1310, %v1310
  %v1313 = vunpack.c.l.s4 1966171168
  %v1314 = vunpack.c.0.s8 %v1313
  %v1315 = vlaneseq
  %v1316 = vshrl.u32 %v1315, 7
  %v1317 = vsub.s32 %v1314, %v1316
  %v1318 = vrot.slane %v1310, %v1317
  %v1320 = vunpack.c.l.s4 1966171168
  %v1321 = vunpack.c.0.s8 %v1320
  %v1322 = vlaneseq
  %v1323 = vshrl.u32 %v1322, 7
  %v1324 = vsub.s32 %v1321, %v1323
  %v1325 = vrot.slane %v1311, %v1324
  %v1326 = vlaneseq
  %v1327 = vshrl.u32 %v1326, 7
  %v1328 = vsub.s32 0, %v1327
  %v1329 = vrot.slane %v1318, %v1328
  %v1330 = vlaneseq
  %v1331 = vshrl.u32 %v1330, 7
  %v1332 = vsub.s32 0, %v1331
  %v1333 = vrot.slane %v1325, %v1332
  %v1336 = vadd.f32 %v1329, %v110
  %v1337 = vadd.f32 %v1333, %v113
  %v1338 = vtanh.pop %v1336
  %v1339 = vtanh.pop %v1337
  %v1340 = vmul.f32 %v1338, %v240
  %v1341 = vmul.f32 %v1339, %v240
  %v1342 = vsel %vm71, %v1340, 0.0
  %1343 = vadd.xlane.f32.xlu0 %v1342
  %v1344 = vpop.xlane.xlu0 %1343
  %v1345 = vsel %vm71, %v1341, 0.0
  %1346 = vadd.xlane.f32.xlu0 %v1345
  %v1347 = vpop.xlane.xlu0 %1346
  %v1350 = vlaneseq
  %v1351 = vshrl.u32 %v1350, 7
  %v1352 = vsub.s32 %v117, %v1351
  %v1353 = vrot.slane %v1344, %v1352
  %v1354 = vlaneseq
  %v1355 = vshrl.u32 %v1354, 7
  %v1356 = vsub.s32 %v117, %v1355
  %v1357 = vrot.slane %v1347, %v1356
  %v1358 = vsel %vm260, %v1357, %v1353
  %v1360 = vsel %vm263, %v1358, -inf
  %1361 = vmax.xlane.f32.xlu0 %v1360
  %v1362 = vpop.xlane.xlu0 %1361
  %v1364 = vlaneseq
  %v1365 = vshrl.u32 %v1364, 7
  %v1366 = vsub.s32 0, %v1365
  %v1367 = vrot.slane %v1362, %v1366
  %v1368 = vlaneseq
  %v1369 = vshrl.u32 %v1368, 7
  %v1370 = vsub.s32 1, %v1369
  %v1371 = vrot.slane %v1362, %v1370
  %v1374 = vsub.f32 %v1344, %v1367
  %v1375 = vsub.f32 %v1347, %v1371
  %v1376 = vmul.f32 %v1374, 1.442695
  %v1377 = vpow.pop %v1376
  %v1378 = vmul.f32 %v1375, 1.442695
  %v1379 = vpow.pop %v1378
  %1382 = vset.pattern.permute.xlu0 0
  %1383 = vperm.xlu0 %1382, %v1377
  %v1384 = vpop.permute.xlu0 %1383
  %1385 = vset.pattern.permute.xlu0 0
  %1386 = vperm.xlu0 %1385, %v1379
  %v1387 = vpop.permute.xlu0 %1386
  %v1388 = vlaneseq
  %v1389 = vshrl.u32 %v1388, 7
  %v1390 = vsub.s32 %v117, %v1389
  %v1391 = vrot.slane %v1384, %v1390
  %v1392 = vlaneseq
  %v1393 = vshrl.u32 %v1392, 7
  %v1394 = vsub.s32 %v117, %v1393
  %v1395 = vrot.slane %v1387, %v1394
  %v1396 = vsel %vm260, %v1395, %v1391
  %v1398 = vsel %vm263, %v1396, 0.0
  %1399 = vadd.xlane.f32.xlu0 %v1398
  %v1400 = vpop.xlane.xlu0 %1399
  %v1402 = vlaneseq
  %v1403 = vshrl.u32 %v1402, 7
  %v1404 = vsub.s32 0, %v1403
  %v1405 = vrot.slane %v1400, %v1404
  %v1406 = vlaneseq
  %v1407 = vshrl.u32 %v1406, 7
  %v1408 = vsub.s32 1, %v1407
  %v1409 = vrot.slane %v1400, %v1408
  %v1412 = vrcp.pop %v1405
  %v1413 = vmul.f32 %v1377, %v1412
  %v1414 = vrcp.pop %v1409
  %v1415 = vmul.f32 %v1379, %v1414
  %1417 = vset.pattern.permute.xlu0 0
  %1418 = vperm.xlu0 %1417, %v1413
  %v1419 = vpop.permute.xlu0 %1418
  %1422 = vset.pattern.permute.xlu0 0
  %1423 = vperm.xlu0 %1422, %v1415
  %v1424 = vpop.permute.xlu0 %1423
  %v1426 = vmul.f32 %v1419, %v18
  %v1427 = vmul.f32 %v1424, %v19
  %v1428 = vsel %vm71, %v1426, 0.0
  %v1429 = vrot.slane %v1428, 4
  %v1430 = vadd.f32 %v1428, %v1429
  %v1431 = vrot.slane %v1430, 2
  %v1432 = vadd.f32 %v1430, %v1431
  %v1433 = vrot.slane %v1432, 1
  %v1434 = vadd.f32 %v1432, %v1433
  %v1435 = vsel %vm71, %v1427, 0.0
  %v1436 = vrot.slane %v1435, 4
  %v1437 = vadd.f32 %v1435, %v1436
  %v1438 = vrot.slane %v1437, 2
  %v1439 = vadd.f32 %v1437, %v1438
  %v1440 = vrot.slane %v1439, 1
  %v1441 = vadd.f32 %v1439, %v1440
  %v1444 = vsel %vm260, %v1441, %v1434
  %1447 = vrot.lane.b32.xlu0 %v1182, 64
  %v1448 = vpop.permute.xlu0 %1447
  %v1450 = vsel %vm71, %v1444, %v1448
  %v1451 = vpack.c.bf16 %v1263, %v1263
  %v1452 = vpack.c.bf16 %v1450, %v1450
  %v1454 = vsel %vm434, %v1452, 0
  %1456 = vmatprep.subr.bf16.mxu0 0
  %1457 = vmatpush1.bf16.msra.mxu0 %v410
  %1458 = vmatprep.subr.bf16.mxu0 0
  %1459 = vmatpush1.bf16.msra.mxu0 %v411
  %1460 = vmatprep.subr.bf16.mxu0 0
  %1461 = vmatpush1.bf16.msra.mxu0 %v412
  %1462 = vmatprep.subr.bf16.mxu0 0
  %1463 = vmatpush1.bf16.msra.mxu0 %v413
  %1464 = vmatprep.subr.bf16.mxu0 0
  %1465 = vmatpush1.bf16.msra.mxu0 %v414
  %1466 = vmatprep.subr.bf16.mxu0 0
  %1467 = vmatpush1.bf16.msra.mxu0 %v415
  %1468 = vmatprep.subr.bf16.mxu0 0
  %1469 = vmatpush1.bf16.msra.mxu0 %v416
  %1470 = vmatprep.subr.bf16.mxu0 0
  %1471 = vmatpush1.bf16.msra.mxu0 %v417
  %1472 = vmatprep.subr.bf16.mxu0 0
  %1473 = vmatpush1.bf16.msra.mxu0 %v418
  %1474 = vmatprep.subr.bf16.mxu0 0
  %1475 = vmatpush1.bf16.msra.mxu0 %v419
  %1476 = vmatprep.subr.bf16.mxu0 0
  %1477 = vmatpush1.bf16.msra.mxu0 %v420
  %1478 = vmatprep.subr.bf16.mxu0 0
  %1479 = vmatpush1.bf16.msra.mxu0 %v421
  %1480 = vmatprep.subr.bf16.mxu0 0
  %1481 = vmatpush1.bf16.msra.mxu0 0
  %1482 = vmatprep.subr.bf16.mxu0 0
  %1483 = vmatpush1.bf16.msra.mxu0 0
  %1484 = vmatprep.subr.bf16.mxu0 0
  %1485 = vmatpush1.bf16.msra.mxu0 0
  %1486 = vmatprep.subr.bf16.mxu0 0
  %1487 = vmatpush1.bf16.msra.mxu0 0
  %1488 = vmatprep.mubr.bf16.mxu0 %v1454
  %1489 = vmatmul.mubr.bf16.gmra.mrb[0].mxu0 %v1451
  %v1490 = vpop.f32.mrb[0].mxu0
  %v1491 = vadd.f32 %v361, %v1490
  %v1492 = vpop.f32.mrb[0].mxu0
  %v1493 = vpop.f32.mrb[0].mxu0
  %v1494 = vpop.f32.mrb[0].mxu0
  %1495 = vdwg.mxu0
  %v1496 = vxor.u32 %v1491, 2147483648
  %v1497 = vmul.f32 %v1496, 1.442695
  %v1498 = vpow.pop %v1497
  %v1499 = vadd.f32 %v1498, 1.0
  %v1500 = vrcp.pop %v1499
  %v1501 = vmul.f32 1.0, %v1500
  %v1502 = vtanh.pop %v1491
  %v1503 = vmul.f32 %v1501, %v1176
  %1505 = vrot.lane.b32.xlu0 %v1502, 64
  %v1506 = vpop.permute.xlu0 %1505
  %v1508 = vmul.f32 %v1501, %v1506
  %1510 = vrot.lane.b32.xlu0 %v1508, 32
  %v1511 = vpop.permute.xlu0 %1510
  %v1513 = vadd.f32 %v1503, %v1511
  %v1514 = vtanh.pop %v1513
  %1516 = vrot.lane.b32.xlu0 %v1514, 64
  %v1517 = vpop.permute.xlu0 %1516
  %v1519 = vmul.f32 %v1501, %v1517
  %v1520 = vpack.c.bf16 %v1519, %v1519
  %1522 = vrot.lane.b32.xlu0 %v1520, 32
  %v1523 = vpop.permute.xlu0 %1522
  %v1525 = vsel %vm71, %v1523, 0
  %1527 = vmatprep.subr.bf16.mxu0 %v151
  %1528 = vmatpush1.bf16.msra.mxu0 %v150
  %1529 = vmatprep.subr.bf16.mxu0 %v153
  %1530 = vmatpush1.bf16.msra.mxu0 %v152
  %1531 = vmatprep.subr.bf16.mxu0 0
  %1532 = vmatpush1.bf16.msra.mxu0 0
  %1533 = vmatprep.subr.bf16.mxu0 0
  %1534 = vmatpush1.bf16.msra.mxu0 0
  %1535 = vmatprep.subr.bf16.mxu0 0
  %1536 = vmatpush1.bf16.msra.mxu0 0
  %1537 = vmatprep.subr.bf16.mxu0 0
  %1538 = vmatpush1.bf16.msra.mxu0 0
  %1539 = vmatprep.subr.bf16.mxu0 0
  %1540 = vmatpush1.bf16.msra.mxu0 0
  %1541 = vmatprep.subr.bf16.mxu0 0
  %1542 = vmatpush1.bf16.msra.mxu0 0
  %1543 = vmatprep.subr.bf16.mxu0 0
  %1544 = vmatpush1.bf16.msra.mxu0 0
  %1545 = vmatprep.subr.bf16.mxu0 0
  %1546 = vmatpush1.bf16.msra.mxu0 0
  %1547 = vmatprep.subr.bf16.mxu0 0
  %1548 = vmatpush1.bf16.msra.mxu0 0
  %1549 = vmatprep.subr.bf16.mxu0 0
  %1550 = vmatpush1.bf16.msra.mxu0 0
  %1551 = vmatprep.subr.bf16.mxu0 0
  %1552 = vmatpush1.bf16.msra.mxu0 0
  %1553 = vmatprep.subr.bf16.mxu0 0
  %1554 = vmatpush1.bf16.msra.mxu0 0
  %1555 = vmatprep.subr.bf16.mxu0 0
  %1556 = vmatpush1.bf16.msra.mxu0 0
  %1557 = vmatprep.subr.bf16.mxu0 0
  %1558 = vmatpush1.bf16.msra.mxu0 0
  %1559 = vmatprep.mubr.bf16.mxu0 0
  %1560 = vmatmul.mubr.bf16.gmra.mrb[0].mxu0 %v1525
  %v1561 = vpop.f32.mrb[0].mxu0
  %v1562 = vadd.f32 %v125, %v1561
  %v1563 = vpop.f32.mrb[0].mxu0
  %v1564 = vadd.f32 %v129, %v1563
  %v1565 = vpop.f32.mrb[0].mxu0
  %v1566 = vpop.f32.mrb[0].mxu0
  %1567 = vdwg.mxu0
  %v1568 = vsel %vm554, %v1562, -inf
  %1569 = vmax.xlane.f32.xlu0 %v1568
  %v1570 = vpop.xlane.xlu0 %1569
  %v1571 = vsub.f32 %v1562, %v1570
  %v1572 = vmul.f32 %v1571, 1.442695
  %v1573 = vpow.pop %v1572
  %v1574 = vsel %vm554, %v1573, 0.0
  %1575 = vadd.xlane.f32.xlu0 %v1574
  %v1576 = vpop.xlane.xlu0 %1575
  %v1577 = vlog2.pop %v1576
  %v1578 = vmul.f32 %v1577, 0.6931472
  %v1579 = vadd.f32 %v1578, %v1570
  %v1580 = vsub.f32 %v1562, %v1579
  %vm1581 = vcmp.eq.f32.partialorder %v1562, %v1570
  %v1582 = vsel %vm1581, %v117, 128
  %v1583 = vsel %vm554, %v1582, 2147483647
  %v1584 = vand.u32 %v1583, 65535
  %v1585 = vshra.s32 %v1583, 16
  %v1586 = vcvt.s32.f32 %v1584
  %v1587 = vcvt.s32.f32 %v1585
  %1588 = vmin.xlane.f32.xlu0 %v1587
  %v1589 = vpop.xlane.xlu0 %1588
  %vm1590 = vcmp.eq.f32.partialorder %v1587, %v1589
  %v1591 = vsel %vm1590, %v1586, inf
  %1592 = vmin.xlane.f32.xlu0 %v1591
  %v1593 = vpop.xlane.xlu0 %1592
  %v1594 = vcvt.f32.s32 %v1593
  %v1595 = vcvt.f32.s32 %v1589
  %v1596 = vshll.u32 %v1595, 16
  %v1597 = vadd.s32 %v1596, %v1594
  %vm1598 = vcmp.eq.s32.totalorder %v117, %v1597
  %v1599 = vsel %vm1598, 1, 0
  %v1600 = vcvt.s32.f32 %v1599
  %v1601 = vlaneseq
  %v1602 = vshrl.u32 %v1601, 7
  %v1603 = vsub.s32 %v588, %v1602
  %v1604 = vrot.slane %v1419, %v1603
  %v1605 = vlaneseq
  %v1606 = vshrl.u32 %v1605, 7
  %v1607 = vsub.s32 %v588, %v1606
  %v1608 = vrot.slane %v1424, %v1607
  %v1609 = vsel %vm260, %v1608, %v1604
  %v1611 = vsel %vm434, %v1580, %v1609
  %v1612 = vsel %vm600, %v1611, 0.0
  %v1615 = vunpack.c.l.s4 1966171168
  %v1616 = vunpack.c.0.s8 %v1615
  %v1617 = vlaneseq
  %v1618 = vshrl.u32 %v1617, 7
  %v1619 = vsub.s32 %v1616, %v1618
  %v1620 = vrot.slane %v1612, %v1619
  %v1621 = vcombine.high %v1620, %v1620
  %v1623 = vunpack.c.l.s4 1966171168
  %v1624 = vunpack.c.0.s8 %v1623
  %v1625 = vlaneseq
  %v1626 = vshrl.u32 %v1625, 7
  %v1627 = vsub.s32 %v1624, %v1626
  %v1628 = vrot.slane %v1620, %v1627
  %v1630 = vunpack.c.l.s4 1966171168
  %v1631 = vunpack.c.0.s8 %v1630
  %v1632 = vlaneseq
  %v1633 = vshrl.u32 %v1632, 7
  %v1634 = vsub.s32 %v1631, %v1633
  %v1635 = vrot.slane %v1621, %v1634
  %1638 = vst [vmem:[%s4 + $0x3] sm:$0x1] %v1628
  %1639 = vst [vmem:[%s4 + $0xb] sm:$0x1] %v1635
  %v1642 = vunpack.c.l.s4 1966171168
  %v1643 = vunpack.c.0.s8 %v1642
  %v1644 = vlaneseq
  %v1645 = vshrl.u32 %v1644, 7
  %v1646 = vsub.s32 %v1643, %v1645
  %v1647 = vrot.slane %v1564, %v1646
  %v1648 = vcombine.high %v1647, %v1647
  %v1650 = vunpack.c.l.s4 1966171168
  %v1651 = vunpack.c.0.s8 %v1650
  %v1652 = vlaneseq
  %v1653 = vshrl.u32 %v1652, 7
  %v1654 = vsub.s32 %v1651, %v1653
  %v1655 = vrot.slane %v1647, %v1654
  %v1657 = vunpack.c.l.s4 1966171168
  %v1658 = vunpack.c.0.s8 %v1657
  %v1659 = vlaneseq
  %v1660 = vshrl.u32 %v1659, 7
  %v1661 = vsub.s32 %v1658, %v1660
  %v1662 = vrot.slane %v1648, %v1661
  %v1663 = vlaneseq
  %v1664 = vshrl.u32 %v1663, 7
  %v1665 = vsub.s32 0, %v1664
  %v1666 = vrot.slane %v1655, %v1665
  %v1667 = vlaneseq
  %v1668 = vshrl.u32 %v1667, 7
  %v1669 = vsub.s32 0, %v1668
  %v1670 = vrot.slane %v1662, %v1669
  %v1673 = vadd.f32 %v1666, %v110
  %v1674 = vadd.f32 %v1670, %v113
  %v1675 = vtanh.pop %v1673
  %v1676 = vtanh.pop %v1674
  %v1677 = vmul.f32 %v1675, %v240
  %v1678 = vmul.f32 %v1676, %v240
  %v1679 = vsel %vm71, %v1677, 0.0
  %1680 = vadd.xlane.f32.xlu0 %v1679
  %v1681 = vpop.xlane.xlu0 %1680
  %v1682 = vsel %vm71, %v1678, 0.0
  %1683 = vadd.xlane.f32.xlu0 %v1682
  %v1684 = vpop.xlane.xlu0 %1683
  %v1687 = vlaneseq
  %v1688 = vshrl.u32 %v1687, 7
  %v1689 = vsub.s32 %v117, %v1688
  %v1690 = vrot.slane %v1681, %v1689
  %v1691 = vlaneseq
  %v1692 = vshrl.u32 %v1691, 7
  %v1693 = vsub.s32 %v117, %v1692
  %v1694 = vrot.slane %v1684, %v1693
  %v1695 = vsel %vm260, %v1694, %v1690
  %v1697 = vsel %vm263, %v1695, -inf
  %1698 = vmax.xlane.f32.xlu0 %v1697
  %v1699 = vpop.xlane.xlu0 %1698
  %v1701 = vlaneseq
  %v1702 = vshrl.u32 %v1701, 7
  %v1703 = vsub.s32 0, %v1702
  %v1704 = vrot.slane %v1699, %v1703
  %v1705 = vlaneseq
  %v1706 = vshrl.u32 %v1705, 7
  %v1707 = vsub.s32 1, %v1706
  %v1708 = vrot.slane %v1699, %v1707
  %v1711 = vsub.f32 %v1681, %v1704
  %v1712 = vsub.f32 %v1684, %v1708
  %v1713 = vmul.f32 %v1711, 1.442695
  %v1714 = vpow.pop %v1713
  %v1715 = vmul.f32 %v1712, 1.442695
  %v1716 = vpow.pop %v1715
  %1719 = vset.pattern.permute.xlu0 0
  %1720 = vperm.xlu0 %1719, %v1714
  %v1721 = vpop.permute.xlu0 %1720
  %1722 = vset.pattern.permute.xlu0 0
  %1723 = vperm.xlu0 %1722, %v1716
  %v1724 = vpop.permute.xlu0 %1723
  %v1725 = vlaneseq
  %v1726 = vshrl.u32 %v1725, 7
  %v1727 = vsub.s32 %v117, %v1726
  %v1728 = vrot.slane %v1721, %v1727
  %v1729 = vlaneseq
  %v1730 = vshrl.u32 %v1729, 7
  %v1731 = vsub.s32 %v117, %v1730
  %v1732 = vrot.slane %v1724, %v1731
  %v1733 = vsel %vm260, %v1732, %v1728
  %v1735 = vsel %vm263, %v1733, 0.0
  %1736 = vadd.xlane.f32.xlu0 %v1735
  %v1737 = vpop.xlane.xlu0 %1736
  %v1739 = vlaneseq
  %v1740 = vshrl.u32 %v1739, 7
  %v1741 = vsub.s32 0, %v1740
  %v1742 = vrot.slane %v1737, %v1741
  %v1743 = vlaneseq
  %v1744 = vshrl.u32 %v1743, 7
  %v1745 = vsub.s32 1, %v1744
  %v1746 = vrot.slane %v1737, %v1745
  %v1749 = vrcp.pop %v1742
  %v1750 = vmul.f32 %v1714, %v1749
  %v1751 = vrcp.pop %v1746
  %v1752 = vmul.f32 %v1716, %v1751
  %1754 = vset.pattern.permute.xlu0 0
  %1755 = vperm.xlu0 %1754, %v1750
  %v1756 = vpop.permute.xlu0 %1755
  %1759 = vset.pattern.permute.xlu0 0
  %1760 = vperm.xlu0 %1759, %v1752
  %v1761 = vpop.permute.xlu0 %1760
  %v1763 = vmul.f32 %v1756, %v18
  %v1764 = vmul.f32 %v1761, %v19
  %v1765 = vsel %vm71, %v1763, 0.0
  %v1766 = vrot.slane %v1765, 4
  %v1767 = vadd.f32 %v1765, %v1766
  %v1768 = vrot.slane %v1767, 2
  %v1769 = vadd.f32 %v1767, %v1768
  %v1770 = vrot.slane %v1769, 1
  %v1771 = vadd.f32 %v1769, %v1770
  %v1772 = vsel %vm71, %v1764, 0.0
  %v1773 = vrot.slane %v1772, 4
  %v1774 = vadd.f32 %v1772, %v1773
  %v1775 = vrot.slane %v1774, 2
  %v1776 = vadd.f32 %v1774, %v1775
  %v1777 = vrot.slane %v1776, 1
  %v1778 = vadd.f32 %v1776, %v1777
  %v1781 = vsel %vm260, %v1778, %v1771
  %1784 = vrot.lane.b32.xlu0 %v1519, 64
  %v1785 = vpop.permute.xlu0 %1784
  %v1787 = vsel %vm71, %v1781, %v1785
  %v1788 = vpack.c.bf16 %v1600, %v1600
  %v1789 = vpack.c.bf16 %v1787, %v1787
  %v1791 = vsel %vm434, %v1789, 0
  %1793 = vmatprep.subr.bf16.mxu0 0
  %1794 = vmatpush1.bf16.msra.mxu0 %v410
  %1795 = vmatprep.subr.bf16.mxu0 0
  %1796 = vmatpush1.bf16.msra.mxu0 %v411
  %1797 = vmatprep.subr.bf16.mxu0 0
  %1798 = vmatpush1.bf16.msra.mxu0 %v412
  %1799 = vmatprep.subr.bf16.mxu0 0
  %1800 = vmatpush1.bf16.msra.mxu0 %v413
  %1801 = vmatprep.subr.bf16.mxu0 0
  %1802 = vmatpush1.bf16.msra.mxu0 %v414
  %1803 = vmatprep.subr.bf16.mxu0 0
  %1804 = vmatpush1.bf16.msra.mxu0 %v415
  %1805 = vmatprep.subr.bf16.mxu0 0
  %1806 = vmatpush1.bf16.msra.mxu0 %v416
  %1807 = vmatprep.subr.bf16.mxu0 0
  %1808 = vmatpush1.bf16.msra.mxu0 %v417
  %1809 = vmatprep.subr.bf16.mxu0 0
  %1810 = vmatpush1.bf16.msra.mxu0 %v418
  %1811 = vmatprep.subr.bf16.mxu0 0
  %1812 = vmatpush1.bf16.msra.mxu0 %v419
  %1813 = vmatprep.subr.bf16.mxu0 0
  %1814 = vmatpush1.bf16.msra.mxu0 %v420
  %1815 = vmatprep.subr.bf16.mxu0 0
  %1816 = vmatpush1.bf16.msra.mxu0 %v421
  %1817 = vmatprep.subr.bf16.mxu0 0
  %1818 = vmatpush1.bf16.msra.mxu0 0
  %1819 = vmatprep.subr.bf16.mxu0 0
  %1820 = vmatpush1.bf16.msra.mxu0 0
  %1821 = vmatprep.subr.bf16.mxu0 0
  %1822 = vmatpush1.bf16.msra.mxu0 0
  %1823 = vmatprep.subr.bf16.mxu0 0
  %1824 = vmatpush1.bf16.msra.mxu0 0
  %1825 = vmatprep.mubr.bf16.mxu0 %v1791
  %1826 = vmatmul.mubr.bf16.gmra.mrb[0].mxu0 %v1788
  %v1827 = vpop.f32.mrb[0].mxu0
  %v1828 = vadd.f32 %v361, %v1827
  %v1829 = vpop.f32.mrb[0].mxu0
  %v1830 = vpop.f32.mrb[0].mxu0
  %v1831 = vpop.f32.mrb[0].mxu0
  %1832 = vdwg.mxu0
  %v1833 = vxor.u32 %v1828, 2147483648
  %v1834 = vmul.f32 %v1833, 1.442695
  %v1835 = vpow.pop %v1834
  %v1836 = vadd.f32 %v1835, 1.0
  %v1837 = vrcp.pop %v1836
  %v1838 = vmul.f32 1.0, %v1837
  %v1839 = vtanh.pop %v1828
  %v1840 = vmul.f32 %v1838, %v1513
  %1842 = vrot.lane.b32.xlu0 %v1839, 64
  %v1843 = vpop.permute.xlu0 %1842
  %v1845 = vmul.f32 %v1838, %v1843
  %1847 = vrot.lane.b32.xlu0 %v1845, 32
  %v1848 = vpop.permute.xlu0 %1847
  %v1850 = vadd.f32 %v1840, %v1848
  %v1851 = vtanh.pop %v1850
  %1853 = vrot.lane.b32.xlu0 %v1851, 64
  %v1854 = vpop.permute.xlu0 %1853
  %v1856 = vmul.f32 %v1838, %v1854
  %v1857 = vpack.c.bf16 %v1856, %v1856
  %1859 = vrot.lane.b32.xlu0 %v1857, 32
  %v1860 = vpop.permute.xlu0 %1859
  %v1862 = vsel %vm71, %v1860, 0
  %1864 = vmatprep.subr.bf16.mxu0 %v151
  %1865 = vmatpush1.bf16.msra.mxu0 %v150
  %1866 = vmatprep.subr.bf16.mxu0 %v153
  %1867 = vmatpush1.bf16.msra.mxu0 %v152
  %1868 = vmatprep.subr.bf16.mxu0 0
  %1869 = vmatpush1.bf16.msra.mxu0 0
  %1870 = vmatprep.subr.bf16.mxu0 0
  %1871 = vmatpush1.bf16.msra.mxu0 0
  %1872 = vmatprep.subr.bf16.mxu0 0
  %1873 = vmatpush1.bf16.msra.mxu0 0
  %1874 = vmatprep.subr.bf16.mxu0 0
  %1875 = vmatpush1.bf16.msra.mxu0 0
  %1876 = vmatprep.subr.bf16.mxu0 0
  %1877 = vmatpush1.bf16.msra.mxu0 0
  %1878 = vmatprep.subr.bf16.mxu0 0
  %1879 = vmatpush1.bf16.msra.mxu0 0
  %1880 = vmatprep.subr.bf16.mxu0 0
  %1881 = vmatpush1.bf16.msra.mxu0 0
  %1882 = vmatprep.subr.bf16.mxu0 0
  %1883 = vmatpush1.bf16.msra.mxu0 0
  %1884 = vmatprep.subr.bf16.mxu0 0
  %1885 = vmatpush1.bf16.msra.mxu0 0
  %1886 = vmatprep.subr.bf16.mxu0 0
  %1887 = vmatpush1.bf16.msra.mxu0 0
  %1888 = vmatprep.subr.bf16.mxu0 0
  %1889 = vmatpush1.bf16.msra.mxu0 0
  %1890 = vmatprep.subr.bf16.mxu0 0
  %1891 = vmatpush1.bf16.msra.mxu0 0
  %1892 = vmatprep.subr.bf16.mxu0 0
  %1893 = vmatpush1.bf16.msra.mxu0 0
  %1894 = vmatprep.subr.bf16.mxu0 0
  %1895 = vmatpush1.bf16.msra.mxu0 0
  %1896 = vmatprep.mubr.bf16.mxu0 0
  %1897 = vmatmul.mubr.bf16.gmra.mrb[0].mxu0 %v1862
  %v1898 = vpop.f32.mrb[0].mxu0
  %v1899 = vadd.f32 %v125, %v1898
  %v1900 = vpop.f32.mrb[0].mxu0
  %v1901 = vadd.f32 %v129, %v1900
  %v1902 = vpop.f32.mrb[0].mxu0
  %v1903 = vpop.f32.mrb[0].mxu0
  %1904 = vdwg.mxu0
  %v1905 = vsel %vm554, %v1899, -inf
  %1906 = vmax.xlane.f32.xlu0 %v1905
  %v1907 = vpop.xlane.xlu0 %1906
  %v1908 = vsub.f32 %v1899, %v1907
  %v1909 = vmul.f32 %v1908, 1.442695
  %v1910 = vpow.pop %v1909
  %v1911 = vsel %vm554, %v1910, 0.0
  %1912 = vadd.xlane.f32.xlu0 %v1911
  %v1913 = vpop.xlane.xlu0 %1912
  %v1914 = vlog2.pop %v1913
  %v1915 = vmul.f32 %v1914, 0.6931472
  %v1916 = vadd.f32 %v1915, %v1907
  %v1917 = vsub.f32 %v1899, %v1916
  %vm1918 = vcmp.eq.f32.partialorder %v1899, %v1907
  %v1919 = vsel %vm1918, %v117, 128
  %v1920 = vsel %vm554, %v1919, 2147483647
  %v1921 = vand.u32 %v1920, 65535
  %v1922 = vshra.s32 %v1920, 16
  %v1923 = vcvt.s32.f32 %v1921
  %v1924 = vcvt.s32.f32 %v1922
  %1925 = vmin.xlane.f32.xlu0 %v1924
  %v1926 = vpop.xlane.xlu0 %1925
  %vm1927 = vcmp.eq.f32.partialorder %v1924, %v1926
  %v1928 = vsel %vm1927, %v1923, inf
  %1929 = vmin.xlane.f32.xlu0 %v1928
  %v1930 = vpop.xlane.xlu0 %1929
  %v1931 = vcvt.f32.s32 %v1930
  %v1932 = vcvt.f32.s32 %v1926
  %v1933 = vshll.u32 %v1932, 16
  %v1934 = vadd.s32 %v1933, %v1931
  %vm1935 = vcmp.eq.s32.totalorder %v117, %v1934
  %v1936 = vsel %vm1935, 1, 0
  %v1937 = vcvt.s32.f32 %v1936
  %v1938 = vlaneseq
  %v1939 = vshrl.u32 %v1938, 7
  %v1940 = vsub.s32 %v588, %v1939
  %v1941 = vrot.slane %v1756, %v1940
  %v1942 = vlaneseq
  %v1943 = vshrl.u32 %v1942, 7
  %v1944 = vsub.s32 %v588, %v1943
  %v1945 = vrot.slane %v1761, %v1944
  %v1946 = vsel %vm260, %v1945, %v1941
  %v1948 = vsel %vm434, %v1917, %v1946
  %v1949 = vsel %vm600, %v1948, 0.0
  %v1952 = vunpack.c.l.s4 1966171168
  %v1953 = vunpack.c.0.s8 %v1952
  %v1954 = vlaneseq
  %v1955 = vshrl.u32 %v1954, 7
  %v1956 = vsub.s32 %v1953, %v1955
  %v1957 = vrot.slane %v1949, %v1956
  %v1958 = vcombine.high %v1957, %v1957
  %v1960 = vunpack.c.l.s4 1966171168
  %v1961 = vunpack.c.0.s8 %v1960
  %v1962 = vlaneseq
  %v1963 = vshrl.u32 %v1962, 7
  %v1964 = vsub.s32 %v1961, %v1963
  %v1965 = vrot.slane %v1957, %v1964
  %v1967 = vunpack.c.l.s4 1966171168
  %v1968 = vunpack.c.0.s8 %v1967
  %v1969 = vlaneseq
  %v1970 = vshrl.u32 %v1969, 7
  %v1971 = vsub.s32 %v1968, %v1970
  %v1972 = vrot.slane %v1958, %v1971
  %1975 = vst [vmem:[%s4 + $0x4] sm:$0x1] %v1965
  %1976 = vst [vmem:[%s4 + $0xc] sm:$0x1] %v1972
  %v1979 = vunpack.c.l.s4 1966171168
  %v1980 = vunpack.c.0.s8 %v1979
  %v1981 = vlaneseq
  %v1982 = vshrl.u32 %v1981, 7
  %v1983 = vsub.s32 %v1980, %v1982
  %v1984 = vrot.slane %v1901, %v1983
  %v1985 = vcombine.high %v1984, %v1984
  %v1987 = vunpack.c.l.s4 1966171168
  %v1988 = vunpack.c.0.s8 %v1987
  %v1989 = vlaneseq
  %v1990 = vshrl.u32 %v1989, 7
  %v1991 = vsub.s32 %v1988, %v1990
  %v1992 = vrot.slane %v1984, %v1991
  %v1994 = vunpack.c.l.s4 1966171168
  %v1995 = vunpack.c.0.s8 %v1994
  %v1996 = vlaneseq
  %v1997 = vshrl.u32 %v1996, 7
  %v1998 = vsub.s32 %v1995, %v1997
  %v1999 = vrot.slane %v1985, %v1998
  %v2000 = vlaneseq
  %v2001 = vshrl.u32 %v2000, 7
  %v2002 = vsub.s32 0, %v2001
  %v2003 = vrot.slane %v1992, %v2002
  %v2004 = vlaneseq
  %v2005 = vshrl.u32 %v2004, 7
  %v2006 = vsub.s32 0, %v2005
  %v2007 = vrot.slane %v1999, %v2006
  %v2010 = vadd.f32 %v2003, %v110
  %v2011 = vadd.f32 %v2007, %v113
  %v2012 = vtanh.pop %v2010
  %v2013 = vtanh.pop %v2011
  %v2014 = vmul.f32 %v2012, %v240
  %v2015 = vmul.f32 %v2013, %v240
  %v2016 = vsel %vm71, %v2014, 0.0
  %2017 = vadd.xlane.f32.xlu0 %v2016
  %v2018 = vpop.xlane.xlu0 %2017
  %v2019 = vsel %vm71, %v2015, 0.0
  %2020 = vadd.xlane.f32.xlu0 %v2019
  %v2021 = vpop.xlane.xlu0 %2020
  %v2024 = vlaneseq
  %v2025 = vshrl.u32 %v2024, 7
  %v2026 = vsub.s32 %v117, %v2025
  %v2027 = vrot.slane %v2018, %v2026
  %v2028 = vlaneseq
  %v2029 = vshrl.u32 %v2028, 7
  %v2030 = vsub.s32 %v117, %v2029
  %v2031 = vrot.slane %v2021, %v2030
  %v2032 = vsel %vm260, %v2031, %v2027
  %v2034 = vsel %vm263, %v2032, -inf
  %2035 = vmax.xlane.f32.xlu0 %v2034
  %v2036 = vpop.xlane.xlu0 %2035
  %v2038 = vlaneseq
  %v2039 = vshrl.u32 %v2038, 7
  %v2040 = vsub.s32 0, %v2039
  %v2041 = vrot.slane %v2036, %v2040
  %v2042 = vlaneseq
  %v2043 = vshrl.u32 %v2042, 7
  %v2044 = vsub.s32 1, %v2043
  %v2045 = vrot.slane %v2036, %v2044
  %v2048 = vsub.f32 %v2018, %v2041
  %v2049 = vsub.f32 %v2021, %v2045
  %v2050 = vmul.f32 %v2048, 1.442695
  %v2051 = vpow.pop %v2050
  %v2052 = vmul.f32 %v2049, 1.442695
  %v2053 = vpow.pop %v2052
  %2056 = vset.pattern.permute.xlu0 0
  %2057 = vperm.xlu0 %2056, %v2051
  %v2058 = vpop.permute.xlu0 %2057
  %2059 = vset.pattern.permute.xlu0 0
  %2060 = vperm.xlu0 %2059, %v2053
  %v2061 = vpop.permute.xlu0 %2060
  %v2062 = vlaneseq
  %v2063 = vshrl.u32 %v2062, 7
  %v2064 = vsub.s32 %v117, %v2063
  %v2065 = vrot.slane %v2058, %v2064
  %v2066 = vlaneseq
  %v2067 = vshrl.u32 %v2066, 7
  %v2068 = vsub.s32 %v117, %v2067
  %v2069 = vrot.slane %v2061, %v2068
  %v2070 = vsel %vm260, %v2069, %v2065
  %v2072 = vsel %vm263, %v2070, 0.0
  %2073 = vadd.xlane.f32.xlu0 %v2072
  %v2074 = vpop.xlane.xlu0 %2073
  %v2076 = vlaneseq
  %v2077 = vshrl.u32 %v2076, 7
  %v2078 = vsub.s32 0, %v2077
  %v2079 = vrot.slane %v2074, %v2078
  %v2080 = vlaneseq
  %v2081 = vshrl.u32 %v2080, 7
  %v2082 = vsub.s32 1, %v2081
  %v2083 = vrot.slane %v2074, %v2082
  %v2086 = vrcp.pop %v2079
  %v2087 = vmul.f32 %v2051, %v2086
  %v2088 = vrcp.pop %v2083
  %v2089 = vmul.f32 %v2053, %v2088
  %2091 = vset.pattern.permute.xlu0 0
  %2092 = vperm.xlu0 %2091, %v2087
  %v2093 = vpop.permute.xlu0 %2092
  %2096 = vset.pattern.permute.xlu0 0
  %2097 = vperm.xlu0 %2096, %v2089
  %v2098 = vpop.permute.xlu0 %2097
  %v2100 = vmul.f32 %v2093, %v18
  %v2101 = vmul.f32 %v2098, %v19
  %v2102 = vsel %vm71, %v2100, 0.0
  %v2103 = vrot.slane %v2102, 4
  %v2104 = vadd.f32 %v2102, %v2103
  %v2105 = vrot.slane %v2104, 2
  %v2106 = vadd.f32 %v2104, %v2105
  %v2107 = vrot.slane %v2106, 1
  %v2108 = vadd.f32 %v2106, %v2107
  %v2109 = vsel %vm71, %v2101, 0.0
  %v2110 = vrot.slane %v2109, 4
  %v2111 = vadd.f32 %v2109, %v2110
  %v2112 = vrot.slane %v2111, 2
  %v2113 = vadd.f32 %v2111, %v2112
  %v2114 = vrot.slane %v2113, 1
  %v2115 = vadd.f32 %v2113, %v2114
  %v2118 = vsel %vm260, %v2115, %v2108
  %2121 = vrot.lane.b32.xlu0 %v1856, 64
  %v2122 = vpop.permute.xlu0 %2121
  %v2124 = vsel %vm71, %v2118, %v2122
  %v2125 = vpack.c.bf16 %v1937, %v1937
  %v2126 = vpack.c.bf16 %v2124, %v2124
  %v2128 = vsel %vm434, %v2126, 0
  %2130 = vmatprep.subr.bf16.mxu0 0
  %2131 = vmatpush1.bf16.msra.mxu0 %v410
  %2132 = vmatprep.subr.bf16.mxu0 0
  %2133 = vmatpush1.bf16.msra.mxu0 %v411
  %2134 = vmatprep.subr.bf16.mxu0 0
  %2135 = vmatpush1.bf16.msra.mxu0 %v412
  %2136 = vmatprep.subr.bf16.mxu0 0
  %2137 = vmatpush1.bf16.msra.mxu0 %v413
  %2138 = vmatprep.subr.bf16.mxu0 0
  %2139 = vmatpush1.bf16.msra.mxu0 %v414
  %2140 = vmatprep.subr.bf16.mxu0 0
  %2141 = vmatpush1.bf16.msra.mxu0 %v415
  %2142 = vmatprep.subr.bf16.mxu0 0
  %2143 = vmatpush1.bf16.msra.mxu0 %v416
  %2144 = vmatprep.subr.bf16.mxu0 0
  %2145 = vmatpush1.bf16.msra.mxu0 %v417
  %2146 = vmatprep.subr.bf16.mxu0 0
  %2147 = vmatpush1.bf16.msra.mxu0 %v418
  %2148 = vmatprep.subr.bf16.mxu0 0
  %2149 = vmatpush1.bf16.msra.mxu0 %v419
  %2150 = vmatprep.subr.bf16.mxu0 0
  %2151 = vmatpush1.bf16.msra.mxu0 %v420
  %2152 = vmatprep.subr.bf16.mxu0 0
  %2153 = vmatpush1.bf16.msra.mxu0 %v421
  %2154 = vmatprep.subr.bf16.mxu0 0
  %2155 = vmatpush1.bf16.msra.mxu0 0
  %2156 = vmatprep.subr.bf16.mxu0 0
  %2157 = vmatpush1.bf16.msra.mxu0 0
  %2158 = vmatprep.subr.bf16.mxu0 0
  %2159 = vmatpush1.bf16.msra.mxu0 0
  %2160 = vmatprep.subr.bf16.mxu0 0
  %2161 = vmatpush1.bf16.msra.mxu0 0
  %2162 = vmatprep.mubr.bf16.mxu0 %v2128
  %2163 = vmatmul.mubr.bf16.gmra.mrb[0].mxu0 %v2125
  %v2164 = vpop.f32.mrb[0].mxu0
  %v2165 = vadd.f32 %v361, %v2164
  %v2166 = vpop.f32.mrb[0].mxu0
  %v2167 = vpop.f32.mrb[0].mxu0
  %v2168 = vpop.f32.mrb[0].mxu0
  %2169 = vdwg.mxu0
  %v2170 = vxor.u32 %v2165, 2147483648
  %v2171 = vmul.f32 %v2170, 1.442695
  %v2172 = vpow.pop %v2171
  %v2173 = vadd.f32 %v2172, 1.0
  %v2174 = vrcp.pop %v2173
  %v2175 = vmul.f32 1.0, %v2174
  %v2176 = vtanh.pop %v2165
  %v2177 = vmul.f32 %v2175, %v1850
  %2179 = vrot.lane.b32.xlu0 %v2176, 64
  %v2180 = vpop.permute.xlu0 %2179
  %v2182 = vmul.f32 %v2175, %v2180
  %2184 = vrot.lane.b32.xlu0 %v2182, 32
  %v2185 = vpop.permute.xlu0 %2184
  %v2187 = vadd.f32 %v2177, %v2185
  %v2188 = vtanh.pop %v2187
  %2190 = vrot.lane.b32.xlu0 %v2188, 64
  %v2191 = vpop.permute.xlu0 %2190
  %v2193 = vmul.f32 %v2175, %v2191
  %v2194 = vpack.c.bf16 %v2193, %v2193
  %2196 = vrot.lane.b32.xlu0 %v2194, 32
  %v2197 = vpop.permute.xlu0 %2196
  %v2199 = vsel %vm71, %v2197, 0
  %2201 = vmatprep.subr.bf16.mxu0 %v151
  %2202 = vmatpush1.bf16.msra.mxu0 %v150
  %2203 = vmatprep.subr.bf16.mxu0 %v153
  %2204 = vmatpush1.bf16.msra.mxu0 %v152
  %2205 = vmatprep.subr.bf16.mxu0 0
  %2206 = vmatpush1.bf16.msra.mxu0 0
  %2207 = vmatprep.subr.bf16.mxu0 0
  %2208 = vmatpush1.bf16.msra.mxu0 0
  %2209 = vmatprep.subr.bf16.mxu0 0
  %2210 = vmatpush1.bf16.msra.mxu0 0
  %2211 = vmatprep.subr.bf16.mxu0 0
  %2212 = vmatpush1.bf16.msra.mxu0 0
  %2213 = vmatprep.subr.bf16.mxu0 0
  %2214 = vmatpush1.bf16.msra.mxu0 0
  %2215 = vmatprep.subr.bf16.mxu0 0
  %2216 = vmatpush1.bf16.msra.mxu0 0
  %2217 = vmatprep.subr.bf16.mxu0 0
  %2218 = vmatpush1.bf16.msra.mxu0 0
  %2219 = vmatprep.subr.bf16.mxu0 0
  %2220 = vmatpush1.bf16.msra.mxu0 0
  %2221 = vmatprep.subr.bf16.mxu0 0
  %2222 = vmatpush1.bf16.msra.mxu0 0
  %2223 = vmatprep.subr.bf16.mxu0 0
  %2224 = vmatpush1.bf16.msra.mxu0 0
  %2225 = vmatprep.subr.bf16.mxu0 0
  %2226 = vmatpush1.bf16.msra.mxu0 0
  %2227 = vmatprep.subr.bf16.mxu0 0
  %2228 = vmatpush1.bf16.msra.mxu0 0
  %2229 = vmatprep.subr.bf16.mxu0 0
  %2230 = vmatpush1.bf16.msra.mxu0 0
  %2231 = vmatprep.subr.bf16.mxu0 0
  %2232 = vmatpush1.bf16.msra.mxu0 0
  %2233 = vmatprep.mubr.bf16.mxu0 0
  %2234 = vmatmul.mubr.bf16.gmra.mrb[0].mxu0 %v2199
  %v2235 = vpop.f32.mrb[0].mxu0
  %v2236 = vadd.f32 %v125, %v2235
  %v2237 = vpop.f32.mrb[0].mxu0
  %v2238 = vadd.f32 %v129, %v2237
  %v2239 = vpop.f32.mrb[0].mxu0
  %v2240 = vpop.f32.mrb[0].mxu0
  %2241 = vdwg.mxu0
  %v2242 = vsel %vm554, %v2236, -inf
  %2243 = vmax.xlane.f32.xlu0 %v2242
  %v2244 = vpop.xlane.xlu0 %2243
  %v2245 = vsub.f32 %v2236, %v2244
  %v2246 = vmul.f32 %v2245, 1.442695
  %v2247 = vpow.pop %v2246
  %v2248 = vsel %vm554, %v2247, 0.0
  %2249 = vadd.xlane.f32.xlu0 %v2248
  %v2250 = vpop.xlane.xlu0 %2249
  %v2251 = vlog2.pop %v2250
  %v2252 = vmul.f32 %v2251, 0.6931472
  %v2253 = vadd.f32 %v2252, %v2244
  %v2254 = vsub.f32 %v2236, %v2253
  %vm2255 = vcmp.eq.f32.partialorder %v2236, %v2244
  %v2256 = vsel %vm2255, %v117, 128
  %v2257 = vsel %vm554, %v2256, 2147483647
  %v2258 = vand.u32 %v2257, 65535
  %v2259 = vshra.s32 %v2257, 16
  %v2260 = vcvt.s32.f32 %v2258
  %v2261 = vcvt.s32.f32 %v2259
  %2262 = vmin.xlane.f32.xlu0 %v2261
  %v2263 = vpop.xlane.xlu0 %2262
  %vm2264 = vcmp.eq.f32.partialorder %v2261, %v2263
  %v2265 = vsel %vm2264, %v2260, inf
  %2266 = vmin.xlane.f32.xlu0 %v2265
  %v2267 = vpop.xlane.xlu0 %2266
  %v2268 = vcvt.f32.s32 %v2267
  %v2269 = vcvt.f32.s32 %v2263
  %v2270 = vshll.u32 %v2269, 16
  %v2271 = vadd.s32 %v2270, %v2268
  %vm2272 = vcmp.eq.s32.totalorder %v117, %v2271
  %v2273 = vsel %vm2272, 1, 0
  %v2274 = vcvt.s32.f32 %v2273
  %v2275 = vlaneseq
  %v2276 = vshrl.u32 %v2275, 7
  %v2277 = vsub.s32 %v588, %v2276
  %v2278 = vrot.slane %v2093, %v2277
  %v2279 = vlaneseq
  %v2280 = vshrl.u32 %v2279, 7
  %v2281 = vsub.s32 %v588, %v2280
  %v2282 = vrot.slane %v2098, %v2281
  %v2283 = vsel %vm260, %v2282, %v2278
  %v2285 = vsel %vm434, %v2254, %v2283
  %v2286 = vsel %vm600, %v2285, 0.0
  %v2289 = vunpack.c.l.s4 1966171168
  %v2290 = vunpack.c.0.s8 %v2289
  %v2291 = vlaneseq
  %v2292 = vshrl.u32 %v2291, 7
  %v2293 = vsub.s32 %v2290, %v2292
  %v2294 = vrot.slane %v2286, %v2293
  %v2295 = vcombine.high %v2294, %v2294
  %v2297 = vunpack.c.l.s4 1966171168
  %v2298 = vunpack.c.0.s8 %v2297
  %v2299 = vlaneseq
  %v2300 = vshrl.u32 %v2299, 7
  %v2301 = vsub.s32 %v2298, %v2300
  %v2302 = vrot.slane %v2294, %v2301
  %v2304 = vunpack.c.l.s4 1966171168
  %v2305 = vunpack.c.0.s8 %v2304
  %v2306 = vlaneseq
  %v2307 = vshrl.u32 %v2306, 7
  %v2308 = vsub.s32 %v2305, %v2307
  %v2309 = vrot.slane %v2295, %v2308
  %2312 = vst [vmem:[%s4 + $0x5] sm:$0x1] %v2302
  %2313 = vst [vmem:[%s4 + $0xd] sm:$0x1] %v2309
  %v2316 = vunpack.c.l.s4 1966171168
  %v2317 = vunpack.c.0.s8 %v2316
  %v2318 = vlaneseq
  %v2319 = vshrl.u32 %v2318, 7
  %v2320 = vsub.s32 %v2317, %v2319
  %v2321 = vrot.slane %v2238, %v2320
  %v2322 = vcombine.high %v2321, %v2321
  %v2324 = vunpack.c.l.s4 1966171168
  %v2325 = vunpack.c.0.s8 %v2324
  %v2326 = vlaneseq
  %v2327 = vshrl.u32 %v2326, 7
  %v2328 = vsub.s32 %v2325, %v2327
  %v2329 = vrot.slane %v2321, %v2328
  %v2331 = vunpack.c.l.s4 1966171168
  %v2332 = vunpack.c.0.s8 %v2331
  %v2333 = vlaneseq
  %v2334 = vshrl.u32 %v2333, 7
  %v2335 = vsub.s32 %v2332, %v2334
  %v2336 = vrot.slane %v2322, %v2335
  %v2337 = vlaneseq
  %v2338 = vshrl.u32 %v2337, 7
  %v2339 = vsub.s32 0, %v2338
  %v2340 = vrot.slane %v2329, %v2339
  %v2341 = vlaneseq
  %v2342 = vshrl.u32 %v2341, 7
  %v2343 = vsub.s32 0, %v2342
  %v2344 = vrot.slane %v2336, %v2343
  %v2347 = vadd.f32 %v2340, %v110
  %v2348 = vadd.f32 %v2344, %v113
  %v2349 = vtanh.pop %v2347
  %v2350 = vtanh.pop %v2348
  %v2351 = vmul.f32 %v2349, %v240
  %v2352 = vmul.f32 %v2350, %v240
  %v2353 = vsel %vm71, %v2351, 0.0
  %2354 = vadd.xlane.f32.xlu0 %v2353
  %v2355 = vpop.xlane.xlu0 %2354
  %v2356 = vsel %vm71, %v2352, 0.0
  %2357 = vadd.xlane.f32.xlu0 %v2356
  %v2358 = vpop.xlane.xlu0 %2357
  %v2361 = vlaneseq
  %v2362 = vshrl.u32 %v2361, 7
  %v2363 = vsub.s32 %v117, %v2362
  %v2364 = vrot.slane %v2355, %v2363
  %v2365 = vlaneseq
  %v2366 = vshrl.u32 %v2365, 7
  %v2367 = vsub.s32 %v117, %v2366
  %v2368 = vrot.slane %v2358, %v2367
  %v2369 = vsel %vm260, %v2368, %v2364
  %v2371 = vsel %vm263, %v2369, -inf
  %2372 = vmax.xlane.f32.xlu0 %v2371
  %v2373 = vpop.xlane.xlu0 %2372
  %v2375 = vlaneseq
  %v2376 = vshrl.u32 %v2375, 7
  %v2377 = vsub.s32 0, %v2376
  %v2378 = vrot.slane %v2373, %v2377
  %v2379 = vlaneseq
  %v2380 = vshrl.u32 %v2379, 7
  %v2381 = vsub.s32 1, %v2380
  %v2382 = vrot.slane %v2373, %v2381
  %v2385 = vsub.f32 %v2355, %v2378
  %v2386 = vsub.f32 %v2358, %v2382
  %v2387 = vmul.f32 %v2385, 1.442695
  %v2388 = vpow.pop %v2387
  %v2389 = vmul.f32 %v2386, 1.442695
  %v2390 = vpow.pop %v2389
  %2393 = vset.pattern.permute.xlu0 0
  %2394 = vperm.xlu0 %2393, %v2388
  %v2395 = vpop.permute.xlu0 %2394
  %2396 = vset.pattern.permute.xlu0 0
  %2397 = vperm.xlu0 %2396, %v2390
  %v2398 = vpop.permute.xlu0 %2397
  %v2399 = vlaneseq
  %v2400 = vshrl.u32 %v2399, 7
  %v2401 = vsub.s32 %v117, %v2400
  %v2402 = vrot.slane %v2395, %v2401
  %v2403 = vlaneseq
  %v2404 = vshrl.u32 %v2403, 7
  %v2405 = vsub.s32 %v117, %v2404
  %v2406 = vrot.slane %v2398, %v2405
  %v2407 = vsel %vm260, %v2406, %v2402
  %v2409 = vsel %vm263, %v2407, 0.0
  %2410 = vadd.xlane.f32.xlu0 %v2409
  %v2411 = vpop.xlane.xlu0 %2410
  %v2413 = vlaneseq
  %v2414 = vshrl.u32 %v2413, 7
  %v2415 = vsub.s32 0, %v2414
  %v2416 = vrot.slane %v2411, %v2415
  %v2417 = vlaneseq
  %v2418 = vshrl.u32 %v2417, 7
  %v2419 = vsub.s32 1, %v2418
  %v2420 = vrot.slane %v2411, %v2419
  %v2423 = vrcp.pop %v2416
  %v2424 = vmul.f32 %v2388, %v2423
  %v2425 = vrcp.pop %v2420
  %v2426 = vmul.f32 %v2390, %v2425
  %2428 = vset.pattern.permute.xlu0 0
  %2429 = vperm.xlu0 %2428, %v2424
  %v2430 = vpop.permute.xlu0 %2429
  %2433 = vset.pattern.permute.xlu0 0
  %2434 = vperm.xlu0 %2433, %v2426
  %v2435 = vpop.permute.xlu0 %2434
  %v2437 = vmul.f32 %v2430, %v18
  %v2438 = vmul.f32 %v2435, %v19
  %v2439 = vsel %vm71, %v2437, 0.0
  %v2440 = vrot.slane %v2439, 4
  %v2441 = vadd.f32 %v2439, %v2440
  %v2442 = vrot.slane %v2441, 2
  %v2443 = vadd.f32 %v2441, %v2442
  %v2444 = vrot.slane %v2443, 1
  %v2445 = vadd.f32 %v2443, %v2444
  %v2446 = vsel %vm71, %v2438, 0.0
  %v2447 = vrot.slane %v2446, 4
  %v2448 = vadd.f32 %v2446, %v2447
  %v2449 = vrot.slane %v2448, 2
  %v2450 = vadd.f32 %v2448, %v2449
  %v2451 = vrot.slane %v2450, 1
  %v2452 = vadd.f32 %v2450, %v2451
  %v2455 = vsel %vm260, %v2452, %v2445
  %2458 = vrot.lane.b32.xlu0 %v2193, 64
  %v2459 = vpop.permute.xlu0 %2458
  %v2461 = vsel %vm71, %v2455, %v2459
  %v2462 = vpack.c.bf16 %v2274, %v2274
  %v2463 = vpack.c.bf16 %v2461, %v2461
  %v2465 = vsel %vm434, %v2463, 0
  %2467 = vmatprep.subr.bf16.mxu0 0
  %2468 = vmatpush1.bf16.msra.mxu0 %v410
  %2469 = vmatprep.subr.bf16.mxu0 0
  %2470 = vmatpush1.bf16.msra.mxu0 %v411
  %2471 = vmatprep.subr.bf16.mxu0 0
  %2472 = vmatpush1.bf16.msra.mxu0 %v412
  %2473 = vmatprep.subr.bf16.mxu0 0
  %2474 = vmatpush1.bf16.msra.mxu0 %v413
  %2475 = vmatprep.subr.bf16.mxu0 0
  %2476 = vmatpush1.bf16.msra.mxu0 %v414
  %2477 = vmatprep.subr.bf16.mxu0 0
  %2478 = vmatpush1.bf16.msra.mxu0 %v415
  %2479 = vmatprep.subr.bf16.mxu0 0
  %2480 = vmatpush1.bf16.msra.mxu0 %v416
  %2481 = vmatprep.subr.bf16.mxu0 0
  %2482 = vmatpush1.bf16.msra.mxu0 %v417
  %2483 = vmatprep.subr.bf16.mxu0 0
  %2484 = vmatpush1.bf16.msra.mxu0 %v418
  %2485 = vmatprep.subr.bf16.mxu0 0
  %2486 = vmatpush1.bf16.msra.mxu0 %v419
  %2487 = vmatprep.subr.bf16.mxu0 0
  %2488 = vmatpush1.bf16.msra.mxu0 %v420
  %2489 = vmatprep.subr.bf16.mxu0 0
  %2490 = vmatpush1.bf16.msra.mxu0 %v421
  %2491 = vmatprep.subr.bf16.mxu0 0
  %2492 = vmatpush1.bf16.msra.mxu0 0
  %2493 = vmatprep.subr.bf16.mxu0 0
  %2494 = vmatpush1.bf16.msra.mxu0 0
  %2495 = vmatprep.subr.bf16.mxu0 0
  %2496 = vmatpush1.bf16.msra.mxu0 0
  %2497 = vmatprep.subr.bf16.mxu0 0
  %2498 = vmatpush1.bf16.msra.mxu0 0
  %2499 = vmatprep.mubr.bf16.mxu0 %v2465
  %2500 = vmatmul.mubr.bf16.gmra.mrb[0].mxu0 %v2462
  %v2501 = vpop.f32.mrb[0].mxu0
  %v2502 = vadd.f32 %v361, %v2501
  %v2503 = vpop.f32.mrb[0].mxu0
  %v2504 = vpop.f32.mrb[0].mxu0
  %v2505 = vpop.f32.mrb[0].mxu0
  %2506 = vdwg.mxu0
  %v2507 = vxor.u32 %v2502, 2147483648
  %v2508 = vmul.f32 %v2507, 1.442695
  %v2509 = vpow.pop %v2508
  %v2510 = vadd.f32 %v2509, 1.0
  %v2511 = vrcp.pop %v2510
  %v2512 = vmul.f32 1.0, %v2511
  %v2513 = vtanh.pop %v2502
  %v2514 = vmul.f32 %v2512, %v2187
  %2516 = vrot.lane.b32.xlu0 %v2513, 64
  %v2517 = vpop.permute.xlu0 %2516
  %v2519 = vmul.f32 %v2512, %v2517
  %2521 = vrot.lane.b32.xlu0 %v2519, 32
  %v2522 = vpop.permute.xlu0 %2521
  %v2524 = vadd.f32 %v2514, %v2522
  %v2525 = vtanh.pop %v2524
  %2527 = vrot.lane.b32.xlu0 %v2525, 64
  %v2528 = vpop.permute.xlu0 %2527
  %v2530 = vmul.f32 %v2512, %v2528
  %v2531 = vpack.c.bf16 %v2530, %v2530
  %2533 = vrot.lane.b32.xlu0 %v2531, 32
  %v2534 = vpop.permute.xlu0 %2533
  %v2536 = vsel %vm71, %v2534, 0
  %2538 = vmatprep.subr.bf16.mxu0 %v151
  %2539 = vmatpush1.bf16.msra.mxu0 %v150
  %2540 = vmatprep.subr.bf16.mxu0 %v153
  %2541 = vmatpush1.bf16.msra.mxu0 %v152
  %2542 = vmatprep.subr.bf16.mxu0 0
  %2543 = vmatpush1.bf16.msra.mxu0 0
  %2544 = vmatprep.subr.bf16.mxu0 0
  %2545 = vmatpush1.bf16.msra.mxu0 0
  %2546 = vmatprep.subr.bf16.mxu0 0
  %2547 = vmatpush1.bf16.msra.mxu0 0
  %2548 = vmatprep.subr.bf16.mxu0 0
  %2549 = vmatpush1.bf16.msra.mxu0 0
  %2550 = vmatprep.subr.bf16.mxu0 0
  %2551 = vmatpush1.bf16.msra.mxu0 0
  %2552 = vmatprep.subr.bf16.mxu0 0
  %2553 = vmatpush1.bf16.msra.mxu0 0
  %2554 = vmatprep.subr.bf16.mxu0 0
  %2555 = vmatpush1.bf16.msra.mxu0 0
  %2556 = vmatprep.subr.bf16.mxu0 0
  %2557 = vmatpush1.bf16.msra.mxu0 0
  %2558 = vmatprep.subr.bf16.mxu0 0
  %2559 = vmatpush1.bf16.msra.mxu0 0
  %2560 = vmatprep.subr.bf16.mxu0 0
  %2561 = vmatpush1.bf16.msra.mxu0 0
  %2562 = vmatprep.subr.bf16.mxu0 0
  %2563 = vmatpush1.bf16.msra.mxu0 0
  %2564 = vmatprep.subr.bf16.mxu0 0
  %2565 = vmatpush1.bf16.msra.mxu0 0
  %2566 = vmatprep.subr.bf16.mxu0 0
  %2567 = vmatpush1.bf16.msra.mxu0 0
  %2568 = vmatprep.subr.bf16.mxu0 0
  %2569 = vmatpush1.bf16.msra.mxu0 0
  %2570 = vmatprep.mubr.bf16.mxu0 0
  %2571 = vmatmul.mubr.bf16.gmra.mrb[0].mxu0 %v2536
  %v2572 = vpop.f32.mrb[0].mxu0
  %v2573 = vadd.f32 %v125, %v2572
  %v2574 = vpop.f32.mrb[0].mxu0
  %v2575 = vadd.f32 %v129, %v2574
  %v2576 = vpop.f32.mrb[0].mxu0
  %v2577 = vpop.f32.mrb[0].mxu0
  %2578 = vdwg.mxu0
  %v2579 = vsel %vm554, %v2573, -inf
  %2580 = vmax.xlane.f32.xlu0 %v2579
  %v2581 = vpop.xlane.xlu0 %2580
  %v2582 = vsub.f32 %v2573, %v2581
  %v2583 = vmul.f32 %v2582, 1.442695
  %v2584 = vpow.pop %v2583
  %v2585 = vsel %vm554, %v2584, 0.0
  %2586 = vadd.xlane.f32.xlu0 %v2585
  %v2587 = vpop.xlane.xlu0 %2586
  %v2588 = vlog2.pop %v2587
  %v2589 = vmul.f32 %v2588, 0.6931472
  %v2590 = vadd.f32 %v2589, %v2581
  %v2591 = vsub.f32 %v2573, %v2590
  %vm2592 = vcmp.eq.f32.partialorder %v2573, %v2581
  %v2593 = vsel %vm2592, %v117, 128
  %v2594 = vsel %vm554, %v2593, 2147483647
  %v2595 = vand.u32 %v2594, 65535
  %v2596 = vshra.s32 %v2594, 16
  %v2597 = vcvt.s32.f32 %v2595
  %v2598 = vcvt.s32.f32 %v2596
  %2599 = vmin.xlane.f32.xlu0 %v2598
  %v2600 = vpop.xlane.xlu0 %2599
  %vm2601 = vcmp.eq.f32.partialorder %v2598, %v2600
  %v2602 = vsel %vm2601, %v2597, inf
  %2603 = vmin.xlane.f32.xlu0 %v2602
  %v2604 = vpop.xlane.xlu0 %2603
  %v2605 = vcvt.f32.s32 %v2604
  %v2606 = vcvt.f32.s32 %v2600
  %v2607 = vshll.u32 %v2606, 16
  %v2608 = vadd.s32 %v2607, %v2605
  %vm2609 = vcmp.eq.s32.totalorder %v117, %v2608
  %v2610 = vsel %vm2609, 1, 0
  %v2611 = vcvt.s32.f32 %v2610
  %v2612 = vlaneseq
  %v2613 = vshrl.u32 %v2612, 7
  %v2614 = vsub.s32 %v588, %v2613
  %v2615 = vrot.slane %v2430, %v2614
  %v2616 = vlaneseq
  %v2617 = vshrl.u32 %v2616, 7
  %v2618 = vsub.s32 %v588, %v2617
  %v2619 = vrot.slane %v2435, %v2618
  %v2620 = vsel %vm260, %v2619, %v2615
  %v2622 = vsel %vm434, %v2591, %v2620
  %v2623 = vsel %vm600, %v2622, 0.0
  %v2626 = vunpack.c.l.s4 1966171168
  %v2627 = vunpack.c.0.s8 %v2626
  %v2628 = vlaneseq
  %v2629 = vshrl.u32 %v2628, 7
  %v2630 = vsub.s32 %v2627, %v2629
  %v2631 = vrot.slane %v2623, %v2630
  %v2632 = vcombine.high %v2631, %v2631
  %v2634 = vunpack.c.l.s4 1966171168
  %v2635 = vunpack.c.0.s8 %v2634
  %v2636 = vlaneseq
  %v2637 = vshrl.u32 %v2636, 7
  %v2638 = vsub.s32 %v2635, %v2637
  %v2639 = vrot.slane %v2631, %v2638
  %v2641 = vunpack.c.l.s4 1966171168
  %v2642 = vunpack.c.0.s8 %v2641
  %v2643 = vlaneseq
  %v2644 = vshrl.u32 %v2643, 7
  %v2645 = vsub.s32 %v2642, %v2644
  %v2646 = vrot.slane %v2632, %v2645
  %2649 = vst [vmem:[%s4 + $0x6] sm:$0x1] %v2639
  %2650 = vst [vmem:[%s4 + $0xe] sm:$0x1] %v2646
  %v2653 = vunpack.c.l.s4 1966171168
  %v2654 = vunpack.c.0.s8 %v2653
  %v2655 = vlaneseq
  %v2656 = vshrl.u32 %v2655, 7
  %v2657 = vsub.s32 %v2654, %v2656
  %v2658 = vrot.slane %v2575, %v2657
  %v2659 = vcombine.high %v2658, %v2658
  %v2661 = vunpack.c.l.s4 1966171168
  %v2662 = vunpack.c.0.s8 %v2661
  %v2663 = vlaneseq
  %v2664 = vshrl.u32 %v2663, 7
  %v2665 = vsub.s32 %v2662, %v2664
  %v2666 = vrot.slane %v2658, %v2665
  %v2668 = vunpack.c.l.s4 1966171168
  %v2669 = vunpack.c.0.s8 %v2668
  %v2670 = vlaneseq
  %v2671 = vshrl.u32 %v2670, 7
  %v2672 = vsub.s32 %v2669, %v2671
  %v2673 = vrot.slane %v2659, %v2672
  %v2674 = vlaneseq
  %v2675 = vshrl.u32 %v2674, 7
  %v2676 = vsub.s32 0, %v2675
  %v2677 = vrot.slane %v2666, %v2676
  %v2678 = vlaneseq
  %v2679 = vshrl.u32 %v2678, 7
  %v2680 = vsub.s32 0, %v2679
  %v2681 = vrot.slane %v2673, %v2680
  %v2684 = vadd.f32 %v2677, %v110
  %v2685 = vadd.f32 %v2681, %v113
  %v2686 = vtanh.pop %v2684
  %v2687 = vtanh.pop %v2685
  %v2688 = vmul.f32 %v2686, %v240
  %v2689 = vmul.f32 %v2687, %v240
  %v2690 = vsel %vm71, %v2688, 0.0
  %2691 = vadd.xlane.f32.xlu0 %v2690
  %v2692 = vpop.xlane.xlu0 %2691
  %v2693 = vsel %vm71, %v2689, 0.0
  %2694 = vadd.xlane.f32.xlu0 %v2693
  %v2695 = vpop.xlane.xlu0 %2694
  %v2698 = vlaneseq
  %v2699 = vshrl.u32 %v2698, 7
  %v2700 = vsub.s32 %v117, %v2699
  %v2701 = vrot.slane %v2692, %v2700
  %v2702 = vlaneseq
  %v2703 = vshrl.u32 %v2702, 7
  %v2704 = vsub.s32 %v117, %v2703
  %v2705 = vrot.slane %v2695, %v2704
  %v2706 = vsel %vm260, %v2705, %v2701
  %v2708 = vsel %vm263, %v2706, -inf
  %2709 = vmax.xlane.f32.xlu0 %v2708
  %v2710 = vpop.xlane.xlu0 %2709
  %v2712 = vlaneseq
  %v2713 = vshrl.u32 %v2712, 7
  %v2714 = vsub.s32 0, %v2713
  %v2715 = vrot.slane %v2710, %v2714
  %v2716 = vlaneseq
  %v2717 = vshrl.u32 %v2716, 7
  %v2718 = vsub.s32 1, %v2717
  %v2719 = vrot.slane %v2710, %v2718
  %v2722 = vsub.f32 %v2692, %v2715
  %v2723 = vsub.f32 %v2695, %v2719
  %v2724 = vmul.f32 %v2722, 1.442695
  %v2725 = vpow.pop %v2724
  %v2726 = vmul.f32 %v2723, 1.442695
  %v2727 = vpow.pop %v2726
  %2730 = vset.pattern.permute.xlu0 0
  %2731 = vperm.xlu0 %2730, %v2725
  %v2732 = vpop.permute.xlu0 %2731
  %2733 = vset.pattern.permute.xlu0 0
  %2734 = vperm.xlu0 %2733, %v2727
  %v2735 = vpop.permute.xlu0 %2734
  %v2736 = vlaneseq
  %v2737 = vshrl.u32 %v2736, 7
  %v2738 = vsub.s32 %v117, %v2737
  %v2739 = vrot.slane %v2732, %v2738
  %v2740 = vlaneseq
  %v2741 = vshrl.u32 %v2740, 7
  %v2742 = vsub.s32 %v117, %v2741
  %v2743 = vrot.slane %v2735, %v2742
  %v2744 = vsel %vm260, %v2743, %v2739
  %v2746 = vsel %vm263, %v2744, 0.0
  %2747 = vadd.xlane.f32.xlu0 %v2746
  %v2748 = vpop.xlane.xlu0 %2747
  %v2750 = vlaneseq
  %v2751 = vshrl.u32 %v2750, 7
  %v2752 = vsub.s32 0, %v2751
  %v2753 = vrot.slane %v2748, %v2752
  %v2754 = vlaneseq
  %v2755 = vshrl.u32 %v2754, 7
  %v2756 = vsub.s32 1, %v2755
  %v2757 = vrot.slane %v2748, %v2756
  %v2760 = vrcp.pop %v2753
  %v2761 = vmul.f32 %v2725, %v2760
  %v2762 = vrcp.pop %v2757
  %v2763 = vmul.f32 %v2727, %v2762
  %2765 = vset.pattern.permute.xlu0 0
  %2766 = vperm.xlu0 %2765, %v2761
  %v2767 = vpop.permute.xlu0 %2766
  %2770 = vset.pattern.permute.xlu0 0
  %2771 = vperm.xlu0 %2770, %v2763
  %v2772 = vpop.permute.xlu0 %2771
  %v2774 = vmul.f32 %v2767, %v18
  %v2775 = vmul.f32 %v2772, %v19
  %v2776 = vsel %vm71, %v2774, 0.0
  %v2777 = vrot.slane %v2776, 4
  %v2778 = vadd.f32 %v2776, %v2777
  %v2779 = vrot.slane %v2778, 2
  %v2780 = vadd.f32 %v2778, %v2779
  %v2781 = vrot.slane %v2780, 1
  %v2782 = vadd.f32 %v2780, %v2781
  %v2783 = vsel %vm71, %v2775, 0.0
  %v2784 = vrot.slane %v2783, 4
  %v2785 = vadd.f32 %v2783, %v2784
  %v2786 = vrot.slane %v2785, 2
  %v2787 = vadd.f32 %v2785, %v2786
  %v2788 = vrot.slane %v2787, 1
  %v2789 = vadd.f32 %v2787, %v2788
  %v2792 = vsel %vm260, %v2789, %v2782
  %2795 = vrot.lane.b32.xlu0 %v2530, 64
  %v2796 = vpop.permute.xlu0 %2795
  %v2798 = vsel %vm71, %v2792, %v2796
  %v2799 = vpack.c.bf16 %v2611, %v2611
  %v2800 = vpack.c.bf16 %v2798, %v2798
  %v2802 = vsel %vm434, %v2800, 0
  %2804 = vmatprep.subr.bf16.mxu0 0
  %2805 = vmatpush1.bf16.msra.mxu0 %v410
  %2806 = vmatprep.subr.bf16.mxu0 0
  %2807 = vmatpush1.bf16.msra.mxu0 %v411
  %2808 = vmatprep.subr.bf16.mxu0 0
  %2809 = vmatpush1.bf16.msra.mxu0 %v412
  %2810 = vmatprep.subr.bf16.mxu0 0
  %2811 = vmatpush1.bf16.msra.mxu0 %v413
  %2812 = vmatprep.subr.bf16.mxu0 0
  %2813 = vmatpush1.bf16.msra.mxu0 %v414
  %2814 = vmatprep.subr.bf16.mxu0 0
  %2815 = vmatpush1.bf16.msra.mxu0 %v415
  %2816 = vmatprep.subr.bf16.mxu0 0
  %2817 = vmatpush1.bf16.msra.mxu0 %v416
  %2818 = vmatprep.subr.bf16.mxu0 0
  %2819 = vmatpush1.bf16.msra.mxu0 %v417
  %2820 = vmatprep.subr.bf16.mxu0 0
  %2821 = vmatpush1.bf16.msra.mxu0 %v418
  %2822 = vmatprep.subr.bf16.mxu0 0
  %2823 = vmatpush1.bf16.msra.mxu0 %v419
  %2824 = vmatprep.subr.bf16.mxu0 0
  %2825 = vmatpush1.bf16.msra.mxu0 %v420
  %2826 = vmatprep.subr.bf16.mxu0 0
  %2827 = vmatpush1.bf16.msra.mxu0 %v421
  %2828 = vmatprep.subr.bf16.mxu0 0
  %2829 = vmatpush1.bf16.msra.mxu0 0
  %2830 = vmatprep.subr.bf16.mxu0 0
  %2831 = vmatpush1.bf16.msra.mxu0 0
  %2832 = vmatprep.subr.bf16.mxu0 0
  %2833 = vmatpush1.bf16.msra.mxu0 0
  %2834 = vmatprep.subr.bf16.mxu0 0
  %2835 = vmatpush1.bf16.msra.mxu0 0
  %2836 = vmatprep.mubr.bf16.mxu0 %v2802
  %2837 = vmatmul.mubr.bf16.gmra.mrb[0].mxu0 %v2799
  %v2838 = vpop.f32.mrb[0].mxu0
  %v2839 = vadd.f32 %v361, %v2838
  %v2840 = vpop.f32.mrb[0].mxu0
  %v2841 = vpop.f32.mrb[0].mxu0
  %v2842 = vpop.f32.mrb[0].mxu0
  %2843 = vdwg.mxu0
  %v2844 = vxor.u32 %v2839, 2147483648
  %v2845 = vmul.f32 %v2844, 1.442695
  %v2846 = vpow.pop %v2845
  %v2847 = vadd.f32 %v2846, 1.0
  %v2848 = vrcp.pop %v2847
  %v2849 = vmul.f32 1.0, %v2848
  %v2850 = vtanh.pop %v2839
  %v2851 = vmul.f32 %v2849, %v2524
  %2853 = vrot.lane.b32.xlu0 %v2850, 64
  %v2854 = vpop.permute.xlu0 %2853
  %v2856 = vmul.f32 %v2849, %v2854
  %2858 = vrot.lane.b32.xlu0 %v2856, 32
  %v2859 = vpop.permute.xlu0 %2858
  %v2861 = vadd.f32 %v2851, %v2859
  %v2862 = vtanh.pop %v2861
  %2864 = vrot.lane.b32.xlu0 %v2862, 64
  %v2865 = vpop.permute.xlu0 %2864
  %v2867 = vmul.f32 %v2849, %v2865
  %v2868 = vpack.c.bf16 %v2867, %v2867
  %2870 = vrot.lane.b32.xlu0 %v2868, 32
  %v2871 = vpop.permute.xlu0 %2870
  %v2873 = vsel %vm71, %v2871, 0
  %2875 = vmatprep.subr.bf16.mxu0 %v151
  %2876 = vmatpush1.bf16.msra.mxu0 %v150
  %2877 = vmatprep.subr.bf16.mxu0 %v153
  %2878 = vmatpush1.bf16.msra.mxu0 %v152
  %2879 = vmatprep.subr.bf16.mxu0 0
  %2880 = vmatpush1.bf16.msra.mxu0 0
  %2881 = vmatprep.subr.bf16.mxu0 0
  %2882 = vmatpush1.bf16.msra.mxu0 0
  %2883 = vmatprep.subr.bf16.mxu0 0
  %2884 = vmatpush1.bf16.msra.mxu0 0
  %2885 = vmatprep.subr.bf16.mxu0 0
  %2886 = vmatpush1.bf16.msra.mxu0 0
  %2887 = vmatprep.subr.bf16.mxu0 0
  %2888 = vmatpush1.bf16.msra.mxu0 0
  %2889 = vmatprep.subr.bf16.mxu0 0
  %2890 = vmatpush1.bf16.msra.mxu0 0
  %2891 = vmatprep.subr.bf16.mxu0 0
  %2892 = vmatpush1.bf16.msra.mxu0 0
  %2893 = vmatprep.subr.bf16.mxu0 0
  %2894 = vmatpush1.bf16.msra.mxu0 0
  %2895 = vmatprep.subr.bf16.mxu0 0
  %2896 = vmatpush1.bf16.msra.mxu0 0
  %2897 = vmatprep.subr.bf16.mxu0 0
  %2898 = vmatpush1.bf16.msra.mxu0 0
  %2899 = vmatprep.subr.bf16.mxu0 0
  %2900 = vmatpush1.bf16.msra.mxu0 0
  %2901 = vmatprep.subr.bf16.mxu0 0
  %2902 = vmatpush1.bf16.msra.mxu0 0
  %2903 = vmatprep.subr.bf16.mxu0 0
  %2904 = vmatpush1.bf16.msra.mxu0 0
  %2905 = vmatprep.subr.bf16.mxu0 0
  %2906 = vmatpush1.bf16.msra.mxu0 0
  %2907 = vmatprep.mubr.bf16.mxu0 0
  %2908 = vmatmul.mubr.bf16.gmra.mrb[0].mxu0 %v2873
  %v2909 = vpop.f32.mrb[0].mxu0
  %v2910 = vadd.f32 %v125, %v2909
  %v2911 = vpop.f32.mrb[0].mxu0
  %v2912 = vpop.f32.mrb[0].mxu0
  %v2913 = vpop.f32.mrb[0].mxu0
  %2914 = vdwg.mxu0
  %v2915 = vsel %vm554, %v2910, -inf
  %2916 = vmax.xlane.f32.xlu0 %v2915
  %v2917 = vpop.xlane.xlu0 %2916
  %v2918 = vsub.f32 %v2910, %v2917
  %v2919 = vmul.f32 %v2918, 1.442695
  %v2920 = vpow.pop %v2919
  %v2921 = vsel %vm554, %v2920, 0.0
  %2922 = vadd.xlane.f32.xlu0 %v2921
  %v2923 = vpop.xlane.xlu0 %2922
  %v2924 = vlog2.pop %v2923
  %v2925 = vmul.f32 %v2924, 0.6931472
  %v2926 = vadd.f32 %v2925, %v2917
  %v2927 = vsub.f32 %v2910, %v2926
  %v2928 = vlaneseq
  %v2929 = vshrl.u32 %v2928, 7
  %v2930 = vsub.s32 %v588, %v2929
  %v2931 = vrot.slane %v2767, %v2930
  %v2932 = vlaneseq
  %v2933 = vshrl.u32 %v2932, 7
  %v2934 = vsub.s32 %v588, %v2933
  %v2935 = vrot.slane %v2772, %v2934
  %v2936 = vsel %vm260, %v2935, %v2931
  %v2938 = vsel %vm434, %v2927, %v2936
  %v2939 = vsel %vm600, %v2938, 0.0
  %v2942 = vunpack.c.l.s4 1966171168
  %v2943 = vunpack.c.0.s8 %v2942
  %v2944 = vlaneseq
  %v2945 = vshrl.u32 %v2944, 7
  %v2946 = vsub.s32 %v2943, %v2945
  %v2947 = vrot.slane %v2939, %v2946
  %v2948 = vcombine.high %v2947, %v2947
  %v2950 = vunpack.c.l.s4 1966171168
  %v2951 = vunpack.c.0.s8 %v2950
  %v2952 = vlaneseq
  %v2953 = vshrl.u32 %v2952, 7
  %v2954 = vsub.s32 %v2951, %v2953
  %v2955 = vrot.slane %v2947, %v2954
  %v2957 = vunpack.c.l.s4 1966171168
  %v2958 = vunpack.c.0.s8 %v2957
  %v2959 = vlaneseq
  %v2960 = vshrl.u32 %v2959, 7
  %v2961 = vsub.s32 %v2958, %v2960
  %v2962 = vrot.slane %v2948, %v2961
  %2965 = vst [vmem:[%s4 + $0x7] sm:$0x1] %v2955
  %2966 = vst [vmem:[%s4 + $0xf] sm:$0x1] %v2962
  // Predicated region
  $region18: #{attn_decoder_forward.1} parent=0 // pred_check
    _
  $region19: #{attn_decoder_forward.1} parent=0 // pred_check_branch
    %2968 = sbr.rel (0) target = $region21
  $region20: #{attn_decoder_forward.1} parent=0 // pred_region
    _
  $region21: #{attn_decoder_forward.1} parent=0 // pred_fallthru
    _
  // Predicated region
  $region22: #{attn_decoder_forward.1} parent=0 // pred_check
    _
  $region23: #{attn_decoder_forward.1} parent=0 // pred_check_branch
    %2970 = sbr.rel (0) target = $region25
  $region24: #{attn_decoder_forward.1} parent=0 // pred_region
    _
  $region25: #{attn_decoder_forward.1} parent=0 // pred_fallthru
    _

</llo_original>
